<compile_context>
chip_gen: v7x
topology: tpu7x:2x2x1
jax: 0.10.0
libtpu: 0.0.40
codegen_flags: <defaults>
</compile_context>

<pallas_src>
import jax
import jax.numpy as jnp
import numpy as np
from jax.experimental import pallas as pl
from jax.experimental.pallas import tpu as pltpu


def _round_up(x, m):
    return ((x + m - 1) // m) * m


def _pick_batch_tile(B):
    """Largest tile in {8,4,2,1} that divides B and still leaves >=2 grid steps."""
    for bt in (8, 4, 2, 1):
        if B % bt == 0 and B // bt >= 2:
            return bt
    return min(B, 8)


# ---------------------------------------------------------------------------
# One-time weight packing: 5x5 'same' conv as 5 width-banded matmul weights.
# ---------------------------------------------------------------------------
def _band_matrices(w_oihw, W, cin_pad, oc_pad):
    """A[kh][iw*cin_pad + cin, col(ow, oc)] = w[oc, cin, kh, iw - ow + 2].

    Output columns are ordered col = (ow%2)*(W//2)*oc_pad + (ow//2)*oc_pad + oc
    so the 2x2 average pool's width reduction is a lane half-split add.
    """
    OC, CIN, KH, KW = w_oihw.shape
    half = (W // 2) * oc_pad
    A = np.zeros((KH, W * cin_pad, W * oc_pad), np.float32)
    for kh in range(KH):
        for ow in range(W):
            col = (ow % 2) * half + (ow // 2) * oc_pad
            for kw in range(KW):
                iw = ow + kw - 2
                if 0 <= iw < W:
                    A[kh, iw * cin_pad:iw * cin_pad + CIN, col:col + OC] = (
                        w_oihw[:, :, kh, kw].T)
    return A


def _bias_row(b, W, oc_pad):
    OC = b.shape[0]
    half = (W // 2) * oc_pad
    row = np.zeros((1, W * oc_pad), np.float32)
    for ow in range(W):
        col = (ow % 2) * half + (ow // 2) * oc_pad
        row[0, col:col + OC] = b
    return row


# ---------------------------------------------------------------------------
# Fully fused LeNet kernel (one batch tile per grid step).
# ---------------------------------------------------------------------------
def _lenet_fused_kernel(x_ref, a1_ref, b1_ref, a2_ref, b2_ref,
                        w1_ref, c1_ref, w2_ref, c2_ref, w3_ref, c3_ref,
                        o_ref, xpad1_ref, xpad2_ref):
    f32 = jnp.float32
    BT, H1, _ = x_ref.shape           # (BT, 32, 128): lanes = width(32) x Cpad(4)
    H2, H3 = H1 // 2, H1 // 4
    zb = jnp.zeros((BT, 2, 128), f32)

    # ---- conv1 (5x5, pad 2) + bias + ReLU + 2x2 avg pool -------------------
    xpad1_ref[:, :2, :] = zb                       # height zero-padding (borders)
    xpad1_ref[:, 2 + H1:, :] = zb
    xpad1_ref[:, 2:2 + H1, :] = x_ref[...]
    y = jnp.zeros((BT * H1, 256), f32)
    for kh in range(5):                            # 5 row taps, K=128 each
        rows = xpad1_ref[:, kh:kh + H1, :].reshape(BT * H1, 128)
        y = y + jnp.dot(rows, a1_ref[kh], preferred_element_type=f32)
    y = jnp.maximum(y + b1_ref[...], 0.0)
    # Pool: width pairs live in lane halves (band column order); height pairs
    # become lane halves after merging row pairs.  Pure VPU adds, no matmul.
    y = y[:, :128] + y[:, 128:]
    y = y.reshape(BT * H2, 256)
    y = (y[:, :128] + y[:, 128:]) * 0.25           # (BT*16, 128) = conv2 input

    # ---- conv2 (5x5, pad 2) + bias + ReLU + 2x2 avg pool --------------------
    xpad2_ref[:, :2, :] = zb
    xpad2_ref[:, 2 + H2:, :] = zb
    xpad2_ref[:, 2:2 + H2, :] = y.reshape(BT, H2, 128)
    y = jnp.zeros((BT * H2, 256), f32)
    for kh in range(5):
        rows = xpad2_ref[:, kh:kh + H2, :].reshape(BT * H2, 128)
        y = y + jnp.dot(rows, a2_ref[kh], preferred_element_type=f32)
    y = jnp.maximum(y + b2_ref[...], 0.0)
    y = y[:, :128] + y[:, 128:]
    y = y.reshape(BT * H3, 256)
    y = (y[:, :128] + y[:, 128:]) * 0.25           # (BT*8, 128)

    # ---- fc1 + ReLU + fc2 + ReLU + out (weights VMEM-resident) --------------
    h = y.reshape(BT, H3 * 128)                    # (BT, 1024) HWC flatten
    h = jnp.maximum(jnp.dot(h, w1_ref[...], preferred_element_type=f32) + c1_ref[...], 0.0)
    h = jnp.maximum(jnp.dot(h, w2_ref[...], preferred_element_type=f32) + c2_ref[...], 0.0)
    h = jnp.dot(h, w3_ref[...], preferred_element_type=f32) + c3_ref[...]
    o_ref[...] = h.reshape(BT, 1, 128).astype(o_ref.dtype)


def lenet_forward(x_nchw, packed, num_classes=4):
    B, _, H, W = x_nchw.shape                      # (B, 3, 32, 32)
    # NCHW -> lane-dense (B, 32, 128): lanes = width x (channels padded 3->4).
    x = jnp.transpose(x_nchw, (0, 2, 3, 1)).astype(jnp.float32)
    x = jnp.pad(x, ((0, 0), (0, 0), (0, 0), (0, 1)))
    x = x.reshape(B, H, W * 4)

    BT = _pick_batch_tile(B)
    BP = _round_up(B, BT)
    if BP != B:
        x = jnp.pad(x, ((0, BP - B), (0, 0), (0, 0)))

    out = pl.pallas_call(
        _lenet_fused_kernel,
        out_shape=jax.ShapeDtypeStruct((BP, 1, 128), jnp.float32),
        grid=(BP // BT,),
        in_specs=[
            pl.BlockSpec((BT, H, W * 4), lambda i: (i, 0, 0)),   # images
            pl.BlockSpec((5, 128, 256), lambda i: (0, 0, 0)),    # conv1 bands
            pl.BlockSpec((1, 256), lambda i: (0, 0)),            # conv1 bias row
            pl.BlockSpec((5, 128, 256), lambda i: (0, 0, 0)),    # conv2 bands
            pl.BlockSpec((1, 256), lambda i: (0, 0)),            # conv2 bias row
            pl.BlockSpec((1024, 128), lambda i: (0, 0)),         # fc1
            pl.BlockSpec((1, 128), lambda i: (0, 0)),
            pl.BlockSpec((128, 128), lambda i: (0, 0)),          # fc2
            pl.BlockSpec((1, 128), lambda i: (0, 0)),
            pl.BlockSpec((128, 128), lambda i: (0, 0)),          # out
            pl.BlockSpec((1, 128), lambda i: (0, 0)),
        ],
        out_specs=pl.BlockSpec((BT, 1, 128), lambda i: (i, 0, 0)),
        scratch_shapes=[
            pltpu.VMEM((BT, H + 4, 128), jnp.float32),        # conv1 height-pad
            pltpu.VMEM((BT, H // 2 + 4, 128), jnp.float32),   # conv2 height-pad
        ],
        compiler_params=pltpu.CompilerParams(dimension_semantics=("parallel",)),
    )(x, packed["a1"], packed["b1"], packed["a2"], packed["b2"],
      packed["fc1_w"], packed["fc1_b"], packed["fc2_w"], packed["fc2_b"],
      packed["fc3_w"], packed["fc3_b"])
    return out.reshape(BP, 128)[:B, :num_classes]


# ---------------------------------------------------------------------------
# Parameters (PyTorch layouts) and one-time packing into kernel layouts.
# ---------------------------------------------------------------------------
def init_params(key, num_classes=4):
    ks = jax.random.split(key, 10)

    def u(k, shape, fan_in):
        bound = 1.0 / jnp.sqrt(fan_in)
        return jax.random.uniform(k, shape, jnp.float32, -bound, bound)

    return {
        "w1": u(ks[0], (6, 3, 5, 5), 3 * 25),
        "b1": u(ks[1], (6,), 3 * 25),
        "w2": u(ks[2], (16, 6, 5, 5), 6 * 25),
        "b2": u(ks[3], (16,), 6 * 25),
        "fc1_w": u(ks[4], (120, 16 * 8 * 8), 16 * 8 * 8),
        "fc1_b": u(ks[5], (120,), 16 * 8 * 8),
        "fc2_w": u(ks[6], (84, 120), 120),
        "fc2_b": u(ks[7], (84,), 120),
        "out_w": u(ks[8], (num_classes, 84), 84),
        "out_b": u(ks[9], (num_classes,), 84),
    }


def pack_params(params):
    """One-time (outside jit) repack into lane-dense, pool-friendly layouts."""
    nc = params["out_w"].shape[0]
    a1 = _band_matrices(np.asarray(params["w1"]), W=32, cin_pad=4, oc_pad=8)
    b1 = _bias_row(np.asarray(params["b1"]), W=32, oc_pad=8)
    a2 = _band_matrices(np.asarray(params["w2"]), W=16, cin_pad=8, oc_pad=16)
    b2 = _bias_row(np.asarray(params["b2"]), W=16, oc_pad=16)

    # fc1 columns permuted from PyTorch CHW flatten to the kernel's HWC flatten.
    fc1 = np.asarray(params["fc1_w"]).reshape(120, 16, 8, 8)
    fc1 = fc1.transpose(0, 2, 3, 1).reshape(120, 1024)
    fc1_w = np.zeros((1024, 128), np.float32); fc1_w[:, :120] = fc1.T
    fc1_b = np.zeros((1, 128), np.float32); fc1_b[0, :120] = np.asarray(params["fc1_b"])
    fc2_w = np.zeros((128, 128), np.float32); fc2_w[:120, :84] = np.asarray(params["fc2_w"]).T
    fc2_b = np.zeros((1, 128), np.float32); fc2_b[0, :84] = np.asarray(params["fc2_b"])
    fc3_w = np.zeros((128, 128), np.float32); fc3_w[:84, :nc] = np.asarray(params["out_w"]).T
    fc3_b = np.zeros((1, 128), np.float32); fc3_b[0, :nc] = np.asarray(params["out_b"])

    raw = {"a1": a1, "b1": b1, "a2": a2, "b2": b2,
           "fc1_w": fc1_w, "fc1_b": fc1_b, "fc2_w": fc2_w, "fc2_b": fc2_b,
           "fc3_w": fc3_w, "fc3_b": fc3_b}
    return {k: jnp.asarray(v) for k, v in raw.items()}


# ---------------------------------------------------------------------------
# Pure-JAX reference (matches the PyTorch module) for a sanity check.
# ---------------------------------------------------------------------------
def lenet_reference(x_nchw, params):
    hp = jax.lax.Precision.HIGHEST

    def avg_pool(y):  # NCHW, 2x2 window, stride 2
        B, C, H, W = y.shape
        return y.reshape(B, C, H // 2, 2, W // 2, 2).mean(axis=(3, 5))

    def conv(y, w, b):
        y = jax.lax.conv_general_dilated(
            y, w, window_strides=(1, 1), padding=((2, 2), (2, 2)),
            dimension_numbers=("NCHW", "OIHW", "NCHW"), precision=hp)
        return jax.nn.relu(y + b.reshape(1, -1, 1, 1))

    y = avg_pool(conv(x_nchw, params["w1"], params["b1"]))
    y = avg_pool(conv(y, params["w2"], params["b2"]))
    y = y.reshape(y.shape[0], -1)
    y = jax.nn.relu(jnp.dot(y, params["fc1_w"].T, precision=hp) + params["fc1_b"])
    y = jax.nn.relu(jnp.dot(y, params["fc2_w"].T, precision=hp) + params["fc2_b"])
    return jnp.dot(y, params["out_w"].T, precision=hp) + params["out_b"]


if __name__ == "__main__":
    key = jax.random.PRNGKey(0)
    k_x, k_p = jax.random.split(key)

    # fc1 expects 16*8*8 features after two 2x2 pools => input is (B, 3, 32, 32).
    x = jax.random.normal(k_x, (2, 3, 32, 32), dtype=jnp.float32)
    params = init_params(k_p, num_classes=4)
    packed = pack_params(params)

    fwd = jax.jit(lenet_forward)
    out = jax.block_until_ready(fwd(x, packed))

    assert out.shape == (2, 4), out.shape
    assert bool(jnp.all(jnp.isfinite(out)))

    # Sanity check against the pure-JAX reference of the PyTorch module
    # (tolerance accommodates MXU accumulation-order / precision differences).
    ref = lenet_reference(x, params)
    err = float(jnp.max(jnp.abs(out - ref)))
    assert err < 5e-2, err

    print("KERNEL_OK")
</pallas_src>

<mosaic_0001>
module attributes {stable_mosaic.version = 11 : i64} {
  func.func @_lenet_fused_kernel(%arg0: i32, %arg1: memref<1x32x128xf32, #tpu.memory_space<vmem>>, %arg2: memref<5x128x256xf32, #tpu.memory_space<vmem>>, %arg3: memref<1x256xf32, #tpu.memory_space<vmem>>, %arg4: memref<5x128x256xf32, #tpu.memory_space<vmem>>, %arg5: memref<1x256xf32, #tpu.memory_space<vmem>>, %arg6: memref<1024x128xf32, #tpu.memory_space<vmem>>, %arg7: memref<1x128xf32, #tpu.memory_space<vmem>>, %arg8: memref<128x128xf32, #tpu.memory_space<vmem>>, %arg9: memref<1x128xf32, #tpu.memory_space<vmem>>, %arg10: memref<128x128xf32, #tpu.memory_space<vmem>>, %arg11: memref<1x128xf32, #tpu.memory_space<vmem>>, %arg12: memref<1x1x128xf32, #tpu.memory_space<vmem>>, %arg13: memref<1x36x128xf32, #tpu.memory_space<vmem>>, %arg14: memref<1x20x128xf32, #tpu.memory_space<vmem>>) attributes {dimension_semantics = [#tpu.dimension_semantics<parallel>], iteration_bounds = array<i64: 2>, scalar_prefetch = 0 : i64, scratch_operands = 2 : i64, tpu.core_type = #tpu.core_type<tc>, window_params = [{transform_indices = @transform_0, window_bounds = array<i64: 1, 32, 128>}, {pipeline_mode = #tpu.pipeline_mode<synchronous>, transform_indices = @transform_1, window_bounds = array<i64: 5, 128, 256>}, {pipeline_mode = #tpu.pipeline_mode<synchronous>, transform_indices = @transform_2, window_bounds = array<i64: 1, 256>}, {pipeline_mode = #tpu.pipeline_mode<synchronous>, transform_indices = @transform_3, window_bounds = array<i64: 5, 128, 256>}, {pipeline_mode = #tpu.pipeline_mode<synchronous>, transform_indices = @transform_4, window_bounds = array<i64: 1, 256>}, {pipeline_mode = #tpu.pipeline_mode<synchronous>, transform_indices = @transform_5, window_bounds = array<i64: 1024, 128>}, {pipeline_mode = #tpu.pipeline_mode<synchronous>, transform_indices = @transform_6, window_bounds = array<i64: 1, 128>}, {pipeline_mode = #tpu.pipeline_mode<synchronous>, transform_indices = @transform_7, window_bounds = array<i64: 128, 128>}, {pipeline_mode = #tpu.pipeline_mode<synchronous>, transform_indices = @transform_8, window_bounds = array<i64: 1, 128>}, {pipeline_mode = #tpu.pipeline_mode<synchronous>, transform_indices = @transform_9, window_bounds = array<i64: 128, 128>}, {pipeline_mode = #tpu.pipeline_mode<synchronous>, transform_indices = @transform_10, window_bounds = array<i64: 1, 128>}, {transform_indices = @transform_11, window_bounds = array<i64: 1, 1, 128>}]} {
    %cst = arith.constant 0.000000e+00 : f32
    %0 = vector.broadcast %cst : f32 to vector<1x2x128xf32>
    %c0 = arith.constant 0 : index
    %c0_0 = arith.constant 0 : index
    %c0_1 = arith.constant 0 : index
    %1 = vector.load %arg13[%c0, %c0_0, %c0_1] : memref<1x36x128xf32, #tpu.memory_space<vmem>>, vector<1x2x128xf32>
    tpu.vector_store %arg13[%c0, %c0_0, %c0_1], %0 {strides = array<i32>} : memref<1x36x128xf32, #tpu.memory_space<vmem>>, vector<1x2x128xf32>,
    %c0_2 = arith.constant 0 : index
    %c34 = arith.constant 34 : index
    %c0_3 = arith.constant 0 : index
    %2 = vector.load %arg13[%c0_2, %c34, %c0_3] : memref<1x36x128xf32, #tpu.memory_space<vmem>>, vector<1x2x128xf32>
    tpu.vector_store %arg13[%c0_2, %c34, %c0_3], %0 {strides = array<i32>} : memref<1x36x128xf32, #tpu.memory_space<vmem>>, vector<1x2x128xf32>,
    %c0_4 = arith.constant 0 : index
    %c0_5 = arith.constant 0 : index
    %c0_6 = arith.constant 0 : index
    %3 = vector.load %arg1[%c0_4, %c0_5, %c0_6] : memref<1x32x128xf32, #tpu.memory_space<vmem>>, vector<1x32x128xf32>
    %c0_7 = arith.constant 0 : index
    %c2 = arith.constant 2 : index
    %c0_8 = arith.constant 0 : index
    %4 = vector.load %arg13[%c0_7, %c2, %c0_8] : memref<1x36x128xf32, #tpu.memory_space<vmem>>, vector<1x32x128xf32>
    tpu.vector_store %arg13[%c0_7, %c2, %c0_8], %3 {strides = array<i32>} : memref<1x36x128xf32, #tpu.memory_space<vmem>>, vector<1x32x128xf32>,
    %cst_9 = arith.constant 0.000000e+00 : f32
    %5 = vector.broadcast %cst_9 : f32 to vector<32x256xf32>
    %c0_10 = arith.constant 0 : index
    %c0_11 = arith.constant 0 : index
    %c0_12 = arith.constant 0 : index
    %6 = vector.load %arg13[%c0_10, %c0_11, %c0_12] : memref<1x36x128xf32, #tpu.memory_space<vmem>>, vector<1x32x128xf32>
    %7 = vector.shape_cast %6 : vector<1x32x128xf32> to vector<32x128xf32>
    %c0_13 = arith.constant 0 : index
    %c0_14 = arith.constant 0 : index
    %c0_15 = arith.constant 0 : index
    %8 = vector.load %arg2[%c0_13, %c0_14, %c0_15] : memref<5x128x256xf32, #tpu.memory_space<vmem>>, vector<1x128x256xf32>
    %9 = vector.shape_cast %8 : vector<1x128x256xf32> to vector<128x256xf32>
    %cst_16 = arith.constant dense<0.000000e+00> : vector<32x256xf32>
    %10 = tpu.matmul %7, %9, %cst_16 {dimension_numbers = #tpu.dot_dimension_numbers<[1], [0], [0], [1], [0, 0, 1, 1], [], []>} : vector<32x128xf32>, vector<128x256xf32>, vector<32x256xf32> -> vector<32x256xf32>
    %11 = arith.addf %5, %10 : vector<32x256xf32>
    %c0_17 = arith.constant 0 : index
    %c1 = arith.constant 1 : index
    %c0_18 = arith.constant 0 : index
    %12 = vector.load %arg13[%c0_17, %c1, %c0_18] : memref<1x36x128xf32, #tpu.memory_space<vmem>>, vector<1x32x128xf32>
    %13 = vector.shape_cast %12 : vector<1x32x128xf32> to vector<32x128xf32>
    %c1_19 = arith.constant 1 : index
    %c0_20 = arith.constant 0 : index
    %c0_21 = arith.constant 0 : index
    %14 = vector.load %arg2[%c1_19, %c0_20, %c0_21] : memref<5x128x256xf32, #tpu.memory_space<vmem>>, vector<1x128x256xf32>
    %15 = vector.shape_cast %14 : vector<1x128x256xf32> to vector<128x256xf32>
    %cst_22 = arith.constant dense<0.000000e+00> : vector<32x256xf32>
    %16 = tpu.matmul %13, %15, %cst_22 {dimension_numbers = #tpu.dot_dimension_numbers<[1], [0], [0], [1], [0, 0, 1, 1], [], []>} : vector<32x128xf32>, vector<128x256xf32>, vector<32x256xf32> -> vector<32x256xf32>
    %17 = arith.addf %11, %16 : vector<32x256xf32>
    %c0_23 = arith.constant 0 : index
    %c2_24 = arith.constant 2 : index
    %c0_25 = arith.constant 0 : index
    %18 = vector.load %arg13[%c0_23, %c2_24, %c0_25] : memref<1x36x128xf32, #tpu.memory_space<vmem>>, vector<1x32x128xf32>
    %19 = vector.shape_cast %18 : vector<1x32x128xf32> to vector<32x128xf32>
    %c2_26 = arith.constant 2 : index
    %c0_27 = arith.constant 0 : index
    %c0_28 = arith.constant 0 : index
    %20 = vector.load %arg2[%c2_26, %c0_27, %c0_28] : memref<5x128x256xf32, #tpu.memory_space<vmem>>, vector<1x128x256xf32>
    %21 = vector.shape_cast %20 : vector<1x128x256xf32> to vector<128x256xf32>
    %cst_29 = arith.constant dense<0.000000e+00> : vector<32x256xf32>
    %22 = tpu.matmul %19, %21, %cst_29 {dimension_numbers = #tpu.dot_dimension_numbers<[1], [0], [0], [1], [0, 0, 1, 1], [], []>} : vector<32x128xf32>, vector<128x256xf32>, vector<32x256xf32> -> vector<32x256xf32>
    %23 = arith.addf %17, %22 : vector<32x256xf32>
    %c0_30 = arith.constant 0 : index
    %c3 = arith.constant 3 : index
    %c0_31 = arith.constant 0 : index
    %24 = vector.load %arg13[%c0_30, %c3, %c0_31] : memref<1x36x128xf32, #tpu.memory_space<vmem>>, vector<1x32x128xf32>
    %25 = vector.shape_cast %24 : vector<1x32x128xf32> to vector<32x128xf32>
    %c3_32 = arith.constant 3 : index
    %c0_33 = arith.constant 0 : index
    %c0_34 = arith.constant 0 : index
    %26 = vector.load %arg2[%c3_32, %c0_33, %c0_34] : memref<5x128x256xf32, #tpu.memory_space<vmem>>, vector<1x128x256xf32>
    %27 = vector.shape_cast %26 : vector<1x128x256xf32> to vector<128x256xf32>
    %cst_35 = arith.constant dense<0.000000e+00> : vector<32x256xf32>
    %28 = tpu.matmul %25, %27, %cst_35 {dimension_numbers = #tpu.dot_dimension_numbers<[1], [0], [0], [1], [0, 0, 1, 1], [], []>} : vector<32x128xf32>, vector<128x256xf32>, vector<32x256xf32> -> vector<32x256xf32>
    %29 = arith.addf %23, %28 : vector<32x256xf32>
    %c0_36 = arith.constant 0 : index
    %c4 = arith.constant 4 : index
    %c0_37 = arith.constant 0 : index
    %30 = vector.load %arg13[%c0_36, %c4, %c0_37] : memref<1x36x128xf32, #tpu.memory_space<vmem>>, vector<1x32x128xf32>
    %31 = vector.shape_cast %30 : vector<1x32x128xf32> to vector<32x128xf32>
    %c4_38 = arith.constant 4 : index
    %c0_39 = arith.constant 0 : index
    %c0_40 = arith.constant 0 : index
    %32 = vector.load %arg2[%c4_38, %c0_39, %c0_40] : memref<5x128x256xf32, #tpu.memory_space<vmem>>, vector<1x128x256xf32>
    %33 = vector.shape_cast %32 : vector<1x128x256xf32> to vector<128x256xf32>
    %cst_41 = arith.constant dense<0.000000e+00> : vector<32x256xf32>
    %34 = tpu.matmul %31, %33, %cst_41 {dimension_numbers = #tpu.dot_dimension_numbers<[1], [0], [0], [1], [0, 0, 1, 1], [], []>} : vector<32x128xf32>, vector<128x256xf32>, vector<32x256xf32> -> vector<32x256xf32>
    %35 = arith.addf %29, %34 : vector<32x256xf32>
    %c0_42 = arith.constant 0 : index
    %c0_43 = arith.constant 0 : index
    %36 = vector.load %arg3[%c0_42, %c0_43] : memref<1x256xf32, #tpu.memory_space<vmem>>, vector<1x256xf32>
    %37 = vector.broadcast %36 : vector<1x256xf32> to vector<32x256xf32>
    %38 = arith.addf %35, %37 : vector<32x256xf32>
    %cst_44 = arith.constant 0.000000e+00 : f32
    %39 = vector.broadcast %cst_44 : f32 to vector<32x256xf32>
    %40 = arith.maximumf %38, %39 : vector<32x256xf32>
    %41 = vector.extract_strided_slice %40 {offsets = [0, 0], sizes = [32, 128], strides = [1, 1]} : vector<32x256xf32> to vector<32x128xf32>
    %42 = vector.extract_strided_slice %40 {offsets = [0, 128], sizes = [32, 128], strides = [1, 1]} : vector<32x256xf32> to vector<32x128xf32>
    %43 = arith.addf %41, %42 : vector<32x128xf32>
    %44 = vector.shape_cast %43 : vector<32x128xf32> to vector<16x256xf32>
    %45 = vector.extract_strided_slice %44 {offsets = [0, 0], sizes = [16, 128], strides = [1, 1]} : vector<16x256xf32> to vector<16x128xf32>
    %46 = vector.extract_strided_slice %44 {offsets = [0, 128], sizes = [16, 128], strides = [1, 1]} : vector<16x256xf32> to vector<16x128xf32>
    %47 = arith.addf %45, %46 : vector<16x128xf32>
    %cst_45 = arith.constant 2.500000e-01 : f32
    %48 = vector.broadcast %cst_45 : f32 to vector<16x128xf32>
    %49 = arith.mulf %47, %48 : vector<16x128xf32>
    %c0_46 = arith.constant 0 : index
    %c0_47 = arith.constant 0 : index
    %c0_48 = arith.constant 0 : index
    %50 = vector.load %arg14[%c0_46, %c0_47, %c0_48] : memref<1x20x128xf32, #tpu.memory_space<vmem>>, vector<1x2x128xf32>
    tpu.vector_store %arg14[%c0_46, %c0_47, %c0_48], %0 {strides = array<i32>} : memref<1x20x128xf32, #tpu.memory_space<vmem>>, vector<1x2x128xf32>,
    %c0_49 = arith.constant 0 : index
    %c18 = arith.constant 18 : index
    %c0_50 = arith.constant 0 : index
    %51 = vector.load %arg14[%c0_49, %c18, %c0_50] : memref<1x20x128xf32, #tpu.memory_space<vmem>>, vector<1x2x128xf32>
    tpu.vector_store %arg14[%c0_49, %c18, %c0_50], %0 {strides = array<i32>} : memref<1x20x128xf32, #tpu.memory_space<vmem>>, vector<1x2x128xf32>,
    %52 = vector.shape_cast %49 : vector<16x128xf32> to vector<1x16x128xf32>
    %c0_51 = arith.constant 0 : index
    %c2_52 = arith.constant 2 : index
    %c0_53 = arith.constant 0 : index
    %53 = vector.load %arg14[%c0_51, %c2_52, %c0_53] : memref<1x20x128xf32, #tpu.memory_space<vmem>>, vector<1x16x128xf32>
    tpu.vector_store %arg14[%c0_51, %c2_52, %c0_53], %52 {strides = array<i32>} : memref<1x20x128xf32, #tpu.memory_space<vmem>>, vector<1x16x128xf32>,
    %cst_54 = arith.constant 0.000000e+00 : f32
    %54 = vector.broadcast %cst_54 : f32 to vector<16x256xf32>
    %c0_55 = arith.constant 0 : index
    %c0_56 = arith.constant 0 : index
    %c0_57 = arith.constant 0 : index
    %55 = vector.load %arg14[%c0_55, %c0_56, %c0_57] : memref<1x20x128xf32, #tpu.memory_space<vmem>>, vector<1x16x128xf32>
    %56 = vector.shape_cast %55 : vector<1x16x128xf32> to vector<16x128xf32>
    %c0_58 = arith.constant 0 : index
    %c0_59 = arith.constant 0 : index
    %c0_60 = arith.constant 0 : index
    %57 = vector.load %arg4[%c0_58, %c0_59, %c0_60] : memref<5x128x256xf32, #tpu.memory_space<vmem>>, vector<1x128x256xf32>
    %58 = vector.shape_cast %57 : vector<1x128x256xf32> to vector<128x256xf32>
    %cst_61 = arith.constant dense<0.000000e+00> : vector<16x256xf32>
    %59 = tpu.matmul %56, %58, %cst_61 {dimension_numbers = #tpu.dot_dimension_numbers<[1], [0], [0], [1], [0, 0, 1, 1], [], []>} : vector<16x128xf32>, vector<128x256xf32>, vector<16x256xf32> -> vector<16x256xf32>
    %60 = arith.addf %54, %59 : vector<16x256xf32>
    %c0_62 = arith.constant 0 : index
    %c1_63 = arith.constant 1 : index
    %c0_64 = arith.constant 0 : index
    %61 = vector.load %arg14[%c0_62, %c1_63, %c0_64] : memref<1x20x128xf32, #tpu.memory_space<vmem>>, vector<1x16x128xf32>
    %62 = vector.shape_cast %61 : vector<1x16x128xf32> to vector<16x128xf32>
    %c1_65 = arith.constant 1 : index
    %c0_66 = arith.constant 0 : index
    %c0_67 = arith.constant 0 : index
    %63 = vector.load %arg4[%c1_65, %c0_66, %c0_67] : memref<5x128x256xf32, #tpu.memory_space<vmem>>, vector<1x128x256xf32>
    %64 = vector.shape_cast %63 : vector<1x128x256xf32> to vector<128x256xf32>
    %cst_68 = arith.constant dense<0.000000e+00> : vector<16x256xf32>
    %65 = tpu.matmul %62, %64, %cst_68 {dimension_numbers = #tpu.dot_dimension_numbers<[1], [0], [0], [1], [0, 0, 1, 1], [], []>} : vector<16x128xf32>, vector<128x256xf32>, vector<16x256xf32> -> vector<16x256xf32>
    %66 = arith.addf %60, %65 : vector<16x256xf32>
    %c0_69 = arith.constant 0 : index
    %c2_70 = arith.constant 2 : index
    %c0_71 = arith.constant 0 : index
    %67 = vector.load %arg14[%c0_69, %c2_70, %c0_71] : memref<1x20x128xf32, #tpu.memory_space<vmem>>, vector<1x16x128xf32>
    %68 = vector.shape_cast %67 : vector<1x16x128xf32> to vector<16x128xf32>
    %c2_72 = arith.constant 2 : index
    %c0_73 = arith.constant 0 : index
    %c0_74 = arith.constant 0 : index
    %69 = vector.load %arg4[%c2_72, %c0_73, %c0_74] : memref<5x128x256xf32, #tpu.memory_space<vmem>>, vector<1x128x256xf32>
    %70 = vector.shape_cast %69 : vector<1x128x256xf32> to vector<128x256xf32>
    %cst_75 = arith.constant dense<0.000000e+00> : vector<16x256xf32>
    %71 = tpu.matmul %68, %70, %cst_75 {dimension_numbers = #tpu.dot_dimension_numbers<[1], [0], [0], [1], [0, 0, 1, 1], [], []>} : vector<16x128xf32>, vector<128x256xf32>, vector<16x256xf32> -> vector<16x256xf32>
    %72 = arith.addf %66, %71 : vector<16x256xf32>
    %c0_76 = arith.constant 0 : index
    %c3_77 = arith.constant 3 : index
    %c0_78 = arith.constant 0 : index
    %73 = vector.load %arg14[%c0_76, %c3_77, %c0_78] : memref<1x20x128xf32, #tpu.memory_space<vmem>>, vector<1x16x128xf32>
    %74 = vector.shape_cast %73 : vector<1x16x128xf32> to vector<16x128xf32>
    %c3_79 = arith.constant 3 : index
    %c0_80 = arith.constant 0 : index
    %c0_81 = arith.constant 0 : index
    %75 = vector.load %arg4[%c3_79, %c0_80, %c0_81] : memref<5x128x256xf32, #tpu.memory_space<vmem>>, vector<1x128x256xf32>
    %76 = vector.shape_cast %75 : vector<1x128x256xf32> to vector<128x256xf32>
    %cst_82 = arith.constant dense<0.000000e+00> : vector<16x256xf32>
    %77 = tpu.matmul %74, %76, %cst_82 {dimension_numbers = #tpu.dot_dimension_numbers<[1], [0], [0], [1], [0, 0, 1, 1], [], []>} : vector<16x128xf32>, vector<128x256xf32>, vector<16x256xf32> -> vector<16x256xf32>
    %78 = arith.addf %72, %77 : vector<16x256xf32>
    %c0_83 = arith.constant 0 : index
    %c4_84 = arith.constant 4 : index
    %c0_85 = arith.constant 0 : index
    %79 = vector.load %arg14[%c0_83, %c4_84, %c0_85] : memref<1x20x128xf32, #tpu.memory_space<vmem>>, vector<1x16x128xf32>
    %80 = vector.shape_cast %79 : vector<1x16x128xf32> to vector<16x128xf32>
    %c4_86 = arith.constant 4 : index
    %c0_87 = arith.constant 0 : index
    %c0_88 = arith.constant 0 : index
    %81 = vector.load %arg4[%c4_86, %c0_87, %c0_88] : memref<5x128x256xf32, #tpu.memory_space<vmem>>, vector<1x128x256xf32>
    %82 = vector.shape_cast %81 : vector<1x128x256xf32> to vector<128x256xf32>
    %cst_89 = arith.constant dense<0.000000e+00> : vector<16x256xf32>
    %83 = tpu.matmul %80, %82, %cst_89 {dimension_numbers = #tpu.dot_dimension_numbers<[1], [0], [0], [1], [0, 0, 1, 1], [], []>} : vector<16x128xf32>, vector<128x256xf32>, vector<16x256xf32> -> vector<16x256xf32>
    %84 = arith.addf %78, %83 : vector<16x256xf32>
    %c0_90 = arith.constant 0 : index
    %c0_91 = arith.constant 0 : index
    %85 = vector.load %arg5[%c0_90, %c0_91] : memref<1x256xf32, #tpu.memory_space<vmem>>, vector<1x256xf32>
    %86 = vector.broadcast %85 : vector<1x256xf32> to vector<16x256xf32>
    %87 = arith.addf %84, %86 : vector<16x256xf32>
    %cst_92 = arith.constant 0.000000e+00 : f32
    %88 = vector.broadcast %cst_92 : f32 to vector<16x256xf32>
    %89 = arith.maximumf %87, %88 : vector<16x256xf32>
    %90 = vector.extract_strided_slice %89 {offsets = [0, 0], sizes = [16, 128], strides = [1, 1]} : vector<16x256xf32> to vector<16x128xf32>
    %91 = vector.extract_strided_slice %89 {offsets = [0, 128], sizes = [16, 128], strides = [1, 1]} : vector<16x256xf32> to vector<16x128xf32>
    %92 = arith.addf %90, %91 : vector<16x128xf32>
    %93 = vector.shape_cast %92 : vector<16x128xf32> to vector<8x256xf32>
    %94 = vector.extract_strided_slice %93 {offsets = [0, 0], sizes = [8, 128], strides = [1, 1]} : vector<8x256xf32> to vector<8x128xf32>
    %95 = vector.extract_strided_slice %93 {offsets = [0, 128], sizes = [8, 128], strides = [1, 1]} : vector<8x256xf32> to vector<8x128xf32>
    %96 = arith.addf %94, %95 : vector<8x128xf32>
    %cst_93 = arith.constant 2.500000e-01 : f32
    %97 = vector.broadcast %cst_93 : f32 to vector<8x128xf32>
    %98 = arith.mulf %96, %97 : vector<8x128xf32>
    %99 = vector.shape_cast %98 : vector<8x128xf32> to vector<1x1024xf32>
    %c0_94 = arith.constant 0 : index
    %c0_95 = arith.constant 0 : index
    %100 = vector.load %arg6[%c0_94, %c0_95] : memref<1024x128xf32, #tpu.memory_space<vmem>>, vector<1024x128xf32>
    %cst_96 = arith.constant dense<0.000000e+00> : vector<1x128xf32>
    %101 = tpu.matmul %99, %100, %cst_96 {dimension_numbers = #tpu.dot_dimension_numbers<[1], [0], [0], [1], [0, 0, 1, 1], [], []>} : vector<1x1024xf32>, vector<1024x128xf32>, vector<1x128xf32> -> vector<1x128xf32>
    %c0_97 = arith.constant 0 : index
    %c0_98 = arith.constant 0 : index
    %102 = vector.load %arg7[%c0_97, %c0_98] : memref<1x128xf32, #tpu.memory_space<vmem>>, vector<1x128xf32>
    %103 = arith.addf %101, %102 : vector<1x128xf32>
    %cst_99 = arith.constant 0.000000e+00 : f32
    %104 = vector.broadcast %cst_99 : f32 to vector<1x128xf32>
    %105 = arith.maximumf %103, %104 : vector<1x128xf32>
    %c0_100 = arith.constant 0 : index
    %c0_101 = arith.constant 0 : index
    %106 = vector.load %arg8[%c0_100, %c0_101] : memref<128x128xf32, #tpu.memory_space<vmem>>, vector<128x128xf32>
    %cst_102 = arith.constant dense<0.000000e+00> : vector<1x128xf32>
    %107 = tpu.matmul %105, %106, %cst_102 {dimension_numbers = #tpu.dot_dimension_numbers<[1], [0], [0], [1], [0, 0, 1, 1], [], []>} : vector<1x128xf32>, vector<128x128xf32>, vector<1x128xf32> -> vector<1x128xf32>
    %c0_103 = arith.constant 0 : index
    %c0_104 = arith.constant 0 : index
    %108 = vector.load %arg9[%c0_103, %c0_104] : memref<1x128xf32, #tpu.memory_space<vmem>>, vector<1x128xf32>
    %109 = arith.addf %107, %108 : vector<1x128xf32>
    %cst_105 = arith.constant 0.000000e+00 : f32
    %110 = vector.broadcast %cst_105 : f32 to vector<1x128xf32>
    %111 = arith.maximumf %109, %110 : vector<1x128xf32>
    %c0_106 = arith.constant 0 : index
    %c0_107 = arith.constant 0 : index
    %112 = vector.load %arg10[%c0_106, %c0_107] : memref<128x128xf32, #tpu.memory_space<vmem>>, vector<128x128xf32>
    %cst_108 = arith.constant dense<0.000000e+00> : vector<1x128xf32>
    %113 = tpu.matmul %111, %112, %cst_108 {dimension_numbers = #tpu.dot_dimension_numbers<[1], [0], [0], [1], [0, 0, 1, 1], [], []>} : vector<1x128xf32>, vector<128x128xf32>, vector<1x128xf32> -> vector<1x128xf32>
    %c0_109 = arith.constant 0 : index
    %c0_110 = arith.constant 0 : index
    %114 = vector.load %arg11[%c0_109, %c0_110] : memref<1x128xf32, #tpu.memory_space<vmem>>, vector<1x128xf32>
    %115 = arith.addf %113, %114 : vector<1x128xf32>
    %116 = vector.shape_cast %115 : vector<1x128xf32> to vector<1x1x128xf32>
    %c0_111 = arith.constant 0 : index
    %c0_112 = arith.constant 0 : index
    %c0_113 = arith.constant 0 : index
    %117 = vector.load %arg12[%c0_111, %c0_112, %c0_113] : memref<1x1x128xf32, #tpu.memory_space<vmem>>, vector<1x1x128xf32>
    tpu.vector_store %arg12[%c0_111, %c0_112, %c0_113], %116 {strides = array<i32>} : memref<1x1x128xf32, #tpu.memory_space<vmem>>, vector<1x1x128xf32>,
    return
  }
  func.func @transform_0(%arg0: i32) -> (i32, i32, i32) {
    %c0_i32 = arith.constant 0 : i32
    %c0_i32_0 = arith.constant 0 : i32
    %c0_i32_1 = arith.constant 0 : i32
    return %arg0, %c0_i32, %c0_i32_0 : i32, i32, i32
  }
  func.func @transform_1(%arg0: i32) -> (i32, i32, i32) {
    %c0_i32 = arith.constant 0 : i32
    %c0_i32_0 = arith.constant 0 : i32
    %c0_i32_1 = arith.constant 0 : i32
    %c0_i32_2 = arith.constant 0 : i32
    return %c0_i32, %c0_i32_0, %c0_i32_1 : i32, i32, i32
  }
  func.func @transform_2(%arg0: i32) -> (i32, i32) {
    %c0_i32 = arith.constant 0 : i32
    %c0_i32_0 = arith.constant 0 : i32
    %c0_i32_1 = arith.constant 0 : i32
    return %c0_i32, %c0_i32_0 : i32, i32
  }
  func.func @transform_3(%arg0: i32) -> (i32, i32, i32) {
    %c0_i32 = arith.constant 0 : i32
    %c0_i32_0 = arith.constant 0 : i32
    %c0_i32_1 = arith.constant 0 : i32
    %c0_i32_2 = arith.constant 0 : i32
    return %c0_i32, %c0_i32_0, %c0_i32_1 : i32, i32, i32
  }
  func.func @transform_4(%arg0: i32) -> (i32, i32) {
    %c0_i32 = arith.constant 0 : i32
    %c0_i32_0 = arith.constant 0 : i32
    %c0_i32_1 = arith.constant 0 : i32
    return %c0_i32, %c0_i32_0 : i32, i32
  }
  func.func @transform_5(%arg0: i32) -> (i32, i32) {
    %c0_i32 = arith.constant 0 : i32
    %c0_i32_0 = arith.constant 0 : i32
    %c0_i32_1 = arith.constant 0 : i32
    return %c0_i32, %c0_i32_0 : i32, i32
  }
  func.func @transform_6(%arg0: i32) -> (i32, i32) {
    %c0_i32 = arith.constant 0 : i32
    %c0_i32_0 = arith.constant 0 : i32
    %c0_i32_1 = arith.constant 0 : i32
    return %c0_i32, %c0_i32_0 : i32, i32
  }
  func.func @transform_7(%arg0: i32) -> (i32, i32) {
    %c0_i32 = arith.constant 0 : i32
    %c0_i32_0 = arith.constant 0 : i32
    %c0_i32_1 = arith.constant 0 : i32
    return %c0_i32, %c0_i32_0 : i32, i32
  }
  func.func @transform_8(%arg0: i32) -> (i32, i32) {
    %c0_i32 = arith.constant 0 : i32
    %c0_i32_0 = arith.constant 0 : i32
    %c0_i32_1 = arith.constant 0 : i32
    return %c0_i32, %c0_i32_0 : i32, i32
  }
  func.func @transform_9(%arg0: i32) -> (i32, i32) {
    %c0_i32 = arith.constant 0 : i32
    %c0_i32_0 = arith.constant 0 : i32
    %c0_i32_1 = arith.constant 0 : i32
    return %c0_i32, %c0_i32_0 : i32, i32
  }
  func.func @transform_10(%arg0: i32) -> (i32, i32) {
    %c0_i32 = arith.constant 0 : i32
    %c0_i32_0 = arith.constant 0 : i32
    %c0_i32_1 = arith.constant 0 : i32
    return %c0_i32, %c0_i32_0 : i32, i32
  }
  func.func @transform_11(%arg0: i32) -> (i32, i32, i32) {
    %c0_i32 = arith.constant 0 : i32
    %c0_i32_0 = arith.constant 0 : i32
    %c0_i32_1 = arith.constant 0 : i32
    return %arg0, %c0_i32, %c0_i32_0 : i32, i32, i32
  }
}

</mosaic_0001>

<llo_original>
// kernel: lenet_forward.1
$region0: #{lenet_forward.1}
  #allocation0 [shape = 'u32[]', space=smem, size = 0x4, offset = 0x4, fixed_abs, tag = 'smem constant byte address 0x4 - core index']
  #allocation1 [shape = 'u32[144,128]{1,0:T(1,128)}', space=vmem, size = 0x12000, scoped, tag = 'internal scratch']
  #allocation2 [shape = 'f32[1,36,128]{2,1,0:T(8,128)}', space=vmem, size = 0x5000, scoped, tag = 'scratch operand']
  #allocation3 [shape = 'f32[1,20,128]{2,1,0:T(8,128)}', space=vmem, size = 0x3000, scoped, tag = 'scratch operand']
  %s0 = inlined_call_operand.vmem [shape: f32[2,32,128], index: 0, kind: input, shape index: {}]
  %s1 = inlined_call_operand.vmem [shape: f32[5,128,256], index: 1, kind: input, shape index: {}]
  %s2 = inlined_call_operand.vmem [shape: f32[1,256], index: 2, kind: input, shape index: {}]
  %s3 = inlined_call_operand.hbm [shape: f32[5,128,256], index: 3, kind: input, shape index: {}]
  %s4 = inlined_call_operand.vmem [shape: f32[1,256], index: 4, kind: input, shape index: {}]
  %s5 = inlined_call_operand.hbm [shape: f32[1024,128], index: 5, kind: input, shape index: {}]
  %s6 = inlined_call_operand.vmem [shape: f32[1,128], index: 6, kind: input, shape index: {}]
  %s7 = inlined_call_operand.hbm [shape: f32[128,128], index: 7, kind: input, shape index: {}]
  %s8 = inlined_call_operand.vmem [shape: f32[1,128], index: 8, kind: input, shape index: {}]
  %s9 = inlined_call_operand.hbm [shape: f32[128,128], index: 9, kind: input, shape index: {}]
  %s10 = inlined_call_operand.vmem [shape: f32[1,128], index: 10, kind: input, shape index: {}]
  %s11 = inlined_call_operand.hbm [shape: f32[2,1,128], index: 11, kind: output, shape index: {}]
  %s12 = sld [smem:[#allocation0]]
  $region93: #{lenet_forward.1} parent=0
    _
  %s14 = ssub.s32 1, %s12
  %s15 = scalar_select 0, %s14, %s12
  $region1: #{lenet_forward.1} parent=0
    #allocation4 [shape = 'u8[655360]{0}', space=vmem, size = 0xa0000, scoped, tag = 'input window, operand 3, single buffered']
    #allocation5 [shape = 's32[2]{0}', space=sflag, size = 0x8, scoped, tag = 'scoped memory for lenet_forward.1']
    #allocation6 [shape = 's32[2]{0}', space=sflag, size = 0x8, scoped, tag = 'scoped memory for lenet_forward.1']
    #allocation7 [shape = 'u8[524288]{0}', space=vmem, size = 0x80000, scoped, tag = 'input window, operand 5, single buffered']
    #allocation8 [shape = 's32[1]{0}', space=sflag, size = 0x4, scoped, tag = 'scoped memory for lenet_forward.1']
    #allocation9 [shape = 'u8[65536]{0}', space=vmem, size = 0x10000, scoped, tag = 'input window, operand 7, single buffered']
    #allocation10 [shape = 'u8[65536]{0}', space=vmem, size = 0x10000, scoped, tag = 'input window, operand 9, single buffered']
    #allocation11 [shape = 's32[1]{0}', space=sflag, size = 0x4, scoped, tag = 'scoped memory for lenet_forward.1']
    #allocation12 [shape = 'u8[1024]{0}', space=vmem, size = 0x400, scoped, tag = 'output window, operand 0']
    %16 = vsyncpa [#allocation5], 0
    %17 = vsyncpa [#allocation8], 0
    %18 = vsyncpa [#allocation11], 0
    %19 = vsyncpa [#allocation6], 0
    %s20 = scalar_lea.sflag [#allocation6], 1
    %21 = vsyncpa %s20, 0
    loop: start=0, step=1, limit=4
    $region2: #{lenet_forward.1} parent=1 // loop_pre_header
      _
    $region3: #{lenet_forward.1} parent=1 // loop_header
      %s23 = sphi 0, %s27
      %p24 = scmp.ge.s32.totalorder %s23, 4
      %s33 = sphi 0, %s35
      %s36 = sphi 0, %s33
      %s37 = sphi 0, %s36
      %s53 = sphi 0, %s37
      %s57 = sphi 0, %s57
      %s59 = sphi 0, %s57
      %s60 = sphi 0, %s59
      %s74 = sphi 0, %s60
      %s78 = sphi 0, %s78
      %s80 = sphi 0, %s78
      %s81 = sphi 0, %s80
      %s95 = sphi 0, %s81
      %s99 = sphi 0, %s99
      %s101 = sphi 0, %s99
      %s102 = sphi 0, %s101
      %s116 = sphi 0, %s102
      %s120 = sphi 0, %s120
      %s122 = sphi 0, %s120
      %s123 = sphi 0, %s122
      %s137 = sphi 0, %s123
      %s141 = sphi 0, %s141
      %s143 = sphi 0, %s141
      %s144 = sphi 0, %s143
      %s158 = sphi 0, %s144
      %s162 = sphi 0, %s162
      %s164 = sphi 0, %s162
      %s165 = sphi 0, %s164
      %s179 = sphi 0, %s165
      %s183 = sphi 0, %s183
      %s185 = sphi 0, %s183
      %s186 = sphi 0, %s185
      %s200 = sphi 0, %s186
      %s204 = sphi 0, %s204
      %s206 = sphi 0, %s204
      %s207 = sphi 0, %s206
      %s221 = sphi 0, %s207
      %s225 = sphi 0, %s225
      %s227 = sphi 0, %s225
      %s228 = sphi 0, %s227
      %s242 = sphi 0, %s228
      %s246 = sphi 0, %s246
      %s248 = sphi 0, %s246
      %s249 = sphi 0, %s248
      %s263 = sphi 0, %s249
      %s269 = sphi 0, %s271
      %s272 = sphi 0, %s269
      %s273 = sphi 0, %s272
      %s289 = sphi 0, %s273
    $region4: #{lenet_forward.1} parent=1 // loop_header_branch
      %26 = sbr.rel (%p24) target = $region8
    $region5: #{lenet_forward.1} parent=1 // loop_body
      %s28 = ssub.s32 %s23, 1
      %s29 = ssub.s32 %s23, 2
      %s30 = sadd.s32 %s23, 1
      %s31 = ssub.s32 %s23, %s30
      %p32 = scmp.eq.s32.totalorder %s31, 0
      %s34 = sadd.s32 %s33, 1
      %s35 = scalar_select %p32, %s33, %s34
      %p38 = pneg %p32
      %p39 = scmp.eq.s32.totalorder %s23, 1
      %p40 = por %p38, %p39
      %p41 = scmp.ne.s32.totalorder %s33, %s36
      %p42 = scmp.eq.s32.totalorder %s23, 0
      %p43 = por %p41, %p42
      %p44 = scmp.ne.s32.totalorder %s33, %s36
      %p45 = scmp.eq.s32.totalorder %s28, 1
      %p46 = por %p44, %p45
      %p47 = scmp.ne.s32.totalorder %s36, %s37
      %p48 = scmp.eq.s32.totalorder %s28, 0
      %p49 = por %p47, %p48
      %p50 = scmp.ne.s32.totalorder %s36, %s37
      %p51 = scmp.eq.s32.totalorder %s29, 1
      %p52 = por %p50, %p51
      %p54 = scmp.ne.s32.totalorder %s37, %s53
      %p55 = scmp.eq.s32.totalorder %s29, 0
      %p56 = por %p54, %p55
      %s58 = sadd.s32 %s57, 1
      %p61 = scmp.eq.s32.totalorder %s23, 1
      %p62 = scmp.ne.s32.totalorder %s57, %s59
      %p63 = scmp.eq.s32.totalorder %s23, 0
      %p64 = por %p62, %p63
      %p65 = scmp.ne.s32.totalorder %s57, %s59
      %p66 = scmp.eq.s32.totalorder %s28, 1
      %p67 = por %p65, %p66
      %p68 = scmp.ne.s32.totalorder %s59, %s60
      %p69 = scmp.eq.s32.totalorder %s28, 0
      %p70 = por %p68, %p69
      %p71 = scmp.ne.s32.totalorder %s59, %s60
      %p72 = scmp.eq.s32.totalorder %s29, 1
      %p73 = por %p71, %p72
      %p75 = scmp.ne.s32.totalorder %s60, %s74
      %p76 = scmp.eq.s32.totalorder %s29, 0
      %p77 = por %p75, %p76
      %s79 = sadd.s32 %s78, 1
      %p82 = scmp.eq.s32.totalorder %s23, 1
      %p83 = scmp.ne.s32.totalorder %s78, %s80
      %p84 = scmp.eq.s32.totalorder %s23, 0
      %p85 = por %p83, %p84
      %p86 = scmp.ne.s32.totalorder %s78, %s80
      %p87 = scmp.eq.s32.totalorder %s28, 1
      %p88 = por %p86, %p87
      %p89 = scmp.ne.s32.totalorder %s80, %s81
      %p90 = scmp.eq.s32.totalorder %s28, 0
      %p91 = por %p89, %p90
      %p92 = scmp.ne.s32.totalorder %s80, %s81
      %p93 = scmp.eq.s32.totalorder %s29, 1
      %p94 = por %p92, %p93
      %p96 = scmp.ne.s32.totalorder %s81, %s95
      %p97 = scmp.eq.s32.totalorder %s29, 0
      %p98 = por %p96, %p97
      %s100 = sadd.s32 %s99, 1
      %p103 = scmp.eq.s32.totalorder %s23, 1
      %p104 = scmp.ne.s32.totalorder %s99, %s101
      %p105 = scmp.eq.s32.totalorder %s23, 0
      %p106 = por %p104, %p105
      %p107 = scmp.ne.s32.totalorder %s99, %s101
      %p108 = scmp.eq.s32.totalorder %s28, 1
      %p109 = por %p107, %p108
      %p110 = scmp.ne.s32.totalorder %s101, %s102
      %p111 = scmp.eq.s32.totalorder %s28, 0
      %p112 = por %p110, %p111
      %p113 = scmp.ne.s32.totalorder %s101, %s102
      %p114 = scmp.eq.s32.totalorder %s29, 1
      %p115 = por %p113, %p114
      %p117 = scmp.ne.s32.totalorder %s102, %s116
      %p118 = scmp.eq.s32.totalorder %s29, 0
      %p119 = por %p117, %p118
      %s121 = sadd.s32 %s120, 1
      %p124 = scmp.eq.s32.totalorder %s23, 1
      %p125 = scmp.ne.s32.totalorder %s120, %s122
      %p126 = scmp.eq.s32.totalorder %s23, 0
      %p127 = por %p125, %p126
      %p128 = scmp.ne.s32.totalorder %s120, %s122
      %p129 = scmp.eq.s32.totalorder %s28, 1
      %p130 = por %p128, %p129
      %p131 = scmp.ne.s32.totalorder %s122, %s123
      %p132 = scmp.eq.s32.totalorder %s28, 0
      %p133 = por %p131, %p132
      %p134 = scmp.ne.s32.totalorder %s122, %s123
      %p135 = scmp.eq.s32.totalorder %s29, 1
      %p136 = por %p134, %p135
      %p138 = scmp.ne.s32.totalorder %s123, %s137
      %p139 = scmp.eq.s32.totalorder %s29, 0
      %p140 = por %p138, %p139
      %s142 = sadd.s32 %s141, 1
      %p145 = scmp.eq.s32.totalorder %s23, 1
      %p146 = scmp.ne.s32.totalorder %s141, %s143
      %p147 = scmp.eq.s32.totalorder %s23, 0
      %p148 = por %p146, %p147
      %p149 = scmp.ne.s32.totalorder %s141, %s143
      %p150 = scmp.eq.s32.totalorder %s28, 1
      %p151 = por %p149, %p150
      %p152 = scmp.ne.s32.totalorder %s143, %s144
      %p153 = scmp.eq.s32.totalorder %s28, 0
      %p154 = por %p152, %p153
      %p155 = scmp.ne.s32.totalorder %s143, %s144
      %p156 = scmp.eq.s32.totalorder %s29, 1
      %p157 = por %p155, %p156
      %p159 = scmp.ne.s32.totalorder %s144, %s158
      %p160 = scmp.eq.s32.totalorder %s29, 0
      %p161 = por %p159, %p160
      %s163 = sadd.s32 %s162, 1
      %p166 = scmp.eq.s32.totalorder %s23, 1
      %p167 = scmp.ne.s32.totalorder %s162, %s164
      %p168 = scmp.eq.s32.totalorder %s23, 0
      %p169 = por %p167, %p168
      %p170 = scmp.ne.s32.totalorder %s162, %s164
      %p171 = scmp.eq.s32.totalorder %s28, 1
      %p172 = por %p170, %p171
      %p173 = scmp.ne.s32.totalorder %s164, %s165
      %p174 = scmp.eq.s32.totalorder %s28, 0
      %p175 = por %p173, %p174
      %p176 = scmp.ne.s32.totalorder %s164, %s165
      %p177 = scmp.eq.s32.totalorder %s29, 1
      %p178 = por %p176, %p177
      %p180 = scmp.ne.s32.totalorder %s165, %s179
      %p181 = scmp.eq.s32.totalorder %s29, 0
      %p182 = por %p180, %p181
      %s184 = sadd.s32 %s183, 1
      %p187 = scmp.eq.s32.totalorder %s23, 1
      %p188 = scmp.ne.s32.totalorder %s183, %s185
      %p189 = scmp.eq.s32.totalorder %s23, 0
      %p190 = por %p188, %p189
      %p191 = scmp.ne.s32.totalorder %s183, %s185
      %p192 = scmp.eq.s32.totalorder %s28, 1
      %p193 = por %p191, %p192
      %p194 = scmp.ne.s32.totalorder %s185, %s186
      %p195 = scmp.eq.s32.totalorder %s28, 0
      %p196 = por %p194, %p195
      %p197 = scmp.ne.s32.totalorder %s185, %s186
      %p198 = scmp.eq.s32.totalorder %s29, 1
      %p199 = por %p197, %p198
      %p201 = scmp.ne.s32.totalorder %s186, %s200
      %p202 = scmp.eq.s32.totalorder %s29, 0
      %p203 = por %p201, %p202
      %s205 = sadd.s32 %s204, 1
      %p208 = scmp.eq.s32.totalorder %s23, 1
      %p209 = scmp.ne.s32.totalorder %s204, %s206
      %p210 = scmp.eq.s32.totalorder %s23, 0
      %p211 = por %p209, %p210
      %p212 = scmp.ne.s32.totalorder %s204, %s206
      %p213 = scmp.eq.s32.totalorder %s28, 1
      %p214 = por %p212, %p213
      %p215 = scmp.ne.s32.totalorder %s206, %s207
      %p216 = scmp.eq.s32.totalorder %s28, 0
      %p217 = por %p215, %p216
      %p218 = scmp.ne.s32.totalorder %s206, %s207
      %p219 = scmp.eq.s32.totalorder %s29, 1
      %p220 = por %p218, %p219
      %p222 = scmp.ne.s32.totalorder %s207, %s221
      %p223 = scmp.eq.s32.totalorder %s29, 0
      %p224 = por %p222, %p223
      %s226 = sadd.s32 %s225, 1
      %p229 = scmp.eq.s32.totalorder %s23, 1
      %p230 = scmp.ne.s32.totalorder %s225, %s227
      %p231 = scmp.eq.s32.totalorder %s23, 0
      %p232 = por %p230, %p231
      %p233 = scmp.ne.s32.totalorder %s225, %s227
      %p234 = scmp.eq.s32.totalorder %s28, 1
      %p235 = por %p233, %p234
      %p236 = scmp.ne.s32.totalorder %s227, %s228
      %p237 = scmp.eq.s32.totalorder %s28, 0
      %p238 = por %p236, %p237
      %p239 = scmp.ne.s32.totalorder %s227, %s228
      %p240 = scmp.eq.s32.totalorder %s29, 1
      %p241 = por %p239, %p240
      %p243 = scmp.ne.s32.totalorder %s228, %s242
      %p244 = scmp.eq.s32.totalorder %s29, 0
      %p245 = por %p243, %p244
      %s247 = sadd.s32 %s246, 1
      %p250 = scmp.eq.s32.totalorder %s23, 1
      %p251 = scmp.ne.s32.totalorder %s246, %s248
      %p252 = scmp.eq.s32.totalorder %s23, 0
      %p253 = por %p251, %p252
      %p254 = scmp.ne.s32.totalorder %s246, %s248
      %p255 = scmp.eq.s32.totalorder %s28, 1
      %p256 = por %p254, %p255
      %p257 = scmp.ne.s32.totalorder %s248, %s249
      %p258 = scmp.eq.s32.totalorder %s28, 0
      %p259 = por %p257, %p258
      %p260 = scmp.ne.s32.totalorder %s248, %s249
      %p261 = scmp.eq.s32.totalorder %s29, 1
      %p262 = por %p260, %p261
      %p264 = scmp.ne.s32.totalorder %s249, %s263
      %p265 = scmp.eq.s32.totalorder %s29, 0
      %p266 = por %p264, %p265
      %s267 = ssub.s32 %s23, %s30
      %p268 = scmp.eq.s32.totalorder %s267, 0
      %s270 = sadd.s32 %s269, 1
      %s271 = scalar_select %p268, %s269, %s270
      %p274 = pneg %p268
      %p275 = scmp.eq.s32.totalorder %s23, 1
      %p276 = por %p274, %p275
      %p277 = scmp.ne.s32.totalorder %s269, %s272
      %p278 = scmp.eq.s32.totalorder %s23, 0
      %p279 = por %p277, %p278
      %p280 = scmp.ne.s32.totalorder %s269, %s272
      %p281 = scmp.eq.s32.totalorder %s28, 1
      %p282 = por %p280, %p281
      %p283 = scmp.ne.s32.totalorder %s272, %s273
      %p284 = scmp.eq.s32.totalorder %s28, 0
      %p285 = por %p283, %p284
      %p286 = scmp.ne.s32.totalorder %s272, %s273
      %p287 = scmp.eq.s32.totalorder %s29, 1
      %p288 = por %p286, %p287
      %p290 = scmp.ne.s32.totalorder %s273, %s289
      %p291 = scmp.eq.s32.totalorder %s29, 0
      %p292 = por %p290, %p291
      %p293 = scmp.le.s32.totalorder 1, %s23
      %p294 = scmp.lt.s32.totalorder %s23, 3
      %p295 = pnand %p293, %p294
      %p296 = pneg %p295
      // Predicated region
      $region9: #{lenet_forward.1} parent=5 // pred_check
        _
      $region10: #{lenet_forward.1} parent=5 // pred_check_branch
        %298 = sbr.rel (%p295) target = $region12
      $region11: #{lenet_forward.1} parent=5 // pred_region
        %s299 = ssub.s32 %s23, 1
        // Predicated region
        $region13: #{lenet_forward.1} parent=11 // pred_check
          %p300 = pneg %p70
        $region14: #{lenet_forward.1} parent=11 // pred_check_branch
          %302 = sbr.rel (%p300) target = $region16
        $region15: #{lenet_forward.1} parent=11 // pred_region
          _
        $region16: #{lenet_forward.1} parent=11 // pred_fallthru
          _
        // Predicated region
        $region17: #{lenet_forward.1} parent=11 // pred_check
          %p303 = pneg %p91
        $region18: #{lenet_forward.1} parent=11 // pred_check_branch
          %305 = sbr.rel (%p303) target = $region20
        $region19: #{lenet_forward.1} parent=11 // pred_region
          _
        $region20: #{lenet_forward.1} parent=11 // pred_fallthru
          _
        // Predicated region
        $region21: #{lenet_forward.1} parent=11 // pred_check
          %p306 = pneg %p112
        $region22: #{lenet_forward.1} parent=11 // pred_check_branch
          %308 = sbr.rel (%p306) target = $region24
        $region23: #{lenet_forward.1} parent=11 // pred_region
          %s310 = ssub.s32 20480, 20480
          %311 = vsyncadd [#allocation5], %s310
          %s312 = sshll.u32 [#allocation4], 4
          %s313 = int_to_ptr.vmem [resolvable:$true] %s312
          %318 = dma.hbm_to_vmem [thread:$0]  %s3, 20480, %s313, [#allocation5], 256, 256, 16
        $region24: #{lenet_forward.1} parent=11 // pred_fallthru
          _
        // Predicated region
        $region25: #{lenet_forward.1} parent=11 // pred_check
          %p319 = pneg %p133
        $region26: #{lenet_forward.1} parent=11 // pred_check_branch
          %321 = sbr.rel (%p319) target = $region28
        $region27: #{lenet_forward.1} parent=11 // pred_region
          _
        $region28: #{lenet_forward.1} parent=11 // pred_fallthru
          _
        // Predicated region
        $region29: #{lenet_forward.1} parent=11 // pred_check
          %p322 = pneg %p154
        $region30: #{lenet_forward.1} parent=11 // pred_check_branch
          %324 = sbr.rel (%p322) target = $region32
        $region31: #{lenet_forward.1} parent=11 // pred_region
          %s326 = ssub.s32 16384, 16384
          %327 = vsyncadd [#allocation8], %s326
          %s328 = sshll.u32 [#allocation7], 4
          %s329 = int_to_ptr.vmem [resolvable:$true] %s328
          %334 = dma.hbm_to_vmem [thread:$0]  %s5, 16384, %s329, [#allocation8], 128, 128, 8
        $region32: #{lenet_forward.1} parent=11 // pred_fallthru
          _
        // Predicated region
        $region33: #{lenet_forward.1} parent=11 // pred_check
          %p335 = pneg %p175
        $region34: #{lenet_forward.1} parent=11 // pred_check_branch
          %337 = sbr.rel (%p335) target = $region36
        $region35: #{lenet_forward.1} parent=11 // pred_region
          _
        $region36: #{lenet_forward.1} parent=11 // pred_fallthru
          _
        // Predicated region
        $region37: #{lenet_forward.1} parent=11 // pred_check
          %p338 = pneg %p196
        $region38: #{lenet_forward.1} parent=11 // pred_check_branch
          %340 = sbr.rel (%p338) target = $region40
        $region39: #{lenet_forward.1} parent=11 // pred_region
          %s342 = ssub.s32 2048, 2048
          %343 = vsyncadd [#allocation8], %s342
          %s344 = sshll.u32 [#allocation9], 4
          %s345 = int_to_ptr.vmem [resolvable:$true] %s344
          %350 = dma.hbm_to_vmem [thread:$0]  %s7, 2048, %s345, [#allocation8], 128, 128, 8
        $region40: #{lenet_forward.1} parent=11 // pred_fallthru
          _
        // Predicated region
        $region41: #{lenet_forward.1} parent=11 // pred_check
          %p351 = pneg %p217
        $region42: #{lenet_forward.1} parent=11 // pred_check_branch
          %353 = sbr.rel (%p351) target = $region44
        $region43: #{lenet_forward.1} parent=11 // pred_region
          _
        $region44: #{lenet_forward.1} parent=11 // pred_fallthru
          _
        // Predicated region
        $region45: #{lenet_forward.1} parent=11 // pred_check
          %p354 = pneg %p238
        $region46: #{lenet_forward.1} parent=11 // pred_check_branch
          %356 = sbr.rel (%p354) target = $region48
        $region47: #{lenet_forward.1} parent=11 // pred_region
          %s358 = ssub.s32 2048, 2048
          %359 = vsyncadd [#allocation11], %s358
          %s360 = sshll.u32 [#allocation10], 4
          %s361 = int_to_ptr.vmem [resolvable:$true] %s360
          %366 = dma.hbm_to_vmem [thread:$0]  %s9, 2048, %s361, [#allocation11], 128, 128, 8
        $region48: #{lenet_forward.1} parent=11 // pred_fallthru
          _
        // Predicated region
        $region49: #{lenet_forward.1} parent=11 // pred_check
          %p367 = pneg %p259
        $region50: #{lenet_forward.1} parent=11 // pred_check_branch
          %369 = sbr.rel (%p367) target = $region52
        $region51: #{lenet_forward.1} parent=11 // pred_region
          _
        $region52: #{lenet_forward.1} parent=11 // pred_fallthru
          _
      $region12: #{lenet_forward.1} parent=5 // pred_fallthru
        _
      %p370 = scmp.lt.s32.totalorder %s23, 2
      // Predicated region
      $region53: #{lenet_forward.1} parent=5 // pred_check
        %p371 = pneg %p370
      $region54: #{lenet_forward.1} parent=5 // pred_check_branch
        %373 = sbr.rel (%p371) target = $region56
      $region55: #{lenet_forward.1} parent=5 // pred_region
        // Predicated region
        $region57: #{lenet_forward.1} parent=55 // pred_check
          %p374 = pneg %p43
        $region58: #{lenet_forward.1} parent=55 // pred_check_branch
          %376 = sbr.rel (%p374) target = $region60
        $region59: #{lenet_forward.1} parent=55 // pred_region
          %p377 = scmp.lt.s32.totalorder %s23, 1
          %s378 = scalar_select %p377, %s23, 1
          %s379 = smul.addr %s378, 4
          %s380 = smul.addr %s379, 8
          %s381 = scalar_lea.vmem %s0, %s380
        $region60: #{lenet_forward.1} parent=55 // pred_fallthru
          _
      $region56: #{lenet_forward.1} parent=5 // pred_fallthru
        _
      %p382 = scmp.le.s32.totalorder 1, %s23
      %p383 = scmp.lt.s32.totalorder %s23, 3
      %p384 = pnand %p382, %p383
      %p385 = pneg %p384
      // Predicated region
      $region61: #{lenet_forward.1} parent=5 // pred_check
        _
      $region62: #{lenet_forward.1} parent=5 // pred_check_branch
        %387 = sbr.rel (%p384) target = $region64
      $region63: #{lenet_forward.1} parent=5 // pred_region
        %s388 = ssub.s32 %s23, 1
        // Predicated region
        $region65: #{lenet_forward.1} parent=63 // pred_check
          %p389 = pneg %p112
        $region66: #{lenet_forward.1} parent=63 // pred_check_branch
          %391 = sbr.rel (%p389) target = $region68
        $region67: #{lenet_forward.1} parent=63 // pred_region
          %392 = dma.done [#allocation5], 20480
        $region68: #{lenet_forward.1} parent=63 // pred_fallthru
          _
        // Predicated region
        $region69: #{lenet_forward.1} parent=63 // pred_check
          %p393 = pneg %p154
        $region70: #{lenet_forward.1} parent=63 // pred_check_branch
          %395 = sbr.rel (%p393) target = $region72
        $region71: #{lenet_forward.1} parent=63 // pred_region
          %396 = dma.done [#allocation8], 16384
        $region72: #{lenet_forward.1} parent=63 // pred_fallthru
          _
        // Predicated region
        $region73: #{lenet_forward.1} parent=63 // pred_check
          %p397 = pneg %p196
        $region74: #{lenet_forward.1} parent=63 // pred_check_branch
          %399 = sbr.rel (%p397) target = $region76
        $region75: #{lenet_forward.1} parent=63 // pred_region
          %400 = dma.done [#allocation8], 2048
        $region76: #{lenet_forward.1} parent=63 // pred_fallthru
          _
        // Predicated region
        $region77: #{lenet_forward.1} parent=63 // pred_check
          %p401 = pneg %p238
        $region78: #{lenet_forward.1} parent=63 // pred_check_branch
          %403 = sbr.rel (%p401) target = $region80
        $region79: #{lenet_forward.1} parent=63 // pred_region
          %404 = dma.done [#allocation11], 2048
        $region80: #{lenet_forward.1} parent=63 // pred_fallthru
          _
        %p405 = scmp.lt.s32.totalorder %s28, 1
        %s406 = scalar_select %p405, %s28, 1
        %s407 = smul.addr %s406, 4
        %s408 = smul.addr %s407, 8
        %s409 = scalar_lea.vmem %s0, %s408
        %p410 = pneg %p49
        %p411 = pneg %p46
        %p412 = pneg %p70
        %p413 = pneg %p67
        %p414 = pneg %p91
        %p415 = pneg %p88
        %p416 = pneg %p112
        %p417 = pneg %p109
        %p418 = pneg %p133
        %p419 = pneg %p130
        %p420 = pneg %p154
        %p421 = pneg %p151
        %p422 = pneg %p175
        %p423 = pneg %p172
        %p424 = pneg %p196
        %p425 = pneg %p193
        %p426 = pneg %p217
        %p427 = pneg %p214
        %p428 = pneg %p238
        %p429 = pneg %p235
        %p430 = pneg %p259
        %p431 = pneg %p256
        %p432 = pneg %p285
        %p433 = pneg %p282
        %s434 = sand.u32 %s272, 1
        %s435 = scalar_lea.sflag [#allocation6], %s434
        %s436 = sand.u32 %s272, 1
        %s437 = scalar_lea.vmem [#allocation12], %s436
        %p438 = scmp.lt.s32.totalorder %s28, 1
        %s439 = scalar_select %p438, %s28, 1
        %s440 = smul.addr %s439, 4
        %s441 = smul.addr %s440, 8
        %s442 = scalar_lea.vmem %s0, %s441
        %443 = vst [vmem:[#allocation2] sm:$0x3] 0.0
        %444 = vst [vmem:[#allocation2 + $0x22] sm:$0x3] 0.0
        %v445 = vld [vmem:[%s442] sm:$0xff]
        %v446 = vld [vmem:[%s442 + $0x8] sm:$0xff]
        %v447 = vld [vmem:[%s442 + $0x10] sm:$0xff]
        %v448 = vld [vmem:[%s442 + $0x18] sm:$0xff]
        %449 = vst [vmem:[#allocation2 + $0x2] sm:$0xff] %v445
        %450 = vst [vmem:[#allocation2 + $0xa] sm:$0xff] %v446
        %451 = vst [vmem:[#allocation2 + $0x12] sm:$0xff] %v447
        %452 = vst [vmem:[#allocation2 + $0x1a] sm:$0xff] %v448
        %v453 = vld [vmem:[#allocation2] sm:$0xff]
        %v454 = vld [vmem:[#allocation2 + $0x8] sm:$0xff]
        %v455 = vld [vmem:[#allocation2 + $0x10] sm:$0xff]
        %v456 = vld [vmem:[#allocation2 + $0x18] sm:$0xff]
        %v457 = vld [vmem:[%s1] sm:$0xff]
        %v458 = vld [vmem:[%s1 + $0x8] sm:$0xff]
        %v459 = vld [vmem:[%s1 + $0x10] sm:$0xff]
        %v460 = vld [vmem:[%s1 + $0x18] sm:$0xff]
        %v461 = vld [vmem:[%s1 + $0x20] sm:$0xff]
        %v462 = vld [vmem:[%s1 + $0x28] sm:$0xff]
        %v463 = vld [vmem:[%s1 + $0x30] sm:$0xff]
        %v464 = vld [vmem:[%s1 + $0x38] sm:$0xff]
        %v465 = vld [vmem:[%s1 + $0x40] sm:$0xff]
        %v466 = vld [vmem:[%s1 + $0x48] sm:$0xff]
        %v467 = vld [vmem:[%s1 + $0x50] sm:$0xff]
        %v468 = vld [vmem:[%s1 + $0x58] sm:$0xff]
        %v469 = vld [vmem:[%s1 + $0x60] sm:$0xff]
        %v470 = vld [vmem:[%s1 + $0x68] sm:$0xff]
        %v471 = vld [vmem:[%s1 + $0x70] sm:$0xff]
        %v472 = vld [vmem:[%s1 + $0x78] sm:$0xff]
        %v473 = vld [vmem:[%s1 + $0x80] sm:$0xff]
        %v474 = vld [vmem:[%s1 + $0x88] sm:$0xff]
        %v475 = vld [vmem:[%s1 + $0x90] sm:$0xff]
        %v476 = vld [vmem:[%s1 + $0x98] sm:$0xff]
        %v477 = vld [vmem:[%s1 + $0xa0] sm:$0xff]
        %v478 = vld [vmem:[%s1 + $0xa8] sm:$0xff]
        %v479 = vld [vmem:[%s1 + $0xb0] sm:$0xff]
        %v480 = vld [vmem:[%s1 + $0xb8] sm:$0xff]
        %v481 = vld [vmem:[%s1 + $0xc0] sm:$0xff]
        %v482 = vld [vmem:[%s1 + $0xc8] sm:$0xff]
        %v483 = vld [vmem:[%s1 + $0xd0] sm:$0xff]
        %v484 = vld [vmem:[%s1 + $0xd8] sm:$0xff]
        %v485 = vld [vmem:[%s1 + $0xe0] sm:$0xff]
        %v486 = vld [vmem:[%s1 + $0xe8] sm:$0xff]
        %v487 = vld [vmem:[%s1 + $0xf0] sm:$0xff]
        %v488 = vld [vmem:[%s1 + $0xf8] sm:$0xff]
        %v489 = vld [vmem:[#allocation2 + $0x1] sm:$0xff]
        %v490 = vld [vmem:[#allocation2 + $0x9] sm:$0xff]
        %v491 = vld [vmem:[#allocation2 + $0x11] sm:$0xff]
        %v492 = vld [vmem:[#allocation2 + $0x19] sm:$0xff]
        %s493 = scalar_lea.vmem %s1, 256
        %v494 = vld [vmem:[%s493] sm:$0xff]
        %v495 = vld [vmem:[%s493 + $0x8] sm:$0xff]
        %v496 = vld [vmem:[%s493 + $0x10] sm:$0xff]
        %v497 = vld [vmem:[%s493 + $0x18] sm:$0xff]
        %v498 = vld [vmem:[%s493 + $0x20] sm:$0xff]
        %v499 = vld [vmem:[%s493 + $0x28] sm:$0xff]
        %v500 = vld [vmem:[%s493 + $0x30] sm:$0xff]
        %v501 = vld [vmem:[%s493 + $0x38] sm:$0xff]
        %v502 = vld [vmem:[%s493 + $0x40] sm:$0xff]
        %v503 = vld [vmem:[%s493 + $0x48] sm:$0xff]
        %v504 = vld [vmem:[%s493 + $0x50] sm:$0xff]
        %v505 = vld [vmem:[%s493 + $0x58] sm:$0xff]
        %v506 = vld [vmem:[%s493 + $0x60] sm:$0xff]
        %v507 = vld [vmem:[%s493 + $0x68] sm:$0xff]
        %v508 = vld [vmem:[%s493 + $0x70] sm:$0xff]
        %v509 = vld [vmem:[%s493 + $0x78] sm:$0xff]
        %v510 = vld [vmem:[%s493 + $0x80] sm:$0xff]
        %v511 = vld [vmem:[%s493 + $0x88] sm:$0xff]
        %v512 = vld [vmem:[%s493 + $0x90] sm:$0xff]
        %v513 = vld [vmem:[%s493 + $0x98] sm:$0xff]
        %v514 = vld [vmem:[%s493 + $0xa0] sm:$0xff]
        %v515 = vld [vmem:[%s493 + $0xa8] sm:$0xff]
        %v516 = vld [vmem:[%s493 + $0xb0] sm:$0xff]
        %v517 = vld [vmem:[%s493 + $0xb8] sm:$0xff]
        %v518 = vld [vmem:[%s493 + $0xc0] sm:$0xff]
        %v519 = vld [vmem:[%s493 + $0xc8] sm:$0xff]
        %v520 = vld [vmem:[%s493 + $0xd0] sm:$0xff]
        %v521 = vld [vmem:[%s493 + $0xd8] sm:$0xff]
        %v522 = vld [vmem:[%s493 + $0xe0] sm:$0xff]
        %v523 = vld [vmem:[%s493 + $0xe8] sm:$0xff]
        %v524 = vld [vmem:[%s493 + $0xf0] sm:$0xff]
        %v525 = vld [vmem:[%s493 + $0xf8] sm:$0xff]
        %526 = vmatprep.subr.mxu0 %v495
        %527 = vmatpush1.msra.mxu0 %v494
        %528 = vmatprep.subr.mxu0 %v497
        %529 = vmatpush1.msra.mxu0 %v496
        %530 = vmatprep.subr.mxu0 %v499
        %531 = vmatpush1.msra.mxu0 %v498
        %532 = vmatprep.subr.mxu0 %v501
        %533 = vmatpush1.msra.mxu0 %v500
        %534 = vmatprep.subr.mxu0 %v503
        %535 = vmatpush1.msra.mxu0 %v502
        %536 = vmatprep.subr.mxu0 %v505
        %537 = vmatpush1.msra.mxu0 %v504
        %538 = vmatprep.subr.mxu0 %v507
        %539 = vmatpush1.msra.mxu0 %v506
        %540 = vmatprep.subr.mxu0 %v509
        %541 = vmatpush1.msra.mxu0 %v508
        %542 = vmatprep.subr.mxu0 %v511
        %543 = vmatpush1.msra.mxu0 %v510
        %544 = vmatprep.subr.mxu0 %v513
        %545 = vmatpush1.msra.mxu0 %v512
        %546 = vmatprep.subr.mxu0 %v515
        %547 = vmatpush1.msra.mxu0 %v514
        %548 = vmatprep.subr.mxu0 %v517
        %549 = vmatpush1.msra.mxu0 %v516
        %550 = vmatprep.subr.mxu0 %v519
        %551 = vmatpush1.msra.mxu0 %v518
        %552 = vmatprep.subr.mxu0 %v521
        %553 = vmatpush1.msra.mxu0 %v520
        %554 = vmatprep.subr.mxu0 %v523
        %555 = vmatpush1.msra.mxu0 %v522
        %556 = vmatprep.subr.mxu0 %v525
        %557 = vmatpush1.msra.mxu0 %v524
        %558 = vmatprep.subr.mxu0 0.0
        %559 = vmatpush1.msra.mxu0 0.0
        %560 = vmatprep.subr.mxu0 0.0
        %561 = vmatpush1.msra.mxu0 0.0
        %562 = vmatprep.subr.mxu0 0.0
        %563 = vmatpush1.msra.mxu0 0.0
        %564 = vmatprep.subr.mxu0 0.0
        %565 = vmatpush1.msra.mxu0 0.0
        %566 = vmatprep.subr.mxu0 0.0
        %567 = vmatpush1.msra.mxu0 0.0
        %568 = vmatprep.subr.mxu0 0.0
        %569 = vmatpush1.msra.mxu0 0.0
        %570 = vmatprep.subr.mxu0 0.0
        %571 = vmatpush1.msra.mxu0 0.0
        %572 = vmatprep.subr.mxu0 0.0
        %573 = vmatpush1.msra.mxu0 0.0
        %574 = vmatprep.subr.mxu0 0.0
        %575 = vmatpush1.msra.mxu0 0.0
        %576 = vmatprep.subr.mxu0 0.0
        %577 = vmatpush1.msra.mxu0 0.0
        %578 = vmatprep.subr.mxu0 0.0
        %579 = vmatpush1.msra.mxu0 0.0
        %580 = vmatprep.subr.mxu0 0.0
        %581 = vmatpush1.msra.mxu0 0.0
        %582 = vmatprep.subr.mxu0 0.0
        %583 = vmatpush1.msra.mxu0 0.0
        %584 = vmatprep.subr.mxu0 0.0
        %585 = vmatpush1.msra.mxu0 0.0
        %586 = vmatprep.subr.mxu0 0.0
        %587 = vmatpush1.msra.mxu0 0.0
        %588 = vmatprep.subr.mxu0 0.0
        %589 = vmatpush1.msra.mxu0 0.0
        %590 = vmatprep.mubr.f32.mxu0 0.0
        %591 = vmatmul.mubr.f32.gmra.mrb[0].mxu0 %v489
        %v592 = vpop.f32.mrb[0].mxu0
        %v593 = vadd.f32 0.0, %v592
        %v594 = vpop.f32.mrb[0].mxu0
        %v595 = vadd.f32 0.0, %v594
        %596 = vmatprep.mubr.f32.mxu0 0.0
        %597 = vmatmul.mubr.f32.gmra.mrb[0].mxu0 %v490
        %v598 = vpop.f32.mrb[0].mxu0
        %v599 = vadd.f32 0.0, %v598
        %v600 = vpop.f32.mrb[0].mxu0
        %v601 = vadd.f32 0.0, %v600
        %602 = vmatprep.mubr.f32.mxu0 0.0
        %603 = vmatmul.mubr.f32.gmra.mrb[0].mxu0 %v491
        %v604 = vpop.f32.mrb[0].mxu0
        %v605 = vadd.f32 0.0, %v604
        %v606 = vpop.f32.mrb[0].mxu0
        %v607 = vadd.f32 0.0, %v606
        %608 = vmatprep.mubr.f32.mxu0 0.0
        %609 = vmatmul.mubr.f32.gmra.mrb[0].mxu0 %v492
        %v610 = vpop.f32.mrb[0].mxu0
        %v611 = vadd.f32 0.0, %v610
        %v612 = vpop.f32.mrb[0].mxu0
        %v613 = vadd.f32 0.0, %v612
        %614 = vdwg.mxu0
        %615 = vmatprep.subr.mxu0 %v458
        %616 = vmatpush1.msra.mxu0 %v457
        %617 = vmatprep.subr.mxu0 %v460
        %618 = vmatpush1.msra.mxu0 %v459
        %619 = vmatprep.subr.mxu0 %v462
        %620 = vmatpush1.msra.mxu0 %v461
        %621 = vmatprep.subr.mxu0 %v464
        %622 = vmatpush1.msra.mxu0 %v463
        %623 = vmatprep.subr.mxu0 %v466
        %624 = vmatpush1.msra.mxu0 %v465
        %625 = vmatprep.subr.mxu0 %v468
        %626 = vmatpush1.msra.mxu0 %v467
        %627 = vmatprep.subr.mxu0 %v470
        %628 = vmatpush1.msra.mxu0 %v469
        %629 = vmatprep.subr.mxu0 %v472
        %630 = vmatpush1.msra.mxu0 %v471
        %631 = vmatprep.subr.mxu0 %v474
        %632 = vmatpush1.msra.mxu0 %v473
        %633 = vmatprep.subr.mxu0 %v476
        %634 = vmatpush1.msra.mxu0 %v475
        %635 = vmatprep.subr.mxu0 %v478
        %636 = vmatpush1.msra.mxu0 %v477
        %637 = vmatprep.subr.mxu0 %v480
        %638 = vmatpush1.msra.mxu0 %v479
        %639 = vmatprep.subr.mxu0 %v482
        %640 = vmatpush1.msra.mxu0 %v481
        %641 = vmatprep.subr.mxu0 %v484
        %642 = vmatpush1.msra.mxu0 %v483
        %643 = vmatprep.subr.mxu0 %v486
        %644 = vmatpush1.msra.mxu0 %v485
        %645 = vmatprep.subr.mxu0 %v488
        %646 = vmatpush1.msra.mxu0 %v487
        %647 = vmatprep.subr.mxu0 0.0
        %648 = vmatpush1.msra.mxu0 0.0
        %649 = vmatprep.subr.mxu0 0.0
        %650 = vmatpush1.msra.mxu0 0.0
        %651 = vmatprep.subr.mxu0 0.0
        %652 = vmatpush1.msra.mxu0 0.0
        %653 = vmatprep.subr.mxu0 0.0
        %654 = vmatpush1.msra.mxu0 0.0
        %655 = vmatprep.subr.mxu0 0.0
        %656 = vmatpush1.msra.mxu0 0.0
        %657 = vmatprep.subr.mxu0 0.0
        %658 = vmatpush1.msra.mxu0 0.0
        %659 = vmatprep.subr.mxu0 0.0
        %660 = vmatpush1.msra.mxu0 0.0
        %661 = vmatprep.subr.mxu0 0.0
        %662 = vmatpush1.msra.mxu0 0.0
        %663 = vmatprep.subr.mxu0 0.0
        %664 = vmatpush1.msra.mxu0 0.0
        %665 = vmatprep.subr.mxu0 0.0
        %666 = vmatpush1.msra.mxu0 0.0
        %667 = vmatprep.subr.mxu0 0.0
        %668 = vmatpush1.msra.mxu0 0.0
        %669 = vmatprep.subr.mxu0 0.0
        %670 = vmatpush1.msra.mxu0 0.0
        %671 = vmatprep.subr.mxu0 0.0
        %672 = vmatpush1.msra.mxu0 0.0
        %673 = vmatprep.subr.mxu0 0.0
        %674 = vmatpush1.msra.mxu0 0.0
        %675 = vmatprep.subr.mxu0 0.0
        %676 = vmatpush1.msra.mxu0 0.0
        %677 = vmatprep.subr.mxu0 0.0
        %678 = vmatpush1.msra.mxu0 0.0
        %679 = vmatprep.mubr.f32.mxu0 0.0
        %680 = vmatmul.mubr.f32.gmra.mrb[0].mxu0 %v453
        %v681 = vpop.f32.mrb[0].mxu0
        %v682 = vadd.f32 %v593, %v681
        %v683 = vpop.f32.mrb[0].mxu0
        %v684 = vadd.f32 %v595, %v683
        %685 = vmatprep.mubr.f32.mxu0 0.0
        %686 = vmatmul.mubr.f32.gmra.mrb[0].mxu0 %v454
        %v687 = vpop.f32.mrb[0].mxu0
        %v688 = vadd.f32 %v599, %v687
        %v689 = vpop.f32.mrb[0].mxu0
        %v690 = vadd.f32 %v601, %v689
        %691 = vmatprep.mubr.f32.mxu0 0.0
        %692 = vmatmul.mubr.f32.gmra.mrb[0].mxu0 %v455
        %v693 = vpop.f32.mrb[0].mxu0
        %v694 = vadd.f32 %v605, %v693
        %v695 = vpop.f32.mrb[0].mxu0
        %v696 = vadd.f32 %v607, %v695
        %697 = vmatprep.mubr.f32.mxu0 0.0
        %698 = vmatmul.mubr.f32.gmra.mrb[0].mxu0 %v456
        %v699 = vpop.f32.mrb[0].mxu0
        %v700 = vadd.f32 %v611, %v699
        %v701 = vpop.f32.mrb[0].mxu0
        %v702 = vadd.f32 %v613, %v701
        %703 = vdwg.mxu0
        %v704 = vld [vmem:[#allocation2 + $0x2] sm:$0xff]
        %v705 = vld [vmem:[#allocation2 + $0xa] sm:$0xff]
        %v706 = vld [vmem:[#allocation2 + $0x12] sm:$0xff]
        %v707 = vld [vmem:[#allocation2 + $0x1a] sm:$0xff]
        %s708 = scalar_lea.vmem %s1, 512
        %v709 = vld [vmem:[%s708] sm:$0xff]
        %v710 = vld [vmem:[%s708 + $0x8] sm:$0xff]
        %v711 = vld [vmem:[%s708 + $0x10] sm:$0xff]
        %v712 = vld [vmem:[%s708 + $0x18] sm:$0xff]
        %v713 = vld [vmem:[%s708 + $0x20] sm:$0xff]
        %v714 = vld [vmem:[%s708 + $0x28] sm:$0xff]
        %v715 = vld [vmem:[%s708 + $0x30] sm:$0xff]
        %v716 = vld [vmem:[%s708 + $0x38] sm:$0xff]
        %v717 = vld [vmem:[%s708 + $0x40] sm:$0xff]
        %v718 = vld [vmem:[%s708 + $0x48] sm:$0xff]
        %v719 = vld [vmem:[%s708 + $0x50] sm:$0xff]
        %v720 = vld [vmem:[%s708 + $0x58] sm:$0xff]
        %v721 = vld [vmem:[%s708 + $0x60] sm:$0xff]
        %v722 = vld [vmem:[%s708 + $0x68] sm:$0xff]
        %v723 = vld [vmem:[%s708 + $0x70] sm:$0xff]
        %v724 = vld [vmem:[%s708 + $0x78] sm:$0xff]
        %v725 = vld [vmem:[%s708 + $0x80] sm:$0xff]
        %v726 = vld [vmem:[%s708 + $0x88] sm:$0xff]
        %v727 = vld [vmem:[%s708 + $0x90] sm:$0xff]
        %v728 = vld [vmem:[%s708 + $0x98] sm:$0xff]
        %v729 = vld [vmem:[%s708 + $0xa0] sm:$0xff]
        %v730 = vld [vmem:[%s708 + $0xa8] sm:$0xff]
        %v731 = vld [vmem:[%s708 + $0xb0] sm:$0xff]
        %v732 = vld [vmem:[%s708 + $0xb8] sm:$0xff]
        %v733 = vld [vmem:[%s708 + $0xc0] sm:$0xff]
        %v734 = vld [vmem:[%s708 + $0xc8] sm:$0xff]
        %v735 = vld [vmem:[%s708 + $0xd0] sm:$0xff]
        %v736 = vld [vmem:[%s708 + $0xd8] sm:$0xff]
        %v737 = vld [vmem:[%s708 + $0xe0] sm:$0xff]
        %v738 = vld [vmem:[%s708 + $0xe8] sm:$0xff]
        %v739 = vld [vmem:[%s708 + $0xf0] sm:$0xff]
        %v740 = vld [vmem:[%s708 + $0xf8] sm:$0xff]
        %741 = vmatprep.subr.mxu0 %v710
        %742 = vmatpush1.msra.mxu0 %v709
        %743 = vmatprep.subr.mxu0 %v712
        %744 = vmatpush1.msra.mxu0 %v711
        %745 = vmatprep.subr.mxu0 %v714
        %746 = vmatpush1.msra.mxu0 %v713
        %747 = vmatprep.subr.mxu0 %v716
        %748 = vmatpush1.msra.mxu0 %v715
        %749 = vmatprep.subr.mxu0 %v718
        %750 = vmatpush1.msra.mxu0 %v717
        %751 = vmatprep.subr.mxu0 %v720
        %752 = vmatpush1.msra.mxu0 %v719
        %753 = vmatprep.subr.mxu0 %v722
        %754 = vmatpush1.msra.mxu0 %v721
        %755 = vmatprep.subr.mxu0 %v724
        %756 = vmatpush1.msra.mxu0 %v723
        %757 = vmatprep.subr.mxu0 %v726
        %758 = vmatpush1.msra.mxu0 %v725
        %759 = vmatprep.subr.mxu0 %v728
        %760 = vmatpush1.msra.mxu0 %v727
        %761 = vmatprep.subr.mxu0 %v730
        %762 = vmatpush1.msra.mxu0 %v729
        %763 = vmatprep.subr.mxu0 %v732
        %764 = vmatpush1.msra.mxu0 %v731
        %765 = vmatprep.subr.mxu0 %v734
        %766 = vmatpush1.msra.mxu0 %v733
        %767 = vmatprep.subr.mxu0 %v736
        %768 = vmatpush1.msra.mxu0 %v735
        %769 = vmatprep.subr.mxu0 %v738
        %770 = vmatpush1.msra.mxu0 %v737
        %771 = vmatprep.subr.mxu0 %v740
        %772 = vmatpush1.msra.mxu0 %v739
        %773 = vmatprep.subr.mxu0 0.0
        %774 = vmatpush1.msra.mxu0 0.0
        %775 = vmatprep.subr.mxu0 0.0
        %776 = vmatpush1.msra.mxu0 0.0
        %777 = vmatprep.subr.mxu0 0.0
        %778 = vmatpush1.msra.mxu0 0.0
        %779 = vmatprep.subr.mxu0 0.0
        %780 = vmatpush1.msra.mxu0 0.0
        %781 = vmatprep.subr.mxu0 0.0
        %782 = vmatpush1.msra.mxu0 0.0
        %783 = vmatprep.subr.mxu0 0.0
        %784 = vmatpush1.msra.mxu0 0.0
        %785 = vmatprep.subr.mxu0 0.0
        %786 = vmatpush1.msra.mxu0 0.0
        %787 = vmatprep.subr.mxu0 0.0
        %788 = vmatpush1.msra.mxu0 0.0
        %789 = vmatprep.subr.mxu0 0.0
        %790 = vmatpush1.msra.mxu0 0.0
        %791 = vmatprep.subr.mxu0 0.0
        %792 = vmatpush1.msra.mxu0 0.0
        %793 = vmatprep.subr.mxu0 0.0
        %794 = vmatpush1.msra.mxu0 0.0
        %795 = vmatprep.subr.mxu0 0.0
        %796 = vmatpush1.msra.mxu0 0.0
        %797 = vmatprep.subr.mxu0 0.0
        %798 = vmatpush1.msra.mxu0 0.0
        %799 = vmatprep.subr.mxu0 0.0
        %800 = vmatpush1.msra.mxu0 0.0
        %801 = vmatprep.subr.mxu0 0.0
        %802 = vmatpush1.msra.mxu0 0.0
        %803 = vmatprep.subr.mxu0 0.0
        %804 = vmatpush1.msra.mxu0 0.0
        %805 = vmatprep.mubr.f32.mxu0 0.0
        %806 = vmatmul.mubr.f32.gmra.mrb[0].mxu0 %v704
        %v807 = vpop.f32.mrb[0].mxu0
        %v808 = vadd.f32 0.0, %v807
        %v809 = vpop.f32.mrb[0].mxu0
        %v810 = vadd.f32 0.0, %v809
        %811 = vmatprep.mubr.f32.mxu0 0.0
        %812 = vmatmul.mubr.f32.gmra.mrb[0].mxu0 %v705
        %v813 = vpop.f32.mrb[0].mxu0
        %v814 = vadd.f32 0.0, %v813
        %v815 = vpop.f32.mrb[0].mxu0
        %v816 = vadd.f32 0.0, %v815
        %817 = vmatprep.mubr.f32.mxu0 0.0
        %818 = vmatmul.mubr.f32.gmra.mrb[0].mxu0 %v706
        %v819 = vpop.f32.mrb[0].mxu0
        %v820 = vadd.f32 0.0, %v819
        %v821 = vpop.f32.mrb[0].mxu0
        %v822 = vadd.f32 0.0, %v821
        %823 = vmatprep.mubr.f32.mxu0 0.0
        %824 = vmatmul.mubr.f32.gmra.mrb[0].mxu0 %v707
        %v825 = vpop.f32.mrb[0].mxu0
        %v826 = vadd.f32 0.0, %v825
        %v827 = vpop.f32.mrb[0].mxu0
        %v828 = vadd.f32 0.0, %v827
        %829 = vdwg.mxu0
        %v830 = vadd.f32 %v682, %v808
        %v831 = vadd.f32 %v684, %v810
        %v832 = vadd.f32 %v688, %v814
        %v833 = vadd.f32 %v690, %v816
        %v834 = vadd.f32 %v694, %v820
        %v835 = vadd.f32 %v696, %v822
        %v836 = vadd.f32 %v700, %v826
        %v837 = vadd.f32 %v702, %v828
        %v838 = vld [vmem:[#allocation2 + $0x3] sm:$0xff]
        %v839 = vld [vmem:[#allocation2 + $0xb] sm:$0xff]
        %v840 = vld [vmem:[#allocation2 + $0x13] sm:$0xff]
        %v841 = vld [vmem:[#allocation2 + $0x1b] sm:$0xff]
        %s842 = scalar_lea.vmem %s1, 768
        %v843 = vld [vmem:[%s842] sm:$0xff]
        %v844 = vld [vmem:[%s842 + $0x8] sm:$0xff]
        %v845 = vld [vmem:[%s842 + $0x10] sm:$0xff]
        %v846 = vld [vmem:[%s842 + $0x18] sm:$0xff]
        %v847 = vld [vmem:[%s842 + $0x20] sm:$0xff]
        %v848 = vld [vmem:[%s842 + $0x28] sm:$0xff]
        %v849 = vld [vmem:[%s842 + $0x30] sm:$0xff]
        %v850 = vld [vmem:[%s842 + $0x38] sm:$0xff]
        %v851 = vld [vmem:[%s842 + $0x40] sm:$0xff]
        %v852 = vld [vmem:[%s842 + $0x48] sm:$0xff]
        %v853 = vld [vmem:[%s842 + $0x50] sm:$0xff]
        %v854 = vld [vmem:[%s842 + $0x58] sm:$0xff]
        %v855 = vld [vmem:[%s842 + $0x60] sm:$0xff]
        %v856 = vld [vmem:[%s842 + $0x68] sm:$0xff]
        %v857 = vld [vmem:[%s842 + $0x70] sm:$0xff]
        %v858 = vld [vmem:[%s842 + $0x78] sm:$0xff]
        %v859 = vld [vmem:[%s842 + $0x80] sm:$0xff]
        %v860 = vld [vmem:[%s842 + $0x88] sm:$0xff]
        %v861 = vld [vmem:[%s842 + $0x90] sm:$0xff]
        %v862 = vld [vmem:[%s842 + $0x98] sm:$0xff]
        %v863 = vld [vmem:[%s842 + $0xa0] sm:$0xff]
        %v864 = vld [vmem:[%s842 + $0xa8] sm:$0xff]
        %v865 = vld [vmem:[%s842 + $0xb0] sm:$0xff]
        %v866 = vld [vmem:[%s842 + $0xb8] sm:$0xff]
        %v867 = vld [vmem:[%s842 + $0xc0] sm:$0xff]
        %v868 = vld [vmem:[%s842 + $0xc8] sm:$0xff]
        %v869 = vld [vmem:[%s842 + $0xd0] sm:$0xff]
        %v870 = vld [vmem:[%s842 + $0xd8] sm:$0xff]
        %v871 = vld [vmem:[%s842 + $0xe0] sm:$0xff]
        %v872 = vld [vmem:[%s842 + $0xe8] sm:$0xff]
        %v873 = vld [vmem:[%s842 + $0xf0] sm:$0xff]
        %v874 = vld [vmem:[%s842 + $0xf8] sm:$0xff]
        %875 = vmatprep.subr.mxu0 %v844
        %876 = vmatpush1.msra.mxu0 %v843
        %877 = vmatprep.subr.mxu0 %v846
        %878 = vmatpush1.msra.mxu0 %v845
        %879 = vmatprep.subr.mxu0 %v848
        %880 = vmatpush1.msra.mxu0 %v847
        %881 = vmatprep.subr.mxu0 %v850
        %882 = vmatpush1.msra.mxu0 %v849
        %883 = vmatprep.subr.mxu0 %v852
        %884 = vmatpush1.msra.mxu0 %v851
        %885 = vmatprep.subr.mxu0 %v854
        %886 = vmatpush1.msra.mxu0 %v853
        %887 = vmatprep.subr.mxu0 %v856
        %888 = vmatpush1.msra.mxu0 %v855
        %889 = vmatprep.subr.mxu0 %v858
        %890 = vmatpush1.msra.mxu0 %v857
        %891 = vmatprep.subr.mxu0 %v860
        %892 = vmatpush1.msra.mxu0 %v859
        %893 = vmatprep.subr.mxu0 %v862
        %894 = vmatpush1.msra.mxu0 %v861
        %895 = vmatprep.subr.mxu0 %v864
        %896 = vmatpush1.msra.mxu0 %v863
        %897 = vmatprep.subr.mxu0 %v866
        %898 = vmatpush1.msra.mxu0 %v865
        %899 = vmatprep.subr.mxu0 %v868
        %900 = vmatpush1.msra.mxu0 %v867
        %901 = vmatprep.subr.mxu0 %v870
        %902 = vmatpush1.msra.mxu0 %v869
        %903 = vmatprep.subr.mxu0 %v872
        %904 = vmatpush1.msra.mxu0 %v871
        %905 = vmatprep.subr.mxu0 %v874
        %906 = vmatpush1.msra.mxu0 %v873
        %907 = vmatprep.subr.mxu0 0.0
        %908 = vmatpush1.msra.mxu0 0.0
        %909 = vmatprep.subr.mxu0 0.0
        %910 = vmatpush1.msra.mxu0 0.0
        %911 = vmatprep.subr.mxu0 0.0
        %912 = vmatpush1.msra.mxu0 0.0
        %913 = vmatprep.subr.mxu0 0.0
        %914 = vmatpush1.msra.mxu0 0.0
        %915 = vmatprep.subr.mxu0 0.0
        %916 = vmatpush1.msra.mxu0 0.0
        %917 = vmatprep.subr.mxu0 0.0
        %918 = vmatpush1.msra.mxu0 0.0
        %919 = vmatprep.subr.mxu0 0.0
        %920 = vmatpush1.msra.mxu0 0.0
        %921 = vmatprep.subr.mxu0 0.0
        %922 = vmatpush1.msra.mxu0 0.0
        %923 = vmatprep.subr.mxu0 0.0
        %924 = vmatpush1.msra.mxu0 0.0
        %925 = vmatprep.subr.mxu0 0.0
        %926 = vmatpush1.msra.mxu0 0.0
        %927 = vmatprep.subr.mxu0 0.0
        %928 = vmatpush1.msra.mxu0 0.0
        %929 = vmatprep.subr.mxu0 0.0
        %930 = vmatpush1.msra.mxu0 0.0
        %931 = vmatprep.subr.mxu0 0.0
        %932 = vmatpush1.msra.mxu0 0.0
        %933 = vmatprep.subr.mxu0 0.0
        %934 = vmatpush1.msra.mxu0 0.0
        %935 = vmatprep.subr.mxu0 0.0
        %936 = vmatpush1.msra.mxu0 0.0
        %937 = vmatprep.subr.mxu0 0.0
        %938 = vmatpush1.msra.mxu0 0.0
        %939 = vmatprep.mubr.f32.mxu0 0.0
        %940 = vmatmul.mubr.f32.gmra.mrb[0].mxu0 %v838
        %v941 = vpop.f32.mrb[0].mxu0
        %v942 = vadd.f32 0.0, %v941
        %v943 = vpop.f32.mrb[0].mxu0
        %v944 = vadd.f32 0.0, %v943
        %945 = vmatprep.mubr.f32.mxu0 0.0
        %946 = vmatmul.mubr.f32.gmra.mrb[0].mxu0 %v839
        %v947 = vpop.f32.mrb[0].mxu0
        %v948 = vadd.f32 0.0, %v947
        %v949 = vpop.f32.mrb[0].mxu0
        %v950 = vadd.f32 0.0, %v949
        %951 = vmatprep.mubr.f32.mxu0 0.0
        %952 = vmatmul.mubr.f32.gmra.mrb[0].mxu0 %v840
        %v953 = vpop.f32.mrb[0].mxu0
        %v954 = vadd.f32 0.0, %v953
        %v955 = vpop.f32.mrb[0].mxu0
        %v956 = vadd.f32 0.0, %v955
        %957 = vmatprep.mubr.f32.mxu0 0.0
        %958 = vmatmul.mubr.f32.gmra.mrb[0].mxu0 %v841
        %v959 = vpop.f32.mrb[0].mxu0
        %v960 = vadd.f32 0.0, %v959
        %v961 = vpop.f32.mrb[0].mxu0
        %v962 = vadd.f32 0.0, %v961
        %963 = vdwg.mxu0
        %v964 = vadd.f32 %v830, %v942
        %v965 = vadd.f32 %v831, %v944
        %v966 = vadd.f32 %v832, %v948
        %v967 = vadd.f32 %v833, %v950
        %v968 = vadd.f32 %v834, %v954
        %v969 = vadd.f32 %v835, %v956
        %v970 = vadd.f32 %v836, %v960
        %v971 = vadd.f32 %v837, %v962
        %v972 = vld [vmem:[#allocation2 + $0x4] sm:$0xff]
        %v973 = vld [vmem:[#allocation2 + $0xc] sm:$0xff]
        %v974 = vld [vmem:[#allocation2 + $0x14] sm:$0xff]
        %v975 = vld [vmem:[#allocation2 + $0x1c] sm:$0xff]
        %s976 = scalar_lea.vmem %s1, 1024
        %v977 = vld [vmem:[%s976] sm:$0xff]
        %v978 = vld [vmem:[%s976 + $0x8] sm:$0xff]
        %v979 = vld [vmem:[%s976 + $0x10] sm:$0xff]
        %v980 = vld [vmem:[%s976 + $0x18] sm:$0xff]
        %v981 = vld [vmem:[%s976 + $0x20] sm:$0xff]
        %v982 = vld [vmem:[%s976 + $0x28] sm:$0xff]
        %v983 = vld [vmem:[%s976 + $0x30] sm:$0xff]
        %v984 = vld [vmem:[%s976 + $0x38] sm:$0xff]
        %v985 = vld [vmem:[%s976 + $0x40] sm:$0xff]
        %v986 = vld [vmem:[%s976 + $0x48] sm:$0xff]
        %v987 = vld [vmem:[%s976 + $0x50] sm:$0xff]
        %v988 = vld [vmem:[%s976 + $0x58] sm:$0xff]
        %v989 = vld [vmem:[%s976 + $0x60] sm:$0xff]
        %v990 = vld [vmem:[%s976 + $0x68] sm:$0xff]
        %v991 = vld [vmem:[%s976 + $0x70] sm:$0xff]
        %v992 = vld [vmem:[%s976 + $0x78] sm:$0xff]
        %v993 = vld [vmem:[%s976 + $0x80] sm:$0xff]
        %v994 = vld [vmem:[%s976 + $0x88] sm:$0xff]
        %v995 = vld [vmem:[%s976 + $0x90] sm:$0xff]
        %v996 = vld [vmem:[%s976 + $0x98] sm:$0xff]
        %v997 = vld [vmem:[%s976 + $0xa0] sm:$0xff]
        %v998 = vld [vmem:[%s976 + $0xa8] sm:$0xff]
        %v999 = vld [vmem:[%s976 + $0xb0] sm:$0xff]
        %v1000 = vld [vmem:[%s976 + $0xb8] sm:$0xff]
        %v1001 = vld [vmem:[%s976 + $0xc0] sm:$0xff]
        %v1002 = vld [vmem:[%s976 + $0xc8] sm:$0xff]
        %v1003 = vld [vmem:[%s976 + $0xd0] sm:$0xff]
        %v1004 = vld [vmem:[%s976 + $0xd8] sm:$0xff]
        %v1005 = vld [vmem:[%s976 + $0xe0] sm:$0xff]
        %v1006 = vld [vmem:[%s976 + $0xe8] sm:$0xff]
        %v1007 = vld [vmem:[%s976 + $0xf0] sm:$0xff]
        %v1008 = vld [vmem:[%s976 + $0xf8] sm:$0xff]
        %1009 = vmatprep.subr.mxu0 %v978
        %1010 = vmatpush1.msra.mxu0 %v977
        %1011 = vmatprep.subr.mxu0 %v980
        %1012 = vmatpush1.msra.mxu0 %v979
        %1013 = vmatprep.subr.mxu0 %v982
        %1014 = vmatpush1.msra.mxu0 %v981
        %1015 = vmatprep.subr.mxu0 %v984
        %1016 = vmatpush1.msra.mxu0 %v983
        %1017 = vmatprep.subr.mxu0 %v986
        %1018 = vmatpush1.msra.mxu0 %v985
        %1019 = vmatprep.subr.mxu0 %v988
        %1020 = vmatpush1.msra.mxu0 %v987
        %1021 = vmatprep.subr.mxu0 %v990
        %1022 = vmatpush1.msra.mxu0 %v989
        %1023 = vmatprep.subr.mxu0 %v992
        %1024 = vmatpush1.msra.mxu0 %v991
        %1025 = vmatprep.subr.mxu0 %v994
        %1026 = vmatpush1.msra.mxu0 %v993
        %1027 = vmatprep.subr.mxu0 %v996
        %1028 = vmatpush1.msra.mxu0 %v995
        %1029 = vmatprep.subr.mxu0 %v998
        %1030 = vmatpush1.msra.mxu0 %v997
        %1031 = vmatprep.subr.mxu0 %v1000
        %1032 = vmatpush1.msra.mxu0 %v999
        %1033 = vmatprep.subr.mxu0 %v1002
        %1034 = vmatpush1.msra.mxu0 %v1001
        %1035 = vmatprep.subr.mxu0 %v1004
        %1036 = vmatpush1.msra.mxu0 %v1003
        %1037 = vmatprep.subr.mxu0 %v1006
        %1038 = vmatpush1.msra.mxu0 %v1005
        %1039 = vmatprep.subr.mxu0 %v1008
        %1040 = vmatpush1.msra.mxu0 %v1007
        %1041 = vmatprep.subr.mxu0 0.0
        %1042 = vmatpush1.msra.mxu0 0.0
        %1043 = vmatprep.subr.mxu0 0.0
        %1044 = vmatpush1.msra.mxu0 0.0
        %1045 = vmatprep.subr.mxu0 0.0
        %1046 = vmatpush1.msra.mxu0 0.0
        %1047 = vmatprep.subr.mxu0 0.0
        %1048 = vmatpush1.msra.mxu0 0.0
        %1049 = vmatprep.subr.mxu0 0.0
        %1050 = vmatpush1.msra.mxu0 0.0
        %1051 = vmatprep.subr.mxu0 0.0
        %1052 = vmatpush1.msra.mxu0 0.0
        %1053 = vmatprep.subr.mxu0 0.0
        %1054 = vmatpush1.msra.mxu0 0.0
        %1055 = vmatprep.subr.mxu0 0.0
        %1056 = vmatpush1.msra.mxu0 0.0
        %1057 = vmatprep.subr.mxu0 0.0
        %1058 = vmatpush1.msra.mxu0 0.0
        %1059 = vmatprep.subr.mxu0 0.0
        %1060 = vmatpush1.msra.mxu0 0.0
        %1061 = vmatprep.subr.mxu0 0.0
        %1062 = vmatpush1.msra.mxu0 0.0
        %1063 = vmatprep.subr.mxu0 0.0
        %1064 = vmatpush1.msra.mxu0 0.0
        %1065 = vmatprep.subr.mxu0 0.0
        %1066 = vmatpush1.msra.mxu0 0.0
        %1067 = vmatprep.subr.mxu0 0.0
        %1068 = vmatpush1.msra.mxu0 0.0
        %1069 = vmatprep.subr.mxu0 0.0
        %1070 = vmatpush1.msra.mxu0 0.0
        %1071 = vmatprep.subr.mxu0 0.0
        %1072 = vmatpush1.msra.mxu0 0.0
        %1073 = vmatprep.mubr.f32.mxu0 0.0
        %1074 = vmatmul.mubr.f32.gmra.mrb[0].mxu0 %v972
        %v1075 = vpop.f32.mrb[0].mxu0
        %v1076 = vadd.f32 0.0, %v1075
        %v1077 = vpop.f32.mrb[0].mxu0
        %v1078 = vadd.f32 0.0, %v1077
        %1079 = vmatprep.mubr.f32.mxu0 0.0
        %1080 = vmatmul.mubr.f32.gmra.mrb[0].mxu0 %v973
        %v1081 = vpop.f32.mrb[0].mxu0
        %v1082 = vadd.f32 0.0, %v1081
        %v1083 = vpop.f32.mrb[0].mxu0
        %v1084 = vadd.f32 0.0, %v1083
        %1085 = vmatprep.mubr.f32.mxu0 0.0
        %1086 = vmatmul.mubr.f32.gmra.mrb[0].mxu0 %v974
        %v1087 = vpop.f32.mrb[0].mxu0
        %v1088 = vadd.f32 0.0, %v1087
        %v1089 = vpop.f32.mrb[0].mxu0
        %v1090 = vadd.f32 0.0, %v1089
        %1091 = vmatprep.mubr.f32.mxu0 0.0
        %1092 = vmatmul.mubr.f32.gmra.mrb[0].mxu0 %v975
        %v1093 = vpop.f32.mrb[0].mxu0
        %v1094 = vadd.f32 0.0, %v1093
        %v1095 = vpop.f32.mrb[0].mxu0
        %v1096 = vadd.f32 0.0, %v1095
        %1097 = vdwg.mxu0
        %v1098 = vadd.f32 %v964, %v1076
        %v1099 = vadd.f32 %v965, %v1078
        %v1100 = vadd.f32 %v966, %v1082
        %v1101 = vadd.f32 %v967, %v1084
        %v1102 = vadd.f32 %v968, %v1088
        %v1103 = vadd.f32 %v969, %v1090
        %v1104 = vadd.f32 %v970, %v1094
        %v1105 = vadd.f32 %v971, %v1096
        %v1106 = vld [vmem:[%s2] sm:$0x3]
        %v1108 = vlaneseq
        %v1109 = vshrl.u32 %v1108, 7
        %v1110 = vsub.s32 0, %v1109
        %v1111 = vrot.slane %v1106, %v1110
        %v1112 = vlaneseq
        %v1113 = vshrl.u32 %v1112, 7
        %v1114 = vsub.s32 1, %v1113
        %v1115 = vrot.slane %v1106, %v1114
        %v1118 = vadd.f32 %v1098, %v1111
        %v1119 = vadd.f32 %v1099, %v1115
        %v1120 = vadd.f32 %v1100, %v1111
        %v1121 = vadd.f32 %v1101, %v1115
        %v1122 = vadd.f32 %v1102, %v1111
        %v1123 = vadd.f32 %v1103, %v1115
        %v1124 = vadd.f32 %v1104, %v1111
        %v1125 = vadd.f32 %v1105, %v1115
        %v1126 = vmax.f32 %v1118, 0.0
        %v1127 = vmax.f32 %v1119, 0.0
        %v1128 = vmax.f32 %v1120, 0.0
        %v1129 = vmax.f32 %v1121, 0.0
        %v1130 = vmax.f32 %v1122, 0.0
        %v1131 = vmax.f32 %v1123, 0.0
        %v1132 = vmax.f32 %v1124, 0.0
        %v1133 = vmax.f32 %v1125, 0.0
        %v1134 = vadd.f32 %v1126, %v1127
        %v1135 = vadd.f32 %v1128, %v1129
        %v1136 = vadd.f32 %v1130, %v1131
        %v1137 = vadd.f32 %v1132, %v1133
        %v1139 = vunpack.c.l.s4 1966171168
        %v1140 = vunpack.c.0.s8 %v1139
        %v1141 = vlaneseq
        %v1142 = vshrl.u32 %v1141, 7
        %v1143 = vsub.s32 %v1140, %v1142
        %v1144 = vrot.slane %v1134, %v1143
        %v1146 = vunpack.c.l.s4 1966171168
        %v1147 = vunpack.c.0.s8 %v1146
        %v1148 = vlaneseq
        %v1149 = vshrl.u32 %v1148, 7
        %v1150 = vsub.s32 %v1147, %v1149
        %v1151 = vrot.slane %v1135, %v1150
        %v1153 = vunpack.c.l.s4 1966171168
        %v1154 = vunpack.c.0.s8 %v1153
        %v1155 = vlaneseq
        %v1156 = vshrl.u32 %v1155, 7
        %v1157 = vsub.s32 %v1154, %v1156
        %v1158 = vrot.slane %v1136, %v1157
        %v1160 = vunpack.c.l.s4 1966171168
        %v1161 = vunpack.c.0.s8 %v1160
        %v1162 = vlaneseq
        %v1163 = vshrl.u32 %v1162, 7
        %v1164 = vsub.s32 %v1161, %v1163
        %v1165 = vrot.slane %v1137, %v1164
        %v1170 = vrot.slane %v1144, 4
        %v1171 = vrot.slane %v1151, 4
        %v1172 = vrot.slane %v1158, 4
        %v1173 = vrot.slane %v1165, 4
        %v1178 = vadd.f32 %v1144, %v1170
        %v1179 = vadd.f32 %v1151, %v1171
        %v1180 = vadd.f32 %v1158, %v1172
        %v1181 = vadd.f32 %v1165, %v1173
        %v1182 = vmul.f32 %v1178, 0.25
        %v1183 = vmul.f32 %v1179, 0.25
        %v1184 = vmul.f32 %v1180, 0.25
        %v1185 = vmul.f32 %v1181, 0.25
        %1186 = vst [vmem:[#allocation3] sm:$0x3] 0.0
        %1187 = vst [vmem:[#allocation3 + $0x12] sm:$0x3] 0.0
        %v1192 = vcombine.low %v1182, %v1183
        %v1193 = vcombine.low %v1184, %v1185
        %1196 = vst [vmem:[#allocation3 + $0x2] sm:$0xff] %v1192
        %1197 = vst [vmem:[#allocation3 + $0xa] sm:$0xff] %v1193
        %v1198 = vld [vmem:[#allocation3] sm:$0xff]
        %v1199 = vld [vmem:[#allocation3 + $0x8] sm:$0xff]
        %v1200 = vld [vmem:[#allocation4] sm:$0xff]
        %v1201 = vld [vmem:[#allocation4 + $0x8] sm:$0xff]
        %v1202 = vld [vmem:[#allocation4 + $0x10] sm:$0xff]
        %v1203 = vld [vmem:[#allocation4 + $0x18] sm:$0xff]
        %v1204 = vld [vmem:[#allocation4 + $0x20] sm:$0xff]
        %v1205 = vld [vmem:[#allocation4 + $0x28] sm:$0xff]
        %v1206 = vld [vmem:[#allocation4 + $0x30] sm:$0xff]
        %v1207 = vld [vmem:[#allocation4 + $0x38] sm:$0xff]
        %v1208 = vld [vmem:[#allocation4 + $0x40] sm:$0xff]
        %v1209 = vld [vmem:[#allocation4 + $0x48] sm:$0xff]
        %v1210 = vld [vmem:[#allocation4 + $0x50] sm:$0xff]
        %v1211 = vld [vmem:[#allocation4 + $0x58] sm:$0xff]
        %v1212 = vld [vmem:[#allocation4 + $0x60] sm:$0xff]
        %v1213 = vld [vmem:[#allocation4 + $0x68] sm:$0xff]
        %v1214 = vld [vmem:[#allocation4 + $0x70] sm:$0xff]
        %v1215 = vld [vmem:[#allocation4 + $0x78] sm:$0xff]
        %v1216 = vld [vmem:[#allocation4 + $0x80] sm:$0xff]
        %v1217 = vld [vmem:[#allocation4 + $0x88] sm:$0xff]
        %v1218 = vld [vmem:[#allocation4 + $0x90] sm:$0xff]
        %v1219 = vld [vmem:[#allocation4 + $0x98] sm:$0xff]
        %v1220 = vld [vmem:[#allocation4 + $0xa0] sm:$0xff]
        %v1221 = vld [vmem:[#allocation4 + $0xa8] sm:$0xff]
        %v1222 = vld [vmem:[#allocation4 + $0xb0] sm:$0xff]
        %v1223 = vld [vmem:[#allocation4 + $0xb8] sm:$0xff]
        %v1224 = vld [vmem:[#allocation4 + $0xc0] sm:$0xff]
        %v1225 = vld [vmem:[#allocation4 + $0xc8] sm:$0xff]
        %v1226 = vld [vmem:[#allocation4 + $0xd0] sm:$0xff]
        %v1227 = vld [vmem:[#allocation4 + $0xd8] sm:$0xff]
        %v1228 = vld [vmem:[#allocation4 + $0xe0] sm:$0xff]
        %v1229 = vld [vmem:[#allocation4 + $0xe8] sm:$0xff]
        %v1230 = vld [vmem:[#allocation4 + $0xf0] sm:$0xff]
        %v1231 = vld [vmem:[#allocation4 + $0xf8] sm:$0xff]
        %v1232 = vld [vmem:[#allocation3 + $0x1] sm:$0xff]
        %v1233 = vld [vmem:[#allocation3 + $0x9] sm:$0xff]
        %s1234 = scalar_lea.vmem [#allocation4], 256
        %v1235 = vld [vmem:[%s1234] sm:$0xff]
        %v1236 = vld [vmem:[%s1234 + $0x8] sm:$0xff]
        %v1237 = vld [vmem:[%s1234 + $0x10] sm:$0xff]
        %v1238 = vld [vmem:[%s1234 + $0x18] sm:$0xff]
        %v1239 = vld [vmem:[%s1234 + $0x20] sm:$0xff]
        %v1240 = vld [vmem:[%s1234 + $0x28] sm:$0xff]
        %v1241 = vld [vmem:[%s1234 + $0x30] sm:$0xff]
        %v1242 = vld [vmem:[%s1234 + $0x38] sm:$0xff]
        %v1243 = vld [vmem:[%s1234 + $0x40] sm:$0xff]
        %v1244 = vld [vmem:[%s1234 + $0x48] sm:$0xff]
        %v1245 = vld [vmem:[%s1234 + $0x50] sm:$0xff]
        %v1246 = vld [vmem:[%s1234 + $0x58] sm:$0xff]
        %v1247 = vld [vmem:[%s1234 + $0x60] sm:$0xff]
        %v1248 = vld [vmem:[%s1234 + $0x68] sm:$0xff]
        %v1249 = vld [vmem:[%s1234 + $0x70] sm:$0xff]
        %v1250 = vld [vmem:[%s1234 + $0x78] sm:$0xff]
        %v1251 = vld [vmem:[%s1234 + $0x80] sm:$0xff]
        %v1252 = vld [vmem:[%s1234 + $0x88] sm:$0xff]
        %v1253 = vld [vmem:[%s1234 + $0x90] sm:$0xff]
        %v1254 = vld [vmem:[%s1234 + $0x98] sm:$0xff]
        %v1255 = vld [vmem:[%s1234 + $0xa0] sm:$0xff]
        %v1256 = vld [vmem:[%s1234 + $0xa8] sm:$0xff]
        %v1257 = vld [vmem:[%s1234 + $0xb0] sm:$0xff]
        %v1258 = vld [vmem:[%s1234 + $0xb8] sm:$0xff]
        %v1259 = vld [vmem:[%s1234 + $0xc0] sm:$0xff]
        %v1260 = vld [vmem:[%s1234 + $0xc8] sm:$0xff]
        %v1261 = vld [vmem:[%s1234 + $0xd0] sm:$0xff]
        %v1262 = vld [vmem:[%s1234 + $0xd8] sm:$0xff]
        %v1263 = vld [vmem:[%s1234 + $0xe0] sm:$0xff]
        %v1264 = vld [vmem:[%s1234 + $0xe8] sm:$0xff]
        %v1265 = vld [vmem:[%s1234 + $0xf0] sm:$0xff]
        %v1266 = vld [vmem:[%s1234 + $0xf8] sm:$0xff]
        %1267 = vmatprep.subr.mxu0 %v1236
        %1268 = vmatpush1.msra.mxu0 %v1235
        %1269 = vmatprep.subr.mxu0 %v1238
        %1270 = vmatpush1.msra.mxu0 %v1237
        %1271 = vmatprep.subr.mxu0 %v1240
        %1272 = vmatpush1.msra.mxu0 %v1239
        %1273 = vmatprep.subr.mxu0 %v1242
        %1274 = vmatpush1.msra.mxu0 %v1241
        %1275 = vmatprep.subr.mxu0 %v1244
        %1276 = vmatpush1.msra.mxu0 %v1243
        %1277 = vmatprep.subr.mxu0 %v1246
        %1278 = vmatpush1.msra.mxu0 %v1245
        %1279 = vmatprep.subr.mxu0 %v1248
        %1280 = vmatpush1.msra.mxu0 %v1247
        %1281 = vmatprep.subr.mxu0 %v1250
        %1282 = vmatpush1.msra.mxu0 %v1249
        %1283 = vmatprep.subr.mxu0 %v1252
        %1284 = vmatpush1.msra.mxu0 %v1251
        %1285 = vmatprep.subr.mxu0 %v1254
        %1286 = vmatpush1.msra.mxu0 %v1253
        %1287 = vmatprep.subr.mxu0 %v1256
        %1288 = vmatpush1.msra.mxu0 %v1255
        %1289 = vmatprep.subr.mxu0 %v1258
        %1290 = vmatpush1.msra.mxu0 %v1257
        %1291 = vmatprep.subr.mxu0 %v1260
        %1292 = vmatpush1.msra.mxu0 %v1259
        %1293 = vmatprep.subr.mxu0 %v1262
        %1294 = vmatpush1.msra.mxu0 %v1261
        %1295 = vmatprep.subr.mxu0 %v1264
        %1296 = vmatpush1.msra.mxu0 %v1263
        %1297 = vmatprep.subr.mxu0 %v1266
        %1298 = vmatpush1.msra.mxu0 %v1265
        %1299 = vmatprep.subr.mxu0 0.0
        %1300 = vmatpush1.msra.mxu0 0.0
        %1301 = vmatprep.subr.mxu0 0.0
        %1302 = vmatpush1.msra.mxu0 0.0
        %1303 = vmatprep.subr.mxu0 0.0
        %1304 = vmatpush1.msra.mxu0 0.0
        %1305 = vmatprep.subr.mxu0 0.0
        %1306 = vmatpush1.msra.mxu0 0.0
        %1307 = vmatprep.subr.mxu0 0.0
        %1308 = vmatpush1.msra.mxu0 0.0
        %1309 = vmatprep.subr.mxu0 0.0
        %1310 = vmatpush1.msra.mxu0 0.0
        %1311 = vmatprep.subr.mxu0 0.0
        %1312 = vmatpush1.msra.mxu0 0.0
        %1313 = vmatprep.subr.mxu0 0.0
        %1314 = vmatpush1.msra.mxu0 0.0
        %1315 = vmatprep.subr.mxu0 0.0
        %1316 = vmatpush1.msra.mxu0 0.0
        %1317 = vmatprep.subr.mxu0 0.0
        %1318 = vmatpush1.msra.mxu0 0.0
        %1319 = vmatprep.subr.mxu0 0.0
        %1320 = vmatpush1.msra.mxu0 0.0
        %1321 = vmatprep.subr.mxu0 0.0
        %1322 = vmatpush1.msra.mxu0 0.0
        %1323 = vmatprep.subr.mxu0 0.0
        %1324 = vmatpush1.msra.mxu0 0.0
        %1325 = vmatprep.subr.mxu0 0.0
        %1326 = vmatpush1.msra.mxu0 0.0
        %1327 = vmatprep.subr.mxu0 0.0
        %1328 = vmatpush1.msra.mxu0 0.0
        %1329 = vmatprep.subr.mxu0 0.0
        %1330 = vmatpush1.msra.mxu0 0.0
        %1331 = vmatprep.mubr.f32.mxu0 0.0
        %1332 = vmatmul.mubr.f32.gmra.mrb[0].mxu0 %v1232
        %v1333 = vpop.f32.mrb[0].mxu0
        %v1334 = vadd.f32 0.0, %v1333
        %v1335 = vpop.f32.mrb[0].mxu0
        %v1336 = vadd.f32 0.0, %v1335
        %1337 = vmatprep.mubr.f32.mxu0 0.0
        %1338 = vmatmul.mubr.f32.gmra.mrb[0].mxu0 %v1233
        %v1339 = vpop.f32.mrb[0].mxu0
        %v1340 = vadd.f32 0.0, %v1339
        %v1341 = vpop.f32.mrb[0].mxu0
        %v1342 = vadd.f32 0.0, %v1341
        %1343 = vdwg.mxu0
        %1344 = vmatprep.subr.mxu0 %v1201
        %1345 = vmatpush1.msra.mxu0 %v1200
        %1346 = vmatprep.subr.mxu0 %v1203
        %1347 = vmatpush1.msra.mxu0 %v1202
        %1348 = vmatprep.subr.mxu0 %v1205
        %1349 = vmatpush1.msra.mxu0 %v1204
        %1350 = vmatprep.subr.mxu0 %v1207
        %1351 = vmatpush1.msra.mxu0 %v1206
        %1352 = vmatprep.subr.mxu0 %v1209
        %1353 = vmatpush1.msra.mxu0 %v1208
        %1354 = vmatprep.subr.mxu0 %v1211
        %1355 = vmatpush1.msra.mxu0 %v1210
        %1356 = vmatprep.subr.mxu0 %v1213
        %1357 = vmatpush1.msra.mxu0 %v1212
        %1358 = vmatprep.subr.mxu0 %v1215
        %1359 = vmatpush1.msra.mxu0 %v1214
        %1360 = vmatprep.subr.mxu0 %v1217
        %1361 = vmatpush1.msra.mxu0 %v1216
        %1362 = vmatprep.subr.mxu0 %v1219
        %1363 = vmatpush1.msra.mxu0 %v1218
        %1364 = vmatprep.subr.mxu0 %v1221
        %1365 = vmatpush1.msra.mxu0 %v1220
        %1366 = vmatprep.subr.mxu0 %v1223
        %1367 = vmatpush1.msra.mxu0 %v1222
        %1368 = vmatprep.subr.mxu0 %v1225
        %1369 = vmatpush1.msra.mxu0 %v1224
        %1370 = vmatprep.subr.mxu0 %v1227
        %1371 = vmatpush1.msra.mxu0 %v1226
        %1372 = vmatprep.subr.mxu0 %v1229
        %1373 = vmatpush1.msra.mxu0 %v1228
        %1374 = vmatprep.subr.mxu0 %v1231
        %1375 = vmatpush1.msra.mxu0 %v1230
        %1376 = vmatprep.subr.mxu0 0.0
        %1377 = vmatpush1.msra.mxu0 0.0
        %1378 = vmatprep.subr.mxu0 0.0
        %1379 = vmatpush1.msra.mxu0 0.0
        %1380 = vmatprep.subr.mxu0 0.0
        %1381 = vmatpush1.msra.mxu0 0.0
        %1382 = vmatprep.subr.mxu0 0.0
        %1383 = vmatpush1.msra.mxu0 0.0
        %1384 = vmatprep.subr.mxu0 0.0
        %1385 = vmatpush1.msra.mxu0 0.0
        %1386 = vmatprep.subr.mxu0 0.0
        %1387 = vmatpush1.msra.mxu0 0.0
        %1388 = vmatprep.subr.mxu0 0.0
        %1389 = vmatpush1.msra.mxu0 0.0
        %1390 = vmatprep.subr.mxu0 0.0
        %1391 = vmatpush1.msra.mxu0 0.0
        %1392 = vmatprep.subr.mxu0 0.0
        %1393 = vmatpush1.msra.mxu0 0.0
        %1394 = vmatprep.subr.mxu0 0.0
        %1395 = vmatpush1.msra.mxu0 0.0
        %1396 = vmatprep.subr.mxu0 0.0
        %1397 = vmatpush1.msra.mxu0 0.0
        %1398 = vmatprep.subr.mxu0 0.0
        %1399 = vmatpush1.msra.mxu0 0.0
        %1400 = vmatprep.subr.mxu0 0.0
        %1401 = vmatpush1.msra.mxu0 0.0
        %1402 = vmatprep.subr.mxu0 0.0
        %1403 = vmatpush1.msra.mxu0 0.0
        %1404 = vmatprep.subr.mxu0 0.0
        %1405 = vmatpush1.msra.mxu0 0.0
        %1406 = vmatprep.subr.mxu0 0.0
        %1407 = vmatpush1.msra.mxu0 0.0
        %1408 = vmatprep.mubr.f32.mxu0 0.0
        %1409 = vmatmul.mubr.f32.gmra.mrb[0].mxu0 %v1198
        %v1410 = vpop.f32.mrb[0].mxu0
        %v1411 = vadd.f32 %v1334, %v1410
        %v1412 = vpop.f32.mrb[0].mxu0
        %v1413 = vadd.f32 %v1336, %v1412
        %1414 = vmatprep.mubr.f32.mxu0 0.0
        %1415 = vmatmul.mubr.f32.gmra.mrb[0].mxu0 %v1199
        %v1416 = vpop.f32.mrb[0].mxu0
        %v1417 = vadd.f32 %v1340, %v1416
        %v1418 = vpop.f32.mrb[0].mxu0
        %v1419 = vadd.f32 %v1342, %v1418
        %1420 = vdwg.mxu0
        %v1421 = vld [vmem:[#allocation3 + $0x2] sm:$0xff]
        %v1422 = vld [vmem:[#allocation3 + $0xa] sm:$0xff]
        %s1423 = scalar_lea.vmem [#allocation4], 512
        %v1424 = vld [vmem:[%s1423] sm:$0xff]
        %v1425 = vld [vmem:[%s1423 + $0x8] sm:$0xff]
        %v1426 = vld [vmem:[%s1423 + $0x10] sm:$0xff]
        %v1427 = vld [vmem:[%s1423 + $0x18] sm:$0xff]
        %v1428 = vld [vmem:[%s1423 + $0x20] sm:$0xff]
        %v1429 = vld [vmem:[%s1423 + $0x28] sm:$0xff]
        %v1430 = vld [vmem:[%s1423 + $0x30] sm:$0xff]
        %v1431 = vld [vmem:[%s1423 + $0x38] sm:$0xff]
        %v1432 = vld [vmem:[%s1423 + $0x40] sm:$0xff]
        %v1433 = vld [vmem:[%s1423 + $0x48] sm:$0xff]
        %v1434 = vld [vmem:[%s1423 + $0x50] sm:$0xff]
        %v1435 = vld [vmem:[%s1423 + $0x58] sm:$0xff]
        %v1436 = vld [vmem:[%s1423 + $0x60] sm:$0xff]
        %v1437 = vld [vmem:[%s1423 + $0x68] sm:$0xff]
        %v1438 = vld [vmem:[%s1423 + $0x70] sm:$0xff]
        %v1439 = vld [vmem:[%s1423 + $0x78] sm:$0xff]
        %v1440 = vld [vmem:[%s1423 + $0x80] sm:$0xff]
        %v1441 = vld [vmem:[%s1423 + $0x88] sm:$0xff]
        %v1442 = vld [vmem:[%s1423 + $0x90] sm:$0xff]
        %v1443 = vld [vmem:[%s1423 + $0x98] sm:$0xff]
        %v1444 = vld [vmem:[%s1423 + $0xa0] sm:$0xff]
        %v1445 = vld [vmem:[%s1423 + $0xa8] sm:$0xff]
        %v1446 = vld [vmem:[%s1423 + $0xb0] sm:$0xff]
        %v1447 = vld [vmem:[%s1423 + $0xb8] sm:$0xff]
        %v1448 = vld [vmem:[%s1423 + $0xc0] sm:$0xff]
        %v1449 = vld [vmem:[%s1423 + $0xc8] sm:$0xff]
        %v1450 = vld [vmem:[%s1423 + $0xd0] sm:$0xff]
        %v1451 = vld [vmem:[%s1423 + $0xd8] sm:$0xff]
        %v1452 = vld [vmem:[%s1423 + $0xe0] sm:$0xff]
        %v1453 = vld [vmem:[%s1423 + $0xe8] sm:$0xff]
        %v1454 = vld [vmem:[%s1423 + $0xf0] sm:$0xff]
        %v1455 = vld [vmem:[%s1423 + $0xf8] sm:$0xff]
        %1456 = vmatprep.subr.mxu0 %v1425
        %1457 = vmatpush1.msra.mxu0 %v1424
        %1458 = vmatprep.subr.mxu0 %v1427
        %1459 = vmatpush1.msra.mxu0 %v1426
        %1460 = vmatprep.subr.mxu0 %v1429
        %1461 = vmatpush1.msra.mxu0 %v1428
        %1462 = vmatprep.subr.mxu0 %v1431
        %1463 = vmatpush1.msra.mxu0 %v1430
        %1464 = vmatprep.subr.mxu0 %v1433
        %1465 = vmatpush1.msra.mxu0 %v1432
        %1466 = vmatprep.subr.mxu0 %v1435
        %1467 = vmatpush1.msra.mxu0 %v1434
        %1468 = vmatprep.subr.mxu0 %v1437
        %1469 = vmatpush1.msra.mxu0 %v1436
        %1470 = vmatprep.subr.mxu0 %v1439
        %1471 = vmatpush1.msra.mxu0 %v1438
        %1472 = vmatprep.subr.mxu0 %v1441
        %1473 = vmatpush1.msra.mxu0 %v1440
        %1474 = vmatprep.subr.mxu0 %v1443
        %1475 = vmatpush1.msra.mxu0 %v1442
        %1476 = vmatprep.subr.mxu0 %v1445
        %1477 = vmatpush1.msra.mxu0 %v1444
        %1478 = vmatprep.subr.mxu0 %v1447
        %1479 = vmatpush1.msra.mxu0 %v1446
        %1480 = vmatprep.subr.mxu0 %v1449
        %1481 = vmatpush1.msra.mxu0 %v1448
        %1482 = vmatprep.subr.mxu0 %v1451
        %1483 = vmatpush1.msra.mxu0 %v1450
        %1484 = vmatprep.subr.mxu0 %v1453
        %1485 = vmatpush1.msra.mxu0 %v1452
        %1486 = vmatprep.subr.mxu0 %v1455
        %1487 = vmatpush1.msra.mxu0 %v1454
        %1488 = vmatprep.subr.mxu0 0.0
        %1489 = vmatpush1.msra.mxu0 0.0
        %1490 = vmatprep.subr.mxu0 0.0
        %1491 = vmatpush1.msra.mxu0 0.0
        %1492 = vmatprep.subr.mxu0 0.0
        %1493 = vmatpush1.msra.mxu0 0.0
        %1494 = vmatprep.subr.mxu0 0.0
        %1495 = vmatpush1.msra.mxu0 0.0
        %1496 = vmatprep.subr.mxu0 0.0
        %1497 = vmatpush1.msra.mxu0 0.0
        %1498 = vmatprep.subr.mxu0 0.0
        %1499 = vmatpush1.msra.mxu0 0.0
        %1500 = vmatprep.subr.mxu0 0.0
        %1501 = vmatpush1.msra.mxu0 0.0
        %1502 = vmatprep.subr.mxu0 0.0
        %1503 = vmatpush1.msra.mxu0 0.0
        %1504 = vmatprep.subr.mxu0 0.0
        %1505 = vmatpush1.msra.mxu0 0.0
        %1506 = vmatprep.subr.mxu0 0.0
        %1507 = vmatpush1.msra.mxu0 0.0
        %1508 = vmatprep.subr.mxu0 0.0
        %1509 = vmatpush1.msra.mxu0 0.0
        %1510 = vmatprep.subr.mxu0 0.0
        %1511 = vmatpush1.msra.mxu0 0.0
        %1512 = vmatprep.subr.mxu0 0.0
        %1513 = vmatpush1.msra.mxu0 0.0
        %1514 = vmatprep.subr.mxu0 0.0
        %1515 = vmatpush1.msra.mxu0 0.0
        %1516 = vmatprep.subr.mxu0 0.0
        %1517 = vmatpush1.msra.mxu0 0.0
        %1518 = vmatprep.subr.mxu0 0.0
        %1519 = vmatpush1.msra.mxu0 0.0
        %1520 = vmatprep.mubr.f32.mxu0 0.0
        %1521 = vmatmul.mubr.f32.gmra.mrb[0].mxu0 %v1421
        %v1522 = vpop.f32.mrb[0].mxu0
        %v1523 = vadd.f32 0.0, %v1522
        %v1524 = vpop.f32.mrb[0].mxu0
        %v1525 = vadd.f32 0.0, %v1524
        %1526 = vmatprep.mubr.f32.mxu0 0.0
        %1527 = vmatmul.mubr.f32.gmra.mrb[0].mxu0 %v1422
        %v1528 = vpop.f32.mrb[0].mxu0
        %v1529 = vadd.f32 0.0, %v1528
        %v1530 = vpop.f32.mrb[0].mxu0
        %v1531 = vadd.f32 0.0, %v1530
        %1532 = vdwg.mxu0
        %v1533 = vadd.f32 %v1411, %v1523
        %v1534 = vadd.f32 %v1413, %v1525
        %v1535 = vadd.f32 %v1417, %v1529
        %v1536 = vadd.f32 %v1419, %v1531
        %v1537 = vld [vmem:[#allocation3 + $0x3] sm:$0xff]
        %v1538 = vld [vmem:[#allocation3 + $0xb] sm:$0xff]
        %s1539 = scalar_lea.vmem [#allocation4], 768
        %v1540 = vld [vmem:[%s1539] sm:$0xff]
        %v1541 = vld [vmem:[%s1539 + $0x8] sm:$0xff]
        %v1542 = vld [vmem:[%s1539 + $0x10] sm:$0xff]
        %v1543 = vld [vmem:[%s1539 + $0x18] sm:$0xff]
        %v1544 = vld [vmem:[%s1539 + $0x20] sm:$0xff]
        %v1545 = vld [vmem:[%s1539 + $0x28] sm:$0xff]
        %v1546 = vld [vmem:[%s1539 + $0x30] sm:$0xff]
        %v1547 = vld [vmem:[%s1539 + $0x38] sm:$0xff]
        %v1548 = vld [vmem:[%s1539 + $0x40] sm:$0xff]
        %v1549 = vld [vmem:[%s1539 + $0x48] sm:$0xff]
        %v1550 = vld [vmem:[%s1539 + $0x50] sm:$0xff]
        %v1551 = vld [vmem:[%s1539 + $0x58] sm:$0xff]
        %v1552 = vld [vmem:[%s1539 + $0x60] sm:$0xff]
        %v1553 = vld [vmem:[%s1539 + $0x68] sm:$0xff]
        %v1554 = vld [vmem:[%s1539 + $0x70] sm:$0xff]
        %v1555 = vld [vmem:[%s1539 + $0x78] sm:$0xff]
        %v1556 = vld [vmem:[%s1539 + $0x80] sm:$0xff]
        %v1557 = vld [vmem:[%s1539 + $0x88] sm:$0xff]
        %v1558 = vld [vmem:[%s1539 + $0x90] sm:$0xff]
        %v1559 = vld [vmem:[%s1539 + $0x98] sm:$0xff]
        %v1560 = vld [vmem:[%s1539 + $0xa0] sm:$0xff]
        %v1561 = vld [vmem:[%s1539 + $0xa8] sm:$0xff]
        %v1562 = vld [vmem:[%s1539 + $0xb0] sm:$0xff]
        %v1563 = vld [vmem:[%s1539 + $0xb8] sm:$0xff]
        %v1564 = vld [vmem:[%s1539 + $0xc0] sm:$0xff]
        %v1565 = vld [vmem:[%s1539 + $0xc8] sm:$0xff]
        %v1566 = vld [vmem:[%s1539 + $0xd0] sm:$0xff]
        %v1567 = vld [vmem:[%s1539 + $0xd8] sm:$0xff]
        %v1568 = vld [vmem:[%s1539 + $0xe0] sm:$0xff]
        %v1569 = vld [vmem:[%s1539 + $0xe8] sm:$0xff]
        %v1570 = vld [vmem:[%s1539 + $0xf0] sm:$0xff]
        %v1571 = vld [vmem:[%s1539 + $0xf8] sm:$0xff]
        %1572 = vmatprep.subr.mxu0 %v1541
        %1573 = vmatpush1.msra.mxu0 %v1540
        %1574 = vmatprep.subr.mxu0 %v1543
        %1575 = vmatpush1.msra.mxu0 %v1542
        %1576 = vmatprep.subr.mxu0 %v1545
        %1577 = vmatpush1.msra.mxu0 %v1544
        %1578 = vmatprep.subr.mxu0 %v1547
        %1579 = vmatpush1.msra.mxu0 %v1546
        %1580 = vmatprep.subr.mxu0 %v1549
        %1581 = vmatpush1.msra.mxu0 %v1548
        %1582 = vmatprep.subr.mxu0 %v1551
        %1583 = vmatpush1.msra.mxu0 %v1550
        %1584 = vmatprep.subr.mxu0 %v1553
        %1585 = vmatpush1.msra.mxu0 %v1552
        %1586 = vmatprep.subr.mxu0 %v1555
        %1587 = vmatpush1.msra.mxu0 %v1554
        %1588 = vmatprep.subr.mxu0 %v1557
        %1589 = vmatpush1.msra.mxu0 %v1556
        %1590 = vmatprep.subr.mxu0 %v1559
        %1591 = vmatpush1.msra.mxu0 %v1558
        %1592 = vmatprep.subr.mxu0 %v1561
        %1593 = vmatpush1.msra.mxu0 %v1560
        %1594 = vmatprep.subr.mxu0 %v1563
        %1595 = vmatpush1.msra.mxu0 %v1562
        %1596 = vmatprep.subr.mxu0 %v1565
        %1597 = vmatpush1.msra.mxu0 %v1564
        %1598 = vmatprep.subr.mxu0 %v1567
        %1599 = vmatpush1.msra.mxu0 %v1566
        %1600 = vmatprep.subr.mxu0 %v1569
        %1601 = vmatpush1.msra.mxu0 %v1568
        %1602 = vmatprep.subr.mxu0 %v1571
        %1603 = vmatpush1.msra.mxu0 %v1570
        %1604 = vmatprep.subr.mxu0 0.0
        %1605 = vmatpush1.msra.mxu0 0.0
        %1606 = vmatprep.subr.mxu0 0.0
        %1607 = vmatpush1.msra.mxu0 0.0
        %1608 = vmatprep.subr.mxu0 0.0
        %1609 = vmatpush1.msra.mxu0 0.0
        %1610 = vmatprep.subr.mxu0 0.0
        %1611 = vmatpush1.msra.mxu0 0.0
        %1612 = vmatprep.subr.mxu0 0.0
        %1613 = vmatpush1.msra.mxu0 0.0
        %1614 = vmatprep.subr.mxu0 0.0
        %1615 = vmatpush1.msra.mxu0 0.0
        %1616 = vmatprep.subr.mxu0 0.0
        %1617 = vmatpush1.msra.mxu0 0.0
        %1618 = vmatprep.subr.mxu0 0.0
        %1619 = vmatpush1.msra.mxu0 0.0
        %1620 = vmatprep.subr.mxu0 0.0
        %1621 = vmatpush1.msra.mxu0 0.0
        %1622 = vmatprep.subr.mxu0 0.0
        %1623 = vmatpush1.msra.mxu0 0.0
        %1624 = vmatprep.subr.mxu0 0.0
        %1625 = vmatpush1.msra.mxu0 0.0
        %1626 = vmatprep.subr.mxu0 0.0
        %1627 = vmatpush1.msra.mxu0 0.0
        %1628 = vmatprep.subr.mxu0 0.0
        %1629 = vmatpush1.msra.mxu0 0.0
        %1630 = vmatprep.subr.mxu0 0.0
        %1631 = vmatpush1.msra.mxu0 0.0
        %1632 = vmatprep.subr.mxu0 0.0
        %1633 = vmatpush1.msra.mxu0 0.0
        %1634 = vmatprep.subr.mxu0 0.0
        %1635 = vmatpush1.msra.mxu0 0.0
        %1636 = vmatprep.mubr.f32.mxu0 0.0
        %1637 = vmatmul.mubr.f32.gmra.mrb[0].mxu0 %v1537
        %v1638 = vpop.f32.mrb[0].mxu0
        %v1639 = vadd.f32 0.0, %v1638
        %v1640 = vpop.f32.mrb[0].mxu0
        %v1641 = vadd.f32 0.0, %v1640
        %1642 = vmatprep.mubr.f32.mxu0 0.0
        %1643 = vmatmul.mubr.f32.gmra.mrb[0].mxu0 %v1538
        %v1644 = vpop.f32.mrb[0].mxu0
        %v1645 = vadd.f32 0.0, %v1644
        %v1646 = vpop.f32.mrb[0].mxu0
        %v1647 = vadd.f32 0.0, %v1646
        %1648 = vdwg.mxu0
        %v1649 = vadd.f32 %v1533, %v1639
        %v1650 = vadd.f32 %v1534, %v1641
        %v1651 = vadd.f32 %v1535, %v1645
        %v1652 = vadd.f32 %v1536, %v1647
        %v1653 = vld [vmem:[#allocation3 + $0x4] sm:$0xff]
        %v1654 = vld [vmem:[#allocation3 + $0xc] sm:$0xff]
        %s1655 = scalar_lea.vmem [#allocation4], 1024
        %v1656 = vld [vmem:[%s1655] sm:$0xff]
        %v1657 = vld [vmem:[%s1655 + $0x8] sm:$0xff]
        %v1658 = vld [vmem:[%s1655 + $0x10] sm:$0xff]
        %v1659 = vld [vmem:[%s1655 + $0x18] sm:$0xff]
        %v1660 = vld [vmem:[%s1655 + $0x20] sm:$0xff]
        %v1661 = vld [vmem:[%s1655 + $0x28] sm:$0xff]
        %v1662 = vld [vmem:[%s1655 + $0x30] sm:$0xff]
        %v1663 = vld [vmem:[%s1655 + $0x38] sm:$0xff]
        %v1664 = vld [vmem:[%s1655 + $0x40] sm:$0xff]
        %v1665 = vld [vmem:[%s1655 + $0x48] sm:$0xff]
        %v1666 = vld [vmem:[%s1655 + $0x50] sm:$0xff]
        %v1667 = vld [vmem:[%s1655 + $0x58] sm:$0xff]
        %v1668 = vld [vmem:[%s1655 + $0x60] sm:$0xff]
        %v1669 = vld [vmem:[%s1655 + $0x68] sm:$0xff]
        %v1670 = vld [vmem:[%s1655 + $0x70] sm:$0xff]
        %v1671 = vld [vmem:[%s1655 + $0x78] sm:$0xff]
        %v1672 = vld [vmem:[%s1655 + $0x80] sm:$0xff]
        %v1673 = vld [vmem:[%s1655 + $0x88] sm:$0xff]
        %v1674 = vld [vmem:[%s1655 + $0x90] sm:$0xff]
        %v1675 = vld [vmem:[%s1655 + $0x98] sm:$0xff]
        %v1676 = vld [vmem:[%s1655 + $0xa0] sm:$0xff]
        %v1677 = vld [vmem:[%s1655 + $0xa8] sm:$0xff]
        %v1678 = vld [vmem:[%s1655 + $0xb0] sm:$0xff]
        %v1679 = vld [vmem:[%s1655 + $0xb8] sm:$0xff]
        %v1680 = vld [vmem:[%s1655 + $0xc0] sm:$0xff]
        %v1681 = vld [vmem:[%s1655 + $0xc8] sm:$0xff]
        %v1682 = vld [vmem:[%s1655 + $0xd0] sm:$0xff]
        %v1683 = vld [vmem:[%s1655 + $0xd8] sm:$0xff]
        %v1684 = vld [vmem:[%s1655 + $0xe0] sm:$0xff]
        %v1685 = vld [vmem:[%s1655 + $0xe8] sm:$0xff]
        %v1686 = vld [vmem:[%s1655 + $0xf0] sm:$0xff]
        %v1687 = vld [vmem:[%s1655 + $0xf8] sm:$0xff]
        %1688 = vmatprep.subr.mxu0 %v1657
        %1689 = vmatpush1.msra.mxu0 %v1656
        %1690 = vmatprep.subr.mxu0 %v1659
        %1691 = vmatpush1.msra.mxu0 %v1658
        %1692 = vmatprep.subr.mxu0 %v1661
        %1693 = vmatpush1.msra.mxu0 %v1660
        %1694 = vmatprep.subr.mxu0 %v1663
        %1695 = vmatpush1.msra.mxu0 %v1662
        %1696 = vmatprep.subr.mxu0 %v1665
        %1697 = vmatpush1.msra.mxu0 %v1664
        %1698 = vmatprep.subr.mxu0 %v1667
        %1699 = vmatpush1.msra.mxu0 %v1666
        %1700 = vmatprep.subr.mxu0 %v1669
        %1701 = vmatpush1.msra.mxu0 %v1668
        %1702 = vmatprep.subr.mxu0 %v1671
        %1703 = vmatpush1.msra.mxu0 %v1670
        %1704 = vmatprep.subr.mxu0 %v1673
        %1705 = vmatpush1.msra.mxu0 %v1672
        %1706 = vmatprep.subr.mxu0 %v1675
        %1707 = vmatpush1.msra.mxu0 %v1674
        %1708 = vmatprep.subr.mxu0 %v1677
        %1709 = vmatpush1.msra.mxu0 %v1676
        %1710 = vmatprep.subr.mxu0 %v1679
        %1711 = vmatpush1.msra.mxu0 %v1678
        %1712 = vmatprep.subr.mxu0 %v1681
        %1713 = vmatpush1.msra.mxu0 %v1680
        %1714 = vmatprep.subr.mxu0 %v1683
        %1715 = vmatpush1.msra.mxu0 %v1682
        %1716 = vmatprep.subr.mxu0 %v1685
        %1717 = vmatpush1.msra.mxu0 %v1684
        %1718 = vmatprep.subr.mxu0 %v1687
        %1719 = vmatpush1.msra.mxu0 %v1686
        %1720 = vmatprep.subr.mxu0 0.0
        %1721 = vmatpush1.msra.mxu0 0.0
        %1722 = vmatprep.subr.mxu0 0.0
        %1723 = vmatpush1.msra.mxu0 0.0
        %1724 = vmatprep.subr.mxu0 0.0
        %1725 = vmatpush1.msra.mxu0 0.0
        %1726 = vmatprep.subr.mxu0 0.0
        %1727 = vmatpush1.msra.mxu0 0.0
        %1728 = vmatprep.subr.mxu0 0.0
        %1729 = vmatpush1.msra.mxu0 0.0
        %1730 = vmatprep.subr.mxu0 0.0
        %1731 = vmatpush1.msra.mxu0 0.0
        %1732 = vmatprep.subr.mxu0 0.0
        %1733 = vmatpush1.msra.mxu0 0.0
        %1734 = vmatprep.subr.mxu0 0.0
        %1735 = vmatpush1.msra.mxu0 0.0
        %1736 = vmatprep.subr.mxu0 0.0
        %1737 = vmatpush1.msra.mxu0 0.0
        %1738 = vmatprep.subr.mxu0 0.0
        %1739 = vmatpush1.msra.mxu0 0.0
        %1740 = vmatprep.subr.mxu0 0.0
        %1741 = vmatpush1.msra.mxu0 0.0
        %1742 = vmatprep.subr.mxu0 0.0
        %1743 = vmatpush1.msra.mxu0 0.0
        %1744 = vmatprep.subr.mxu0 0.0
        %1745 = vmatpush1.msra.mxu0 0.0
        %1746 = vmatprep.subr.mxu0 0.0
        %1747 = vmatpush1.msra.mxu0 0.0
        %1748 = vmatprep.subr.mxu0 0.0
        %1749 = vmatpush1.msra.mxu0 0.0
        %1750 = vmatprep.subr.mxu0 0.0
        %1751 = vmatpush1.msra.mxu0 0.0
        %1752 = vmatprep.mubr.f32.mxu0 0.0
        %1753 = vmatmul.mubr.f32.gmra.mrb[0].mxu0 %v1653
        %v1754 = vpop.f32.mrb[0].mxu0
        %v1755 = vadd.f32 0.0, %v1754
        %v1756 = vpop.f32.mrb[0].mxu0
        %v1757 = vadd.f32 0.0, %v1756
        %1758 = vmatprep.mubr.f32.mxu0 0.0
        %1759 = vmatmul.mubr.f32.gmra.mrb[0].mxu0 %v1654
        %v1760 = vpop.f32.mrb[0].mxu0
        %v1761 = vadd.f32 0.0, %v1760
        %v1762 = vpop.f32.mrb[0].mxu0
        %v1763 = vadd.f32 0.0, %v1762
        %1764 = vdwg.mxu0
        %v1765 = vadd.f32 %v1649, %v1755
        %v1766 = vadd.f32 %v1650, %v1757
        %v1767 = vadd.f32 %v1651, %v1761
        %v1768 = vadd.f32 %v1652, %v1763
        %v1769 = vld [vmem:[%s4] sm:$0x3]
        %v1771 = vlaneseq
        %v1772 = vshrl.u32 %v1771, 7
        %v1773 = vsub.s32 0, %v1772
        %v1774 = vrot.slane %v1769, %v1773
        %v1775 = vlaneseq
        %v1776 = vshrl.u32 %v1775, 7
        %v1777 = vsub.s32 1, %v1776
        %v1778 = vrot.slane %v1769, %v1777
        %v1781 = vadd.f32 %v1765, %v1774
        %v1782 = vadd.f32 %v1766, %v1778
        %v1783 = vadd.f32 %v1767, %v1774
        %v1784 = vadd.f32 %v1768, %v1778
        %v1785 = vmax.f32 %v1781, 0.0
        %v1786 = vmax.f32 %v1782, 0.0
        %v1787 = vmax.f32 %v1783, 0.0
        %v1788 = vmax.f32 %v1784, 0.0
        %v1789 = vadd.f32 %v1785, %v1786
        %v1790 = vadd.f32 %v1787, %v1788
        %v1792 = vunpack.c.l.s4 1966171168
        %v1793 = vunpack.c.0.s8 %v1792
        %v1794 = vlaneseq
        %v1795 = vshrl.u32 %v1794, 7
        %v1796 = vsub.s32 %v1793, %v1795
        %v1797 = vrot.slane %v1789, %v1796
        %v1799 = vunpack.c.l.s4 1966171168
        %v1800 = vunpack.c.0.s8 %v1799
        %v1801 = vlaneseq
        %v1802 = vshrl.u32 %v1801, 7
        %v1803 = vsub.s32 %v1800, %v1802
        %v1804 = vrot.slane %v1790, %v1803
        %v1807 = vrot.slane %v1797, 4
        %v1808 = vrot.slane %v1804, 4
        %v1811 = vadd.f32 %v1797, %v1807
        %v1812 = vadd.f32 %v1804, %v1808
        %v1813 = vmul.f32 %v1811, 0.25
        %v1814 = vmul.f32 %v1812, 0.25
        %v1817 = vcombine.low %v1813, %v1814
        %v1818 = vld [vmem:[#allocation7] sm:$0xff]
        %v1819 = vld [vmem:[#allocation7 + $0x8] sm:$0xff]
        %v1820 = vld [vmem:[#allocation7 + $0x10] sm:$0xff]
        %v1821 = vld [vmem:[#allocation7 + $0x18] sm:$0xff]
        %v1822 = vld [vmem:[#allocation7 + $0x20] sm:$0xff]
        %v1823 = vld [vmem:[#allocation7 + $0x28] sm:$0xff]
        %v1824 = vld [vmem:[#allocation7 + $0x30] sm:$0xff]
        %v1825 = vld [vmem:[#allocation7 + $0x38] sm:$0xff]
        %v1826 = vld [vmem:[#allocation7 + $0x40] sm:$0xff]
        %v1827 = vld [vmem:[#allocation7 + $0x48] sm:$0xff]
        %v1828 = vld [vmem:[#allocation7 + $0x50] sm:$0xff]
        %v1829 = vld [vmem:[#allocation7 + $0x58] sm:$0xff]
        %v1830 = vld [vmem:[#allocation7 + $0x60] sm:$0xff]
        %v1831 = vld [vmem:[#allocation7 + $0x68] sm:$0xff]
        %v1832 = vld [vmem:[#allocation7 + $0x70] sm:$0xff]
        %v1833 = vld [vmem:[#allocation7 + $0x78] sm:$0xff]
        %v1834 = vld [vmem:[#allocation7 + $0x80] sm:$0xff]
        %v1835 = vld [vmem:[#allocation7 + $0x88] sm:$0xff]
        %v1836 = vld [vmem:[#allocation7 + $0x90] sm:$0xff]
        %v1837 = vld [vmem:[#allocation7 + $0x98] sm:$0xff]
        %v1838 = vld [vmem:[#allocation7 + $0xa0] sm:$0xff]
        %v1839 = vld [vmem:[#allocation7 + $0xa8] sm:$0xff]
        %v1840 = vld [vmem:[#allocation7 + $0xb0] sm:$0xff]
        %v1841 = vld [vmem:[#allocation7 + $0xb8] sm:$0xff]
        %v1842 = vld [vmem:[#allocation7 + $0xc0] sm:$0xff]
        %v1843 = vld [vmem:[#allocation7 + $0xc8] sm:$0xff]
        %v1844 = vld [vmem:[#allocation7 + $0xd0] sm:$0xff]
        %v1845 = vld [vmem:[#allocation7 + $0xd8] sm:$0xff]
        %v1846 = vld [vmem:[#allocation7 + $0xe0] sm:$0xff]
        %v1847 = vld [vmem:[#allocation7 + $0xe8] sm:$0xff]
        %v1848 = vld [vmem:[#allocation7 + $0xf0] sm:$0xff]
        %v1849 = vld [vmem:[#allocation7 + $0xf8] sm:$0xff]
        %v1850 = vld [vmem:[#allocation7 + $0x100] sm:$0xff]
        %v1851 = vld [vmem:[#allocation7 + $0x108] sm:$0xff]
        %v1852 = vld [vmem:[#allocation7 + $0x110] sm:$0xff]
        %v1853 = vld [vmem:[#allocation7 + $0x118] sm:$0xff]
        %v1854 = vld [vmem:[#allocation7 + $0x120] sm:$0xff]
        %v1855 = vld [vmem:[#allocation7 + $0x128] sm:$0xff]
        %v1856 = vld [vmem:[#allocation7 + $0x130] sm:$0xff]
        %v1857 = vld [vmem:[#allocation7 + $0x138] sm:$0xff]
        %v1858 = vld [vmem:[#allocation7 + $0x140] sm:$0xff]
        %v1859 = vld [vmem:[#allocation7 + $0x148] sm:$0xff]
        %v1860 = vld [vmem:[#allocation7 + $0x150] sm:$0xff]
        %v1861 = vld [vmem:[#allocation7 + $0x158] sm:$0xff]
        %v1862 = vld [vmem:[#allocation7 + $0x160] sm:$0xff]
        %v1863 = vld [vmem:[#allocation7 + $0x168] sm:$0xff]
        %v1864 = vld [vmem:[#allocation7 + $0x170] sm:$0xff]
        %v1865 = vld [vmem:[#allocation7 + $0x178] sm:$0xff]
        %v1866 = vld [vmem:[#allocation7 + $0x180] sm:$0xff]
        %v1867 = vld [vmem:[#allocation7 + $0x188] sm:$0xff]
        %v1868 = vld [vmem:[#allocation7 + $0x190] sm:$0xff]
        %v1869 = vld [vmem:[#allocation7 + $0x198] sm:$0xff]
        %v1870 = vld [vmem:[#allocation7 + $0x1a0] sm:$0xff]
        %v1871 = vld [vmem:[#allocation7 + $0x1a8] sm:$0xff]
        %v1872 = vld [vmem:[#allocation7 + $0x1b0] sm:$0xff]
        %v1873 = vld [vmem:[#allocation7 + $0x1b8] sm:$0xff]
        %v1874 = vld [vmem:[#allocation7 + $0x1c0] sm:$0xff]
        %v1875 = vld [vmem:[#allocation7 + $0x1c8] sm:$0xff]
        %v1876 = vld [vmem:[#allocation7 + $0x1d0] sm:$0xff]
        %v1877 = vld [vmem:[#allocation7 + $0x1d8] sm:$0xff]
        %v1878 = vld [vmem:[#allocation7 + $0x1e0] sm:$0xff]
        %v1879 = vld [vmem:[#allocation7 + $0x1e8] sm:$0xff]
        %v1880 = vld [vmem:[#allocation7 + $0x1f0] sm:$0xff]
        %v1881 = vld [vmem:[#allocation7 + $0x1f8] sm:$0xff]
        %v1882 = vld [vmem:[#allocation7 + $0x200] sm:$0xff]
        %v1883 = vld [vmem:[#allocation7 + $0x208] sm:$0xff]
        %v1884 = vld [vmem:[#allocation7 + $0x210] sm:$0xff]
        %v1885 = vld [vmem:[#allocation7 + $0x218] sm:$0xff]
        %v1886 = vld [vmem:[#allocation7 + $0x220] sm:$0xff]
        %v1887 = vld [vmem:[#allocation7 + $0x228] sm:$0xff]
        %v1888 = vld [vmem:[#allocation7 + $0x230] sm:$0xff]
        %v1889 = vld [vmem:[#allocation7 + $0x238] sm:$0xff]
        %v1890 = vld [vmem:[#allocation7 + $0x240] sm:$0xff]
        %v1891 = vld [vmem:[#allocation7 + $0x248] sm:$0xff]
        %v1892 = vld [vmem:[#allocation7 + $0x250] sm:$0xff]
        %v1893 = vld [vmem:[#allocation7 + $0x258] sm:$0xff]
        %v1894 = vld [vmem:[#allocation7 + $0x260] sm:$0xff]
        %v1895 = vld [vmem:[#allocation7 + $0x268] sm:$0xff]
        %v1896 = vld [vmem:[#allocation7 + $0x270] sm:$0xff]
        %v1897 = vld [vmem:[#allocation7 + $0x278] sm:$0xff]
        %v1898 = vld [vmem:[#allocation7 + $0x280] sm:$0xff]
        %v1899 = vld [vmem:[#allocation7 + $0x288] sm:$0xff]
        %v1900 = vld [vmem:[#allocation7 + $0x290] sm:$0xff]
        %v1901 = vld [vmem:[#allocation7 + $0x298] sm:$0xff]
        %v1902 = vld [vmem:[#allocation7 + $0x2a0] sm:$0xff]
        %v1903 = vld [vmem:[#allocation7 + $0x2a8] sm:$0xff]
        %v1904 = vld [vmem:[#allocation7 + $0x2b0] sm:$0xff]
        %v1905 = vld [vmem:[#allocation7 + $0x2b8] sm:$0xff]
        %v1906 = vld [vmem:[#allocation7 + $0x2c0] sm:$0xff]
        %v1907 = vld [vmem:[#allocation7 + $0x2c8] sm:$0xff]
        %v1908 = vld [vmem:[#allocation7 + $0x2d0] sm:$0xff]
        %v1909 = vld [vmem:[#allocation7 + $0x2d8] sm:$0xff]
        %v1910 = vld [vmem:[#allocation7 + $0x2e0] sm:$0xff]
        %v1911 = vld [vmem:[#allocation7 + $0x2e8] sm:$0xff]
        %v1912 = vld [vmem:[#allocation7 + $0x2f0] sm:$0xff]
        %v1913 = vld [vmem:[#allocation7 + $0x2f8] sm:$0xff]
        %v1914 = vld [vmem:[#allocation7 + $0x300] sm:$0xff]
        %v1915 = vld [vmem:[#allocation7 + $0x308] sm:$0xff]
        %v1916 = vld [vmem:[#allocation7 + $0x310] sm:$0xff]
        %v1917 = vld [vmem:[#allocation7 + $0x318] sm:$0xff]
        %v1918 = vld [vmem:[#allocation7 + $0x320] sm:$0xff]
        %v1919 = vld [vmem:[#allocation7 + $0x328] sm:$0xff]
        %v1920 = vld [vmem:[#allocation7 + $0x330] sm:$0xff]
        %v1921 = vld [vmem:[#allocation7 + $0x338] sm:$0xff]
        %v1922 = vld [vmem:[#allocation7 + $0x340] sm:$0xff]
        %v1923 = vld [vmem:[#allocation7 + $0x348] sm:$0xff]
        %v1924 = vld [vmem:[#allocation7 + $0x350] sm:$0xff]
        %v1925 = vld [vmem:[#allocation7 + $0x358] sm:$0xff]
        %v1926 = vld [vmem:[#allocation7 + $0x360] sm:$0xff]
        %v1927 = vld [vmem:[#allocation7 + $0x368] sm:$0xff]
        %v1928 = vld [vmem:[#allocation7 + $0x370] sm:$0xff]
        %v1929 = vld [vmem:[#allocation7 + $0x378] sm:$0xff]
        %v1930 = vld [vmem:[#allocation7 + $0x380] sm:$0xff]
        %v1931 = vld [vmem:[#allocation7 + $0x388] sm:$0xff]
        %v1932 = vld [vmem:[#allocation7 + $0x390] sm:$0xff]
        %v1933 = vld [vmem:[#allocation7 + $0x398] sm:$0xff]
        %v1934 = vld [vmem:[#allocation7 + $0x3a0] sm:$0xff]
        %v1935 = vld [vmem:[#allocation7 + $0x3a8] sm:$0xff]
        %v1936 = vld [vmem:[#allocation7 + $0x3b0] sm:$0xff]
        %v1937 = vld [vmem:[#allocation7 + $0x3b8] sm:$0xff]
        %v1938 = vld [vmem:[#allocation7 + $0x3c0] sm:$0xff]
        %v1939 = vld [vmem:[#allocation7 + $0x3c8] sm:$0xff]
        %v1940 = vld [vmem:[#allocation7 + $0x3d0] sm:$0xff]
        %v1941 = vld [vmem:[#allocation7 + $0x3d8] sm:$0xff]
        %v1942 = vld [vmem:[#allocation7 + $0x3e0] sm:$0xff]
        %v1943 = vld [vmem:[#allocation7 + $0x3e8] sm:$0xff]
        %v1944 = vld [vmem:[#allocation7 + $0x3f0] sm:$0xff]
        %v1945 = vld [vmem:[#allocation7 + $0x3f8] sm:$0xff]
        %v1946 = vld [vmem:[%s6] sm:$0x1]
        %v1947 = vlaneseq
        %v1948 = vshrl.u32 %v1947, 7
        %v1949 = vsub.s32 0, %v1948
        %v1950 = vrot.slane %v1817, %v1949
        %v1951 = vlaneseq
        %v1952 = vshrl.u32 %v1951, 7
        %v1953 = vsub.s32 1, %v1952
        %v1954 = vrot.slane %v1817, %v1953
        %v1955 = vlaneseq
        %v1956 = vshrl.u32 %v1955, 7
        %v1957 = vsub.s32 2, %v1956
        %v1958 = vrot.slane %v1817, %v1957
        %v1959 = vlaneseq
        %v1960 = vshrl.u32 %v1959, 7
        %v1961 = vsub.s32 3, %v1960
        %v1962 = vrot.slane %v1817, %v1961
        %v1963 = vlaneseq
        %v1964 = vshrl.u32 %v1963, 7
        %v1965 = vsub.s32 4, %v1964
        %v1966 = vrot.slane %v1817, %v1965
        %v1967 = vlaneseq
        %v1968 = vshrl.u32 %v1967, 7
        %v1969 = vsub.s32 5, %v1968
        %v1970 = vrot.slane %v1817, %v1969
        %v1971 = vlaneseq
        %v1972 = vshrl.u32 %v1971, 7
        %v1973 = vsub.s32 6, %v1972
        %v1974 = vrot.slane %v1817, %v1973
        %v1975 = vlaneseq
        %v1976 = vshrl.u32 %v1975, 7
        %v1977 = vsub.s32 7, %v1976
        %v1978 = vrot.slane %v1817, %v1977
        %1987 = vmatprep.subr.mxu0 0.0
        %1988 = vmatpush1.msra.mxu0 %v1818
        %1989 = vmatprep.subr.mxu0 0.0
        %1990 = vmatpush1.msra.mxu0 %v1819
        %1991 = vmatprep.subr.mxu0 0.0
        %1992 = vmatpush1.msra.mxu0 %v1820
        %1993 = vmatprep.subr.mxu0 0.0
        %1994 = vmatpush1.msra.mxu0 %v1821
        %1995 = vmatprep.subr.mxu0 0.0
        %1996 = vmatpush1.msra.mxu0 %v1822
        %1997 = vmatprep.subr.mxu0 0.0
        %1998 = vmatpush1.msra.mxu0 %v1823
        %1999 = vmatprep.subr.mxu0 0.0
        %2000 = vmatpush1.msra.mxu0 %v1824
        %2001 = vmatprep.subr.mxu0 0.0
        %2002 = vmatpush1.msra.mxu0 %v1825
        %2003 = vmatprep.subr.mxu0 0.0
        %2004 = vmatpush1.msra.mxu0 %v1826
        %2005 = vmatprep.subr.mxu0 0.0
        %2006 = vmatpush1.msra.mxu0 %v1827
        %2007 = vmatprep.subr.mxu0 0.0
        %2008 = vmatpush1.msra.mxu0 %v1828
        %2009 = vmatprep.subr.mxu0 0.0
        %2010 = vmatpush1.msra.mxu0 %v1829
        %2011 = vmatprep.subr.mxu0 0.0
        %2012 = vmatpush1.msra.mxu0 %v1830
        %2013 = vmatprep.subr.mxu0 0.0
        %2014 = vmatpush1.msra.mxu0 %v1831
        %2015 = vmatprep.subr.mxu0 0.0
        %2016 = vmatpush1.msra.mxu0 %v1832
        %2017 = vmatprep.subr.mxu0 0.0
        %2018 = vmatpush1.msra.mxu0 %v1833
        %2019 = vmatprep.subr.mxu0 0.0
        %2020 = vmatpush1.msra.mxu0 %v1834
        %2021 = vmatprep.subr.mxu0 0.0
        %2022 = vmatpush1.msra.mxu0 %v1835
        %2023 = vmatprep.subr.mxu0 0.0
        %2024 = vmatpush1.msra.mxu0 %v1836
        %2025 = vmatprep.subr.mxu0 0.0
        %2026 = vmatpush1.msra.mxu0 %v1837
        %2027 = vmatprep.subr.mxu0 0.0
        %2028 = vmatpush1.msra.mxu0 %v1838
        %2029 = vmatprep.subr.mxu0 0.0
        %2030 = vmatpush1.msra.mxu0 %v1839
        %2031 = vmatprep.subr.mxu0 0.0
        %2032 = vmatpush1.msra.mxu0 %v1840
        %2033 = vmatprep.subr.mxu0 0.0
        %2034 = vmatpush1.msra.mxu0 %v1841
        %2035 = vmatprep.subr.mxu0 0.0
        %2036 = vmatpush1.msra.mxu0 %v1842
        %2037 = vmatprep.subr.mxu0 0.0
        %2038 = vmatpush1.msra.mxu0 %v1843
        %2039 = vmatprep.subr.mxu0 0.0
        %2040 = vmatpush1.msra.mxu0 %v1844
        %2041 = vmatprep.subr.mxu0 0.0
        %2042 = vmatpush1.msra.mxu0 %v1845
        %2043 = vmatprep.subr.mxu0 0.0
        %2044 = vmatpush1.msra.mxu0 %v1846
        %2045 = vmatprep.subr.mxu0 0.0
        %2046 = vmatpush1.msra.mxu0 %v1847
        %2047 = vmatprep.subr.mxu0 0.0
        %2048 = vmatpush1.msra.mxu0 %v1848
        %2049 = vmatprep.subr.mxu0 0.0
        %2050 = vmatpush1.msra.mxu0 %v1849
        %2051 = vmatprep.mubr.f32.mxu0 %v1954
        %2052 = vmatmul.mubr.f32.gmra.mrb[0].mxu0 %v1950
        %v2053 = vpop.f32.mrb[0].mxu0
        %v2054 = vadd.f32 %v1946, %v2053
        %v2055 = vpop.f32.mrb[0].mxu0
        %2056 = vdwg.mxu0
        %2057 = vmatprep.subr.mxu0 0.0
        %2058 = vmatpush1.msra.mxu0 %v1850
        %2059 = vmatprep.subr.mxu0 0.0
        %2060 = vmatpush1.msra.mxu0 %v1851
        %2061 = vmatprep.subr.mxu0 0.0
        %2062 = vmatpush1.msra.mxu0 %v1852
        %2063 = vmatprep.subr.mxu0 0.0
        %2064 = vmatpush1.msra.mxu0 %v1853
        %2065 = vmatprep.subr.mxu0 0.0
        %2066 = vmatpush1.msra.mxu0 %v1854
        %2067 = vmatprep.subr.mxu0 0.0
        %2068 = vmatpush1.msra.mxu0 %v1855
        %2069 = vmatprep.subr.mxu0 0.0
        %2070 = vmatpush1.msra.mxu0 %v1856
        %2071 = vmatprep.subr.mxu0 0.0
        %2072 = vmatpush1.msra.mxu0 %v1857
        %2073 = vmatprep.subr.mxu0 0.0
        %2074 = vmatpush1.msra.mxu0 %v1858
        %2075 = vmatprep.subr.mxu0 0.0
        %2076 = vmatpush1.msra.mxu0 %v1859
        %2077 = vmatprep.subr.mxu0 0.0
        %2078 = vmatpush1.msra.mxu0 %v1860
        %2079 = vmatprep.subr.mxu0 0.0
        %2080 = vmatpush1.msra.mxu0 %v1861
        %2081 = vmatprep.subr.mxu0 0.0
        %2082 = vmatpush1.msra.mxu0 %v1862
        %2083 = vmatprep.subr.mxu0 0.0
        %2084 = vmatpush1.msra.mxu0 %v1863
        %2085 = vmatprep.subr.mxu0 0.0
        %2086 = vmatpush1.msra.mxu0 %v1864
        %2087 = vmatprep.subr.mxu0 0.0
        %2088 = vmatpush1.msra.mxu0 %v1865
        %2089 = vmatprep.subr.mxu0 0.0
        %2090 = vmatpush1.msra.mxu0 %v1866
        %2091 = vmatprep.subr.mxu0 0.0
        %2092 = vmatpush1.msra.mxu0 %v1867
        %2093 = vmatprep.subr.mxu0 0.0
        %2094 = vmatpush1.msra.mxu0 %v1868
        %2095 = vmatprep.subr.mxu0 0.0
        %2096 = vmatpush1.msra.mxu0 %v1869
        %2097 = vmatprep.subr.mxu0 0.0
        %2098 = vmatpush1.msra.mxu0 %v1870
        %2099 = vmatprep.subr.mxu0 0.0
        %2100 = vmatpush1.msra.mxu0 %v1871
        %2101 = vmatprep.subr.mxu0 0.0
        %2102 = vmatpush1.msra.mxu0 %v1872
        %2103 = vmatprep.subr.mxu0 0.0
        %2104 = vmatpush1.msra.mxu0 %v1873
        %2105 = vmatprep.subr.mxu0 0.0
        %2106 = vmatpush1.msra.mxu0 %v1874
        %2107 = vmatprep.subr.mxu0 0.0
        %2108 = vmatpush1.msra.mxu0 %v1875
        %2109 = vmatprep.subr.mxu0 0.0
        %2110 = vmatpush1.msra.mxu0 %v1876
        %2111 = vmatprep.subr.mxu0 0.0
        %2112 = vmatpush1.msra.mxu0 %v1877
        %2113 = vmatprep.subr.mxu0 0.0
        %2114 = vmatpush1.msra.mxu0 %v1878
        %2115 = vmatprep.subr.mxu0 0.0
        %2116 = vmatpush1.msra.mxu0 %v1879
        %2117 = vmatprep.subr.mxu0 0.0
        %2118 = vmatpush1.msra.mxu0 %v1880
        %2119 = vmatprep.subr.mxu0 0.0
        %2120 = vmatpush1.msra.mxu0 %v1881
        %2121 = vmatprep.mubr.f32.mxu0 %v1962
        %2122 = vmatmul.mubr.f32.gmra.mrb[0].mxu0 %v1958
        %v2123 = vpop.f32.mrb[0].mxu0
        %v2124 = vadd.f32 %v2054, %v2123
        %v2125 = vpop.f32.mrb[0].mxu0
        %2126 = vdwg.mxu0
        %2127 = vmatprep.subr.mxu0 0.0
        %2128 = vmatpush1.msra.mxu0 %v1882
        %2129 = vmatprep.subr.mxu0 0.0
        %2130 = vmatpush1.msra.mxu0 %v1883
        %2131 = vmatprep.subr.mxu0 0.0
        %2132 = vmatpush1.msra.mxu0 %v1884
        %2133 = vmatprep.subr.mxu0 0.0
        %2134 = vmatpush1.msra.mxu0 %v1885
        %2135 = vmatprep.subr.mxu0 0.0
        %2136 = vmatpush1.msra.mxu0 %v1886
        %2137 = vmatprep.subr.mxu0 0.0
        %2138 = vmatpush1.msra.mxu0 %v1887
        %2139 = vmatprep.subr.mxu0 0.0
        %2140 = vmatpush1.msra.mxu0 %v1888
        %2141 = vmatprep.subr.mxu0 0.0
        %2142 = vmatpush1.msra.mxu0 %v1889
        %2143 = vmatprep.subr.mxu0 0.0
        %2144 = vmatpush1.msra.mxu0 %v1890
        %2145 = vmatprep.subr.mxu0 0.0
        %2146 = vmatpush1.msra.mxu0 %v1891
        %2147 = vmatprep.subr.mxu0 0.0
        %2148 = vmatpush1.msra.mxu0 %v1892
        %2149 = vmatprep.subr.mxu0 0.0
        %2150 = vmatpush1.msra.mxu0 %v1893
        %2151 = vmatprep.subr.mxu0 0.0
        %2152 = vmatpush1.msra.mxu0 %v1894
        %2153 = vmatprep.subr.mxu0 0.0
        %2154 = vmatpush1.msra.mxu0 %v1895
        %2155 = vmatprep.subr.mxu0 0.0
        %2156 = vmatpush1.msra.mxu0 %v1896
        %2157 = vmatprep.subr.mxu0 0.0
        %2158 = vmatpush1.msra.mxu0 %v1897
        %2159 = vmatprep.subr.mxu0 0.0
        %2160 = vmatpush1.msra.mxu0 %v1898
        %2161 = vmatprep.subr.mxu0 0.0
        %2162 = vmatpush1.msra.mxu0 %v1899
        %2163 = vmatprep.subr.mxu0 0.0
        %2164 = vmatpush1.msra.mxu0 %v1900
        %2165 = vmatprep.subr.mxu0 0.0
        %2166 = vmatpush1.msra.mxu0 %v1901
        %2167 = vmatprep.subr.mxu0 0.0
        %2168 = vmatpush1.msra.mxu0 %v1902
        %2169 = vmatprep.subr.mxu0 0.0
        %2170 = vmatpush1.msra.mxu0 %v1903
        %2171 = vmatprep.subr.mxu0 0.0
        %2172 = vmatpush1.msra.mxu0 %v1904
        %2173 = vmatprep.subr.mxu0 0.0
        %2174 = vmatpush1.msra.mxu0 %v1905
        %2175 = vmatprep.subr.mxu0 0.0
        %2176 = vmatpush1.msra.mxu0 %v1906
        %2177 = vmatprep.subr.mxu0 0.0
        %2178 = vmatpush1.msra.mxu0 %v1907
        %2179 = vmatprep.subr.mxu0 0.0
        %2180 = vmatpush1.msra.mxu0 %v1908
        %2181 = vmatprep.subr.mxu0 0.0
        %2182 = vmatpush1.msra.mxu0 %v1909
        %2183 = vmatprep.subr.mxu0 0.0
        %2184 = vmatpush1.msra.mxu0 %v1910
        %2185 = vmatprep.subr.mxu0 0.0
        %2186 = vmatpush1.msra.mxu0 %v1911
        %2187 = vmatprep.subr.mxu0 0.0
        %2188 = vmatpush1.msra.mxu0 %v1912
        %2189 = vmatprep.subr.mxu0 0.0
        %2190 = vmatpush1.msra.mxu0 %v1913
        %2191 = vmatprep.mubr.f32.mxu0 %v1970
        %2192 = vmatmul.mubr.f32.gmra.mrb[0].mxu0 %v1966
        %v2193 = vpop.f32.mrb[0].mxu0
        %v2194 = vadd.f32 %v2124, %v2193
        %v2195 = vpop.f32.mrb[0].mxu0
        %2196 = vdwg.mxu0
        %2197 = vmatprep.subr.mxu0 0.0
        %2198 = vmatpush1.msra.mxu0 %v1914
        %2199 = vmatprep.subr.mxu0 0.0
        %2200 = vmatpush1.msra.mxu0 %v1915
        %2201 = vmatprep.subr.mxu0 0.0
        %2202 = vmatpush1.msra.mxu0 %v1916
        %2203 = vmatprep.subr.mxu0 0.0
        %2204 = vmatpush1.msra.mxu0 %v1917
        %2205 = vmatprep.subr.mxu0 0.0
        %2206 = vmatpush1.msra.mxu0 %v1918
        %2207 = vmatprep.subr.mxu0 0.0
        %2208 = vmatpush1.msra.mxu0 %v1919
        %2209 = vmatprep.subr.mxu0 0.0
        %2210 = vmatpush1.msra.mxu0 %v1920
        %2211 = vmatprep.subr.mxu0 0.0
        %2212 = vmatpush1.msra.mxu0 %v1921
        %2213 = vmatprep.subr.mxu0 0.0
        %2214 = vmatpush1.msra.mxu0 %v1922
        %2215 = vmatprep.subr.mxu0 0.0
        %2216 = vmatpush1.msra.mxu0 %v1923
        %2217 = vmatprep.subr.mxu0 0.0
        %2218 = vmatpush1.msra.mxu0 %v1924
        %2219 = vmatprep.subr.mxu0 0.0
        %2220 = vmatpush1.msra.mxu0 %v1925
        %2221 = vmatprep.subr.mxu0 0.0
        %2222 = vmatpush1.msra.mxu0 %v1926
        %2223 = vmatprep.subr.mxu0 0.0
        %2224 = vmatpush1.msra.mxu0 %v1927
        %2225 = vmatprep.subr.mxu0 0.0
        %2226 = vmatpush1.msra.mxu0 %v1928
        %2227 = vmatprep.subr.mxu0 0.0
        %2228 = vmatpush1.msra.mxu0 %v1929
        %2229 = vmatprep.subr.mxu0 0.0
        %2230 = vmatpush1.msra.mxu0 %v1930
        %2231 = vmatprep.subr.mxu0 0.0
        %2232 = vmatpush1.msra.mxu0 %v1931
        %2233 = vmatprep.subr.mxu0 0.0
        %2234 = vmatpush1.msra.mxu0 %v1932
        %2235 = vmatprep.subr.mxu0 0.0
        %2236 = vmatpush1.msra.mxu0 %v1933
        %2237 = vmatprep.subr.mxu0 0.0
        %2238 = vmatpush1.msra.mxu0 %v1934
        %2239 = vmatprep.subr.mxu0 0.0
        %2240 = vmatpush1.msra.mxu0 %v1935
        %2241 = vmatprep.subr.mxu0 0.0
        %2242 = vmatpush1.msra.mxu0 %v1936
        %2243 = vmatprep.subr.mxu0 0.0
        %2244 = vmatpush1.msra.mxu0 %v1937
        %2245 = vmatprep.subr.mxu0 0.0
        %2246 = vmatpush1.msra.mxu0 %v1938
        %2247 = vmatprep.subr.mxu0 0.0
        %2248 = vmatpush1.msra.mxu0 %v1939
        %2249 = vmatprep.subr.mxu0 0.0
        %2250 = vmatpush1.msra.mxu0 %v1940
        %2251 = vmatprep.subr.mxu0 0.0
        %2252 = vmatpush1.msra.mxu0 %v1941
        %2253 = vmatprep.subr.mxu0 0.0
        %2254 = vmatpush1.msra.mxu0 %v1942
        %2255 = vmatprep.subr.mxu0 0.0
        %2256 = vmatpush1.msra.mxu0 %v1943
        %2257 = vmatprep.subr.mxu0 0.0
        %2258 = vmatpush1.msra.mxu0 %v1944
        %2259 = vmatprep.subr.mxu0 0.0
        %2260 = vmatpush1.msra.mxu0 %v1945
        %2261 = vmatprep.mubr.f32.mxu0 %v1978
        %2262 = vmatmul.mubr.f32.gmra.mrb[0].mxu0 %v1974
        %v2263 = vpop.f32.mrb[0].mxu0
        %v2264 = vadd.f32 %v2194, %v2263
        %v2265 = vpop.f32.mrb[0].mxu0
        %2266 = vdwg.mxu0
        %v2267 = vmax.f32 %v2264, 0.0
        %v2268 = vld [vmem:[#allocation9] sm:$0xff]
        %v2269 = vld [vmem:[#allocation9 + $0x8] sm:$0xff]
        %v2270 = vld [vmem:[#allocation9 + $0x10] sm:$0xff]
        %v2271 = vld [vmem:[#allocation9 + $0x18] sm:$0xff]
        %v2272 = vld [vmem:[#allocation9 + $0x20] sm:$0xff]
        %v2273 = vld [vmem:[#allocation9 + $0x28] sm:$0xff]
        %v2274 = vld [vmem:[#allocation9 + $0x30] sm:$0xff]
        %v2275 = vld [vmem:[#allocation9 + $0x38] sm:$0xff]
        %v2276 = vld [vmem:[#allocation9 + $0x40] sm:$0xff]
        %v2277 = vld [vmem:[#allocation9 + $0x48] sm:$0xff]
        %v2278 = vld [vmem:[#allocation9 + $0x50] sm:$0xff]
        %v2279 = vld [vmem:[#allocation9 + $0x58] sm:$0xff]
        %v2280 = vld [vmem:[#allocation9 + $0x60] sm:$0xff]
        %v2281 = vld [vmem:[#allocation9 + $0x68] sm:$0xff]
        %v2282 = vld [vmem:[#allocation9 + $0x70] sm:$0xff]
        %v2283 = vld [vmem:[#allocation9 + $0x78] sm:$0xff]
        %v2284 = vld [vmem:[%s8] sm:$0x1]
        %2285 = vmatprep.subr.mxu0 0.0
        %2286 = vmatpush1.msra.mxu0 %v2268
        %2287 = vmatprep.subr.mxu0 0.0
        %2288 = vmatpush1.msra.mxu0 %v2269
        %2289 = vmatprep.subr.mxu0 0.0
        %2290 = vmatpush1.msra.mxu0 %v2270
        %2291 = vmatprep.subr.mxu0 0.0
        %2292 = vmatpush1.msra.mxu0 %v2271
        %2293 = vmatprep.subr.mxu0 0.0
        %2294 = vmatpush1.msra.mxu0 %v2272
        %2295 = vmatprep.subr.mxu0 0.0
        %2296 = vmatpush1.msra.mxu0 %v2273
        %2297 = vmatprep.subr.mxu0 0.0
        %2298 = vmatpush1.msra.mxu0 %v2274
        %2299 = vmatprep.subr.mxu0 0.0
        %2300 = vmatpush1.msra.mxu0 %v2275
        %2301 = vmatprep.subr.mxu0 0.0
        %2302 = vmatpush1.msra.mxu0 %v2276
        %2303 = vmatprep.subr.mxu0 0.0
        %2304 = vmatpush1.msra.mxu0 %v2277
        %2305 = vmatprep.subr.mxu0 0.0
        %2306 = vmatpush1.msra.mxu0 %v2278
        %2307 = vmatprep.subr.mxu0 0.0
        %2308 = vmatpush1.msra.mxu0 %v2279
        %2309 = vmatprep.subr.mxu0 0.0
        %2310 = vmatpush1.msra.mxu0 %v2280
        %2311 = vmatprep.subr.mxu0 0.0
        %2312 = vmatpush1.msra.mxu0 %v2281
        %2313 = vmatprep.subr.mxu0 0.0
        %2314 = vmatpush1.msra.mxu0 %v2282
        %2315 = vmatprep.subr.mxu0 0.0
        %2316 = vmatpush1.msra.mxu0 %v2283
        %2317 = vmatprep.subr.mxu0 0.0
        %2318 = vmatpush1.msra.mxu0 0.0
        %2319 = vmatprep.subr.mxu0 0.0
        %2320 = vmatpush1.msra.mxu0 0.0
        %2321 = vmatprep.subr.mxu0 0.0
        %2322 = vmatpush1.msra.mxu0 0.0
        %2323 = vmatprep.subr.mxu0 0.0
        %2324 = vmatpush1.msra.mxu0 0.0
        %2325 = vmatprep.subr.mxu0 0.0
        %2326 = vmatpush1.msra.mxu0 0.0
        %2327 = vmatprep.subr.mxu0 0.0
        %2328 = vmatpush1.msra.mxu0 0.0
        %2329 = vmatprep.subr.mxu0 0.0
        %2330 = vmatpush1.msra.mxu0 0.0
        %2331 = vmatprep.subr.mxu0 0.0
        %2332 = vmatpush1.msra.mxu0 0.0
        %2333 = vmatprep.subr.mxu0 0.0
        %2334 = vmatpush1.msra.mxu0 0.0
        %2335 = vmatprep.subr.mxu0 0.0
        %2336 = vmatpush1.msra.mxu0 0.0
        %2337 = vmatprep.subr.mxu0 0.0
        %2338 = vmatpush1.msra.mxu0 0.0
        %2339 = vmatprep.subr.mxu0 0.0
        %2340 = vmatpush1.msra.mxu0 0.0
        %2341 = vmatprep.subr.mxu0 0.0
        %2342 = vmatpush1.msra.mxu0 0.0
        %2343 = vmatprep.subr.mxu0 0.0
        %2344 = vmatpush1.msra.mxu0 0.0
        %2345 = vmatprep.subr.mxu0 0.0
        %2346 = vmatpush1.msra.mxu0 0.0
        %2347 = vmatprep.subr.mxu0 0.0
        %2348 = vmatpush1.msra.mxu0 0.0
        %2349 = vmatprep.mubr.f32.mxu0 0.0
        %2350 = vmatmul.mubr.f32.gmra.mrb[0].mxu0 %v2267
        %v2351 = vpop.f32.mrb[0].mxu0
        %v2352 = vadd.f32 %v2284, %v2351
        %v2353 = vpop.f32.mrb[0].mxu0
        %2354 = vdwg.mxu0
        %v2355 = vmax.f32 %v2352, 0.0
        %v2356 = vld [vmem:[#allocation10] sm:$0xff]
        %v2357 = vld [vmem:[#allocation10 + $0x8] sm:$0xff]
        %v2358 = vld [vmem:[#allocation10 + $0x10] sm:$0xff]
        %v2359 = vld [vmem:[#allocation10 + $0x18] sm:$0xff]
        %v2360 = vld [vmem:[#allocation10 + $0x20] sm:$0xff]
        %v2361 = vld [vmem:[#allocation10 + $0x28] sm:$0xff]
        %v2362 = vld [vmem:[#allocation10 + $0x30] sm:$0xff]
        %v2363 = vld [vmem:[#allocation10 + $0x38] sm:$0xff]
        %v2364 = vld [vmem:[#allocation10 + $0x40] sm:$0xff]
        %v2365 = vld [vmem:[#allocation10 + $0x48] sm:$0xff]
        %v2366 = vld [vmem:[#allocation10 + $0x50] sm:$0xff]
        %v2367 = vld [vmem:[#allocation10 + $0x58] sm:$0xff]
        %v2368 = vld [vmem:[#allocation10 + $0x60] sm:$0xff]
        %v2369 = vld [vmem:[#allocation10 + $0x68] sm:$0xff]
        %v2370 = vld [vmem:[#allocation10 + $0x70] sm:$0xff]
        %v2371 = vld [vmem:[#allocation10 + $0x78] sm:$0xff]
        %v2372 = vld [vmem:[%s10] sm:$0x1]
        %2373 = vmatprep.subr.mxu0 0.0
        %2374 = vmatpush1.msra.mxu0 %v2356
        %2375 = vmatprep.subr.mxu0 0.0
        %2376 = vmatpush1.msra.mxu0 %v2357
        %2377 = vmatprep.subr.mxu0 0.0
        %2378 = vmatpush1.msra.mxu0 %v2358
        %2379 = vmatprep.subr.mxu0 0.0
        %2380 = vmatpush1.msra.mxu0 %v2359
        %2381 = vmatprep.subr.mxu0 0.0
        %2382 = vmatpush1.msra.mxu0 %v2360
        %2383 = vmatprep.subr.mxu0 0.0
        %2384 = vmatpush1.msra.mxu0 %v2361
        %2385 = vmatprep.subr.mxu0 0.0
        %2386 = vmatpush1.msra.mxu0 %v2362
        %2387 = vmatprep.subr.mxu0 0.0
        %2388 = vmatpush1.msra.mxu0 %v2363
        %2389 = vmatprep.subr.mxu0 0.0
        %2390 = vmatpush1.msra.mxu0 %v2364
        %2391 = vmatprep.subr.mxu0 0.0
        %2392 = vmatpush1.msra.mxu0 %v2365
        %2393 = vmatprep.subr.mxu0 0.0
        %2394 = vmatpush1.msra.mxu0 %v2366
        %2395 = vmatprep.subr.mxu0 0.0
        %2396 = vmatpush1.msra.mxu0 %v2367
        %2397 = vmatprep.subr.mxu0 0.0
        %2398 = vmatpush1.msra.mxu0 %v2368
        %2399 = vmatprep.subr.mxu0 0.0
        %2400 = vmatpush1.msra.mxu0 %v2369
        %2401 = vmatprep.subr.mxu0 0.0
        %2402 = vmatpush1.msra.mxu0 %v2370
        %2403 = vmatprep.subr.mxu0 0.0
        %2404 = vmatpush1.msra.mxu0 %v2371
        %2405 = vmatprep.subr.mxu0 0.0
        %2406 = vmatpush1.msra.mxu0 0.0
        %2407 = vmatprep.subr.mxu0 0.0
        %2408 = vmatpush1.msra.mxu0 0.0
        %2409 = vmatprep.subr.mxu0 0.0
        %2410 = vmatpush1.msra.mxu0 0.0
        %2411 = vmatprep.subr.mxu0 0.0
        %2412 = vmatpush1.msra.mxu0 0.0
        %2413 = vmatprep.subr.mxu0 0.0
        %2414 = vmatpush1.msra.mxu0 0.0
        %2415 = vmatprep.subr.mxu0 0.0
        %2416 = vmatpush1.msra.mxu0 0.0
        %2417 = vmatprep.subr.mxu0 0.0
        %2418 = vmatpush1.msra.mxu0 0.0
        %2419 = vmatprep.subr.mxu0 0.0
        %2420 = vmatpush1.msra.mxu0 0.0
        %2421 = vmatprep.subr.mxu0 0.0
        %2422 = vmatpush1.msra.mxu0 0.0
        %2423 = vmatprep.subr.mxu0 0.0
        %2424 = vmatpush1.msra.mxu0 0.0
        %2425 = vmatprep.subr.mxu0 0.0
        %2426 = vmatpush1.msra.mxu0 0.0
        %2427 = vmatprep.subr.mxu0 0.0
        %2428 = vmatpush1.msra.mxu0 0.0
        %2429 = vmatprep.subr.mxu0 0.0
        %2430 = vmatpush1.msra.mxu0 0.0
        %2431 = vmatprep.subr.mxu0 0.0
        %2432 = vmatpush1.msra.mxu0 0.0
        %2433 = vmatprep.subr.mxu0 0.0
        %2434 = vmatpush1.msra.mxu0 0.0
        %2435 = vmatprep.subr.mxu0 0.0
        %2436 = vmatpush1.msra.mxu0 0.0
        %2437 = vmatprep.mubr.f32.mxu0 0.0
        %2438 = vmatmul.mubr.f32.gmra.mrb[0].mxu0 %v2355
        %v2439 = vpop.f32.mrb[0].mxu0
        %v2440 = vadd.f32 %v2372, %v2439
        %v2441 = vpop.f32.mrb[0].mxu0
        %2442 = vdwg.mxu0
        %2443 = vst [vmem:[%s437] sm:$0x1] %v2440
        %s2444 = sand.u32 %s272, 1
        %s2445 = scalar_lea.sflag [#allocation6], %s2444
        %s2446 = sand.u32 %s272, 1
        %s2447 = scalar_lea.vmem [#allocation12], %s2446
        // Predicated region
        $region81: #{lenet_forward.1} parent=63 // pred_check
          %p2448 = pneg %p282
        $region82: #{lenet_forward.1} parent=63 // pred_check_branch
          %2450 = sbr.rel (%p2448) target = $region84
        $region83: #{lenet_forward.1} parent=63 // pred_region
          %s2452 = ssub.s32 16, 16
          %2453 = vsyncadd %s2445, %s2452
          %s2454 = smul.addr %s28, 16
          %s2455 = scalar_lea.hbm %s11, %s2454
          %s2457 = sshll.u32 %s2447, 4
          %s2458 = int_to_ptr.vmem [resolvable:$true] %s2457
          %2460 = dma.vmem_to_hbm [thread:$0]  %s2458, 16, %s2455, %s2445
        $region84: #{lenet_forward.1} parent=63 // pred_fallthru
          _
      $region64: #{lenet_forward.1} parent=5 // pred_fallthru
        _
      %p2461 = scmp.le.s32.totalorder 2, %s23
      // Predicated region
      $region85: #{lenet_forward.1} parent=5 // pred_check
        %p2462 = pneg %p2461
      $region86: #{lenet_forward.1} parent=5 // pred_check_branch
        %2464 = sbr.rel (%p2462) target = $region88
      $region87: #{lenet_forward.1} parent=5 // pred_region
        %s2465 = ssub.s32 %s23, 2
        // Predicated region
        $region89: #{lenet_forward.1} parent=87 // pred_check
          %p2466 = pneg %p288
        $region90: #{lenet_forward.1} parent=87 // pred_check_branch
          %2468 = sbr.rel (%p2466) target = $region92
        $region91: #{lenet_forward.1} parent=87 // pred_region
          %s2469 = sand.u32 %s273, 1
          %s2470 = scalar_lea.sflag [#allocation6], %s2469
          %s2471 = sand.u32 %s273, 1
          %s2472 = scalar_lea.vmem [#allocation12], %s2471
          %2473 = dma.done %s2470, 16
        $region92: #{lenet_forward.1} parent=87 // pred_fallthru
          _
      $region88: #{lenet_forward.1} parent=5 // pred_fallthru
        _
    $region6: #{lenet_forward.1} parent=1 // loop_footer
      %s27 = sadd.s32 1, %s23
    $region7: #{lenet_forward.1} parent=1 // loop_footer_branch
      %22 = sbr.rel target = $region3
    $region8: #{lenet_forward.1} parent=1 // loop_exit
      _
    %2474 = vsyncpa [#allocation5], 1
    %s2475 = scalar_lea.sflag [#allocation5], 1
    %2476 = vsyncpa %s2475, 1
    %2477 = vsyncpa [#allocation8], 1
    %2478 = vsyncpa [#allocation11], 1
    %2479 = vsyncpa [#allocation6], 1
    %s2480 = scalar_lea.sflag [#allocation6], 1
    %2481 = vsyncpa %s2480, 1

</llo_original>
